<compile_context>
chip_gen: v6e
topology: v6e:2x2x1
jax: 0.10.0
libtpu: 0.0.40
codegen_flags: <defaults>
</compile_context>

<pallas_src>
import functools

import jax
import jax.numpy as jnp
from jax import lax
from jax.experimental import pallas as pl
from jax.experimental.pallas import tpu as pltpu

EPS = 1e-5


# ---------------------------------------------------------------------------
# Helpers
# ---------------------------------------------------------------------------

def _cparams(est_bytes):
    """Compiler params: parallel grid axis + generation-aware VMEM limit."""
    kwargs = dict(dimension_semantics=("parallel",))
    cap = None
    try:
        cap = getattr(pltpu.get_tpu_info(), "vmem_capacity_bytes", None)
    except Exception:
        cap = None
    if cap:
        # ~15% headroom for compiler-internal scratch / IO double buffers:
        # ~54 MiB on v7x (64 MiB parts), ~109 MiB on v5e/v6e (128 MiB parts).
        kwargs["vmem_limit_bytes"] = int(
            min(0.85 * cap, max(32 * 2 ** 20, 2 * est_bytes)))
    return pltpu.CompilerParams(**kwargs)


def _partial_stats_block(v):
    """Per-tile BN partials for an all-valid (rows, C) f32 tile.

    Row 0 = tile mean, row 1 = tile M2 (sum of squared deviations from the tile
    mean); rows 2..7 pad to the 8-sublane granule.  Deviations are taken around the
    tile mean (shifted / two-pass form) so the cross-tile Chan combine has no
    catastrophic cancellation.
    """
    rows, c = v.shape
    mean = jnp.sum(v, axis=0, keepdims=True) * (1.0 / rows)
    d = v - mean
    m2 = jnp.sum(d * d, axis=0, keepdims=True)
    return jnp.concatenate([mean, m2, jnp.zeros((6, c), jnp.float32)], axis=0)


def _combine_stats(st, rows_per_tile):
    """Exact combine of per-tile (mean, M2) partials -> (mean, rsqrt(var+eps))."""
    means = st[:, 0, :]                       # (T, C)
    m2s = st[:, 1, :]                         # (T, C)
    mean = jnp.mean(means, axis=0)
    m2 = jnp.sum(m2s, axis=0) + rows_per_tile * jnp.sum(
        jnp.square(means - mean), axis=0)
    var = m2 / (st.shape[0] * rows_per_tile)  # biased variance (BN training mode)
    return mean, lax.rsqrt(var + EPS)


def _fold_bn(gamma, beta, mean, rstd):
    """Fold BN(mean, var) + affine into a per-channel (scale, shift) pair."""
    scale = gamma.reshape(1, -1) * rstd.reshape(1, -1)
    shift = beta.reshape(1, -1) - mean.reshape(1, -1) * scale
    return scale.astype(jnp.float32), shift.astype(jnp.float32)


# ---------------------------------------------------------------------------
# Kernels (grid = (N,), one image per grid step, all axes "parallel")
# ---------------------------------------------------------------------------

def _stats_kernel(x_ref, st_ref):
    st_ref[0] = _partial_stats_block(x_ref[0])


def _pre_conv1x1_kernel(x_ref, s_ref, t_ref, w_ref, z_ref, st_ref):
    # BN (folded scale/shift) + ReLU + 1x1 conv, plus fused partial stats of z.
    a = jnp.maximum(x_ref[0] * s_ref[...] + t_ref[...], 0.0)
    z = jnp.dot(a.astype(jnp.bfloat16), w_ref[...],
                preferred_element_type=jnp.float32)
    z_ref[0] = z
    st_ref[0] = _partial_stats_block(z)


def _pre_conv3x3_kernel(z1_ref, s_ref, t_ref, w_ref, z2_ref, st_ref, *, H, W, C, G):
    # BN + ReLU, then 3x3 stride-1 SAME conv as ONE bf16 im2col matmul per image.
    HW = H * W
    a2 = jnp.maximum(z1_ref[0] * s_ref[...] + t_ref[...], 0.0).astype(jnp.bfloat16)
    zg = jnp.zeros((G, C), jnp.bfloat16)
    a2v = jnp.concatenate([zg, a2, zg], axis=0)          # (HW + 2G, C), zero guards
    col = lax.rem(lax.broadcasted_iota(jnp.int32, (HW, 1), 0), W)
    mask_l = (col > 0).astype(jnp.bfloat16)              # x-1 in range
    mask_r = (col < W - 1).astype(jnp.bfloat16)          # x+1 in range
    patches = []
    for ky in range(3):                                  # tap order ky*3+kx matches w2
        for kx in range(3):
            start = G + (ky - 1) * W + (kx - 1)          # static slice start
            p = a2v[start:start + HW, :]
            if kx == 0:
                p = p * mask_l
            elif kx == 2:
                p = p * mask_r
            patches.append(p)
    slab = jnp.concatenate(patches, axis=1)              # (HW, 9C) bf16 im2col slab
    z2 = jnp.dot(slab, w_ref[...], preferred_element_type=jnp.float32)
    z2_ref[0] = z2
    st_ref[0] = _partial_stats_block(z2)


def _head_kernel(*refs, use_proj):
    if use_proj:
        (z2_ref, x_ref, s3_ref, t3_ref, w3_ref,
         ss_ref, ts_ref, ws_ref, o_ref) = refs
    else:
        (z2_ref, x_ref, s3_ref, t3_ref, w3_ref, o_ref) = refs
    a3 = jnp.maximum(z2_ref[0] * s3_ref[...] + t3_ref[...], 0.0)
    out = jnp.dot(a3.astype(jnp.bfloat16), w3_ref[...],
                  preferred_element_type=jnp.float32)
    if use_proj:
        # Projection shortcut: its BN shares x's batch statistics (own gamma/beta).
        a_s = jnp.maximum(x_ref[0] * ss_ref[...] + ts_ref[...], 0.0)
        out = out + jnp.dot(a_s.astype(jnp.bfloat16), ws_ref[...],
                            preferred_element_type=jnp.float32)
    else:
        out = out + x_ref[0]
    o_ref[0] = out


# ---------------------------------------------------------------------------
# Wrappers
# ---------------------------------------------------------------------------

@jax.jit
def residual_block_preact_nhwc(x_nhwc, params):
    """ResidualBlock_PreAct forward, NHWC in / NHWC out (preferred entry point)."""
    N, H, W, Cin = x_nhwc.shape
    Cmid = params["w1"].shape[1]
    Cout = params["w3"].shape[1]
    use_proj = Cin != Cout
    HW = H * W
    G = W + 8                         # zero-guard rows used only for 3x3 tap slicing

    bf16 = jnp.bfloat16
    x3 = x_nhwc.reshape(N, HW, Cin).astype(jnp.float32)     # free reshape, no padding
    w1 = params["w1"].astype(bf16)
    w2 = params["w2"].reshape(9 * Cmid, Cmid).astype(bf16)  # tap-major im2col weights
    w3 = params["w3"].astype(bf16)

    img = lambda c: pl.BlockSpec((1, HW, c), lambda n: (n, 0, 0))
    vec = lambda c: pl.BlockSpec((1, c), lambda n: (0, 0))
    mat = lambda s: pl.BlockSpec(s, lambda n: (0,) * len(s))
    stt = lambda c: pl.BlockSpec((1, 8, c), lambda n: (n, 0, 0))
    img_shape = lambda c: jax.ShapeDtypeStruct((N, HW, c), jnp.float32)
    st_shape = lambda c: jax.ShapeDtypeStruct((N, 8, c), jnp.float32)

    # ---- pass 0: per-image stats of x (BN1 and shortcut BN share x's batch stats) ----
    st_x = pl.pallas_call(
        _stats_kernel, grid=(N,),
        in_specs=[img(Cin)], out_specs=stt(Cin), out_shape=st_shape(Cin),
        compiler_params=_cparams(2 * HW * Cin * 4),
    )(x3)
    mean_x, rstd_x = _combine_stats(st_x, HW)
    s1, t1 = _fold_bn(params["g1"], params["b1"], mean_x, rstd_x)

    # ---- pass 1: BN1 + ReLU + 1x1 conv (Cin -> Cmid), fused z1 partial stats ----
    z1, st1 = pl.pallas_call(
        _pre_conv1x1_kernel, grid=(N,),
        in_specs=[img(Cin), vec(Cin), vec(Cin), mat((Cin, Cmid))],
        out_specs=(img(Cmid), stt(Cmid)),
        out_shape=(img_shape(Cmid), st_shape(Cmid)),
        compiler_params=_cparams(2 * HW * (Cin + Cmid) * 4),
    )(x3, s1, t1, w1)
    mean1, rstd1 = _combine_stats(st1, HW)
    s2, t2 = _fold_bn(params["g2"], params["b2"], mean1, rstd1)

    # ---- pass 2: BN2 + ReLU + 3x3 SAME conv as one bf16 im2col matmul per image ----
    est2 = 4 * HW * Cmid * 4 + 3 * HW * 9 * Cmid * 2 + 2 * (HW + 2 * G) * Cmid * 2
    z2, st2 = pl.pallas_call(
        functools.partial(_pre_conv3x3_kernel, H=H, W=W, C=Cmid, G=G), grid=(N,),
        in_specs=[img(Cmid), vec(Cmid), vec(Cmid), mat((9 * Cmid, Cmid))],
        out_specs=(img(Cmid), stt(Cmid)),
        out_shape=(img_shape(Cmid), st_shape(Cmid)),
        compiler_params=_cparams(est2),
    )(z1, s2, t2, w2)
    mean2, rstd2 = _combine_stats(st2, HW)
    s3, t3 = _fold_bn(params["g3"], params["b3"], mean2, rstd2)

    # ---- pass 3: BN3 + ReLU + 1x1 conv (Cmid -> Cout) + shortcut ----
    args = [z2, x3, s3, t3, w3]
    in_specs = [img(Cmid), img(Cin), vec(Cmid), vec(Cmid), mat((Cmid, Cout))]
    if use_proj:
        ss, ts = _fold_bn(params["gs"], params["bs"], mean_x, rstd_x)
        args += [ss, ts, params["ws"].astype(bf16)]
        in_specs += [vec(Cin), vec(Cin), mat((Cin, Cout))]
    out3 = pl.pallas_call(
        functools.partial(_head_kernel, use_proj=use_proj), grid=(N,),
        in_specs=in_specs, out_specs=img(Cout), out_shape=img_shape(Cout),
        compiler_params=_cparams(2 * HW * (Cin + Cmid + Cout) * 4),
    )(*args)
    return out3.reshape(N, H, W, Cout)


def residual_block_preact(x_nchw, params):
    """NCHW wrapper matching the PyTorch module's interface.

    # TODO(synk): when stacking blocks (HourglassBlock / HourglassNetwork) call
    # residual_block_preact_nhwc directly and keep activations NHWC to avoid the
    # per-block transpose round trips.
    """
    x_nhwc = jnp.transpose(x_nchw, (0, 2, 3, 1))
    out = residual_block_preact_nhwc(x_nhwc, params)
    return jnp.transpose(out, (0, 3, 1, 2))


# ---------------------------------------------------------------------------
# Parameter init + pure-JAX reference (matched precision) for correctness check
# ---------------------------------------------------------------------------

def init_params(key, in_plane, out_plane):
    """Deterministic parameter init matching the module's shapes.
    BN: gamma=1, beta=0 (PyTorch default). Conv weights: scaled normal."""
    cmid = out_plane // 2
    k1, k2, k3, k4 = jax.random.split(key, 4)
    p = {
        "g1": jnp.ones((1, in_plane), jnp.float32),
        "b1": jnp.zeros((1, in_plane), jnp.float32),
        "w1": 0.1 * jax.random.normal(k1, (in_plane, cmid), jnp.float32),
        "g2": jnp.ones((1, cmid), jnp.float32),
        "b2": jnp.zeros((1, cmid), jnp.float32),
        # 3x3 conv weights, tap-major: w2[ky*3+kx, cin, cout]
        "w2": 0.1 * jax.random.normal(k2, (9, cmid, cmid), jnp.float32),
        "g3": jnp.ones((1, cmid), jnp.float32),
        "b3": jnp.zeros((1, cmid), jnp.float32),
        "w3": 0.1 * jax.random.normal(k3, (cmid, out_plane), jnp.float32),
    }
    if in_plane != out_plane:
        p["gs"] = jnp.ones((1, in_plane), jnp.float32)
        p["bs"] = jnp.zeros((1, in_plane), jnp.float32)
        p["ws"] = 0.1 * jax.random.normal(k4, (in_plane, out_plane), jnp.float32)
    return p


def ref_forward(x_nchw, params):
    """Pure-JAX reference at matched precision (bf16 matmul/conv inputs, f32 acc)."""
    N, Cin, H, W = x_nchw.shape
    Cmid = params["w1"].shape[1]
    Cout = params["w3"].shape[1]
    bf16 = jnp.bfloat16
    x = jnp.transpose(x_nchw, (0, 2, 3, 1))

    def bn_relu(v, g, b):
        mean = v.mean(axis=(0, 1, 2), keepdims=True)
        var = jnp.square(v - mean).mean(axis=(0, 1, 2), keepdims=True)
        return jnp.maximum((v - mean) / jnp.sqrt(var + EPS)
                           * g.reshape(1, 1, 1, -1) + b.reshape(1, 1, 1, -1), 0.0)

    def conv1x1(a, w):
        y = jnp.dot(a.reshape(-1, a.shape[-1]).astype(bf16), w.astype(bf16),
                    preferred_element_type=jnp.float32)
        return y.reshape(a.shape[:-1] + (w.shape[1],))

    a1 = bn_relu(x, params["g1"], params["b1"])
    z1 = conv1x1(a1, params["w1"])
    a2 = bn_relu(z1, params["g2"], params["b2"])
    w2_hwio = params["w2"].reshape(3, 3, Cmid, Cmid)
    z2 = lax.conv_general_dilated(a2.astype(bf16), w2_hwio.astype(bf16),
                                  (1, 1), "SAME",
                                  dimension_numbers=("NHWC", "HWIO", "NHWC"),
                                  preferred_element_type=jnp.float32)
    a3 = bn_relu(z2, params["g3"], params["b3"])
    out = conv1x1(a3, params["w3"])
    if Cin != Cout:
        a_s = bn_relu(x, params["gs"], params["bs"])
        res = conv1x1(a_s, params["ws"])
    else:
        res = x
    return jnp.transpose(out + res, (0, 3, 1, 2))


if __name__ == "__main__":
    key = jax.random.PRNGKey(0)
    kx, kx2, kp1, kp2 = jax.random.split(key, 4)

    # Case 1: in_plane != out_plane -> projection (BN+ReLU+conv1x1) shortcut.
    x = jax.random.normal(kx, (2, 4, 16, 16), jnp.float32)
    params = init_params(kp1, 4, 8)
    out = jax.block_until_ready(residual_block_preact(x, params))
    ref = ref_forward(x, params)
    assert out.shape == (2, 8, 16, 16)
    err1 = float(jnp.max(jnp.abs(out - ref)))
    assert jnp.allclose(out, ref, atol=2e-2, rtol=2e-2), err1

    # Case 2: in_plane == out_plane -> identity shortcut.
    x2 = jax.random.normal(kx2, (2, 8, 16, 16), jnp.float32)
    params2 = init_params(kp2, 8, 8)
    out2 = jax.block_until_ready(residual_block_preact(x2, params2))
    ref2 = ref_forward(x2, params2)
    assert out2.shape == (2, 8, 16, 16)
    err2 = float(jnp.max(jnp.abs(out2 - ref2)))
    assert jnp.allclose(out2, ref2, atol=2e-2, rtol=2e-2), err2

    print("KERNEL_OK")
</pallas_src>

<mosaic_0001>
module attributes {stable_mosaic.version = 11 : i64} {
  func.func @_stats_kernel(%arg0: i32, %arg1: memref<1x256x4xf32, #tpu.memory_space<vmem>>, %arg2: memref<1x8x4xf32, #tpu.memory_space<vmem>>) attributes {dimension_semantics = [#tpu.dimension_semantics<parallel>], iteration_bounds = array<i64: 2>, scalar_prefetch = 0 : i64, scratch_operands = 0 : i64, tpu.core_type = #tpu.core_type<tc>, window_params = [{transform_indices = @transform_0, window_bounds = array<i64: 1, 256, 4>}, {transform_indices = @transform_1, window_bounds = array<i64: 1, 8, 4>}]} {
    %c0 = arith.constant 0 : index
    %c0_0 = arith.constant 0 : index
    %c0_1 = arith.constant 0 : index
    %0 = vector.load %arg1[%c0, %c0_0, %c0_1] : memref<1x256x4xf32, #tpu.memory_space<vmem>>, vector<1x256x4xf32>
    %1 = vector.shape_cast %0 : vector<1x256x4xf32> to vector<256x4xf32>
    %cst = arith.constant dense<0.000000e+00> : vector<4xf32>
    %2 = vector.multi_reduction <add>, %1, %cst [0] : vector<256x4xf32> to vector<4xf32>
    %3 = vector.shape_cast %2 : vector<4xf32> to vector<1x4xf32>
    %cst_2 = arith.constant 3.906250e-03 : f32
    %4 = vector.broadcast %cst_2 : f32 to vector<1x4xf32>
    %5 = arith.mulf %3, %4 : vector<1x4xf32>
    %6 = vector.broadcast %5 : vector<1x4xf32> to vector<256x4xf32>
    %7 = arith.subf %1, %6 : vector<256x4xf32>
    %8 = arith.mulf %7, %7 : vector<256x4xf32>
    %cst_3 = arith.constant dense<0.000000e+00> : vector<4xf32>
    %9 = vector.multi_reduction <add>, %8, %cst_3 [0] : vector<256x4xf32> to vector<4xf32>
    %10 = vector.shape_cast %9 : vector<4xf32> to vector<1x4xf32>
    %cst_4 = arith.constant 0.000000e+00 : f32
    %11 = vector.broadcast %cst_4 : f32 to vector<6x4xf32>
    %12 = tpu.concatenate %5, %10, %11 in 0 : vector<1x4xf32>, vector<1x4xf32>, vector<6x4xf32> -> vector<8x4xf32>
    %c0_5 = arith.constant 0 : index
    %c0_6 = arith.constant 0 : index
    %c0_7 = arith.constant 0 : index
    %13 = vector.load %arg2[%c0_5, %c0_6, %c0_7] : memref<1x8x4xf32, #tpu.memory_space<vmem>>, vector<1x8x4xf32>
    %14 = vector.shape_cast %13 : vector<1x8x4xf32> to vector<8x4xf32>
    %15 = vector.shape_cast %12 : vector<8x4xf32> to vector<1x8x4xf32>
    tpu.vector_store %arg2[%c0_5, %c0_6, %c0_7], %15 {strides = array<i32>} : memref<1x8x4xf32, #tpu.memory_space<vmem>>, vector<1x8x4xf32>,
    return
  }
  func.func @transform_0(%arg0: i32) -> (i32, i32, i32) {
    %c0_i32 = arith.constant 0 : i32
    %c0_i32_0 = arith.constant 0 : i32
    %c0_i32_1 = arith.constant 0 : i32
    return %arg0, %c0_i32, %c0_i32_0 : i32, i32, i32
  }
  func.func @transform_1(%arg0: i32) -> (i32, i32, i32) {
    %c0_i32 = arith.constant 0 : i32
    %c0_i32_0 = arith.constant 0 : i32
    %c0_i32_1 = arith.constant 0 : i32
    return %arg0, %c0_i32, %c0_i32_0 : i32, i32, i32
  }
}

module attributes {stable_mosaic.version = 11 : i64} {
  func.func @_pre_conv1x1_kernel(%arg0: i32, %arg1: memref<1x256x4xf32, #tpu.memory_space<vmem>>, %arg2: memref<1x4xf32, #tpu.memory_space<vmem>>, %arg3: memref<1x4xf32, #tpu.memory_space<vmem>>, %arg4: memref<4x4xbf16, #tpu.memory_space<vmem>>, %arg5: memref<1x256x4xf32, #tpu.memory_space<vmem>>, %arg6: memref<1x8x4xf32, #tpu.memory_space<vmem>>) attributes {dimension_semantics = [#tpu.dimension_semantics<parallel>], iteration_bounds = array<i64: 2>, scalar_prefetch = 0 : i64, scratch_operands = 0 : i64, tpu.core_type = #tpu.core_type<tc>, window_params = [{transform_indices = @transform_0, window_bounds = array<i64: 1, 256, 4>}, {pipeline_mode = #tpu.pipeline_mode<synchronous>, transform_indices = @transform_1, window_bounds = array<i64: 1, 4>}, {pipeline_mode = #tpu.pipeline_mode<synchronous>, transform_indices = @transform_2, window_bounds = array<i64: 1, 4>}, {pipeline_mode = #tpu.pipeline_mode<synchronous>, transform_indices = @transform_3, window_bounds = array<i64: 4, 4>}, {transform_indices = @transform_4, window_bounds = array<i64: 1, 256, 4>}, {transform_indices = @transform_5, window_bounds = array<i64: 1, 8, 4>}]} {
    %c0 = arith.constant 0 : index
    %c0_0 = arith.constant 0 : index
    %c0_1 = arith.constant 0 : index
    %0 = vector.load %arg1[%c0, %c0_0, %c0_1] : memref<1x256x4xf32, #tpu.memory_space<vmem>>, vector<1x256x4xf32>
    %1 = vector.shape_cast %0 : vector<1x256x4xf32> to vector<256x4xf32>
    %c0_2 = arith.constant 0 : index
    %c0_3 = arith.constant 0 : index
    %2 = vector.load %arg2[%c0_2, %c0_3] : memref<1x4xf32, #tpu.memory_space<vmem>>, vector<1x4xf32>
    %3 = vector.broadcast %2 : vector<1x4xf32> to vector<256x4xf32>
    %4 = arith.mulf %1, %3 : vector<256x4xf32>
    %c0_4 = arith.constant 0 : index
    %c0_5 = arith.constant 0 : index
    %5 = vector.load %arg3[%c0_4, %c0_5] : memref<1x4xf32, #tpu.memory_space<vmem>>, vector<1x4xf32>
    %6 = vector.broadcast %5 : vector<1x4xf32> to vector<256x4xf32>
    %7 = arith.addf %4, %6 : vector<256x4xf32>
    %cst = arith.constant 0.000000e+00 : f32
    %8 = vector.broadcast %cst : f32 to vector<256x4xf32>
    %9 = arith.maximumf %7, %8 : vector<256x4xf32>
    %10 = arith.truncf %9 : vector<256x4xf32> to vector<256x4xbf16>
    %c0_6 = arith.constant 0 : index
    %c0_7 = arith.constant 0 : index
    %11 = vector.load %arg4[%c0_6, %c0_7] : memref<4x4xbf16, #tpu.memory_space<vmem>>, vector<4x4xbf16>
    %cst_8 = arith.constant dense<0.000000e+00> : vector<256x4xf32>
    %12 = tpu.matmul %10, %11, %cst_8 {dimension_numbers = #tpu.dot_dimension_numbers<[1], [0], [0], [1], [0, 0, 1, 1], [], []>} : vector<256x4xbf16>, vector<4x4xbf16>, vector<256x4xf32> -> vector<256x4xf32>
    %c0_9 = arith.constant 0 : index
    %c0_10 = arith.constant 0 : index
    %c0_11 = arith.constant 0 : index
    %13 = vector.load %arg5[%c0_9, %c0_10, %c0_11] : memref<1x256x4xf32, #tpu.memory_space<vmem>>, vector<1x256x4xf32>
    %14 = vector.shape_cast %13 : vector<1x256x4xf32> to vector<256x4xf32>
    %15 = vector.shape_cast %12 : vector<256x4xf32> to vector<1x256x4xf32>
    tpu.vector_store %arg5[%c0_9, %c0_10, %c0_11], %15 {strides = array<i32>} : memref<1x256x4xf32, #tpu.memory_space<vmem>>, vector<1x256x4xf32>,
    %cst_12 = arith.constant dense<0.000000e+00> : vector<4xf32>
    %16 = vector.multi_reduction <add>, %12, %cst_12 [0] : vector<256x4xf32> to vector<4xf32>
    %17 = vector.shape_cast %16 : vector<4xf32> to vector<1x4xf32>
    %cst_13 = arith.constant 3.906250e-03 : f32
    %18 = vector.broadcast %cst_13 : f32 to vector<1x4xf32>
    %19 = arith.mulf %17, %18 : vector<1x4xf32>
    %20 = vector.broadcast %19 : vector<1x4xf32> to vector<256x4xf32>
    %21 = arith.subf %12, %20 : vector<256x4xf32>
    %22 = arith.mulf %21, %21 : vector<256x4xf32>
    %cst_14 = arith.constant dense<0.000000e+00> : vector<4xf32>
    %23 = vector.multi_reduction <add>, %22, %cst_14 [0] : vector<256x4xf32> to vector<4xf32>
    %24 = vector.shape_cast %23 : vector<4xf32> to vector<1x4xf32>
    %cst_15 = arith.constant 0.000000e+00 : f32
    %25 = vector.broadcast %cst_15 : f32 to vector<6x4xf32>
    %26 = tpu.concatenate %19, %24, %25 in 0 : vector<1x4xf32>, vector<1x4xf32>, vector<6x4xf32> -> vector<8x4xf32>
    %c0_16 = arith.constant 0 : index
    %c0_17 = arith.constant 0 : index
    %c0_18 = arith.constant 0 : index
    %27 = vector.load %arg6[%c0_16, %c0_17, %c0_18] : memref<1x8x4xf32, #tpu.memory_space<vmem>>, vector<1x8x4xf32>
    %28 = vector.shape_cast %27 : vector<1x8x4xf32> to vector<8x4xf32>
    %29 = vector.shape_cast %26 : vector<8x4xf32> to vector<1x8x4xf32>
    tpu.vector_store %arg6[%c0_16, %c0_17, %c0_18], %29 {strides = array<i32>} : memref<1x8x4xf32, #tpu.memory_space<vmem>>, vector<1x8x4xf32>,
    return
  }
  func.func @transform_0(%arg0: i32) -> (i32, i32, i32) {
    %c0_i32 = arith.constant 0 : i32
    %c0_i32_0 = arith.constant 0 : i32
    %c0_i32_1 = arith.constant 0 : i32
    return %arg0, %c0_i32, %c0_i32_0 : i32, i32, i32
  }
  func.func @transform_1(%arg0: i32) -> (i32, i32) {
    %c0_i32 = arith.constant 0 : i32
    %c0_i32_0 = arith.constant 0 : i32
    %c0_i32_1 = arith.constant 0 : i32
    return %c0_i32, %c0_i32_0 : i32, i32
  }
  func.func @transform_2(%arg0: i32) -> (i32, i32) {
    %c0_i32 = arith.constant 0 : i32
    %c0_i32_0 = arith.constant 0 : i32
    %c0_i32_1 = arith.constant 0 : i32
    return %c0_i32, %c0_i32_0 : i32, i32
  }
  func.func @transform_3(%arg0: i32) -> (i32, i32) {
    %c0_i32 = arith.constant 0 : i32
    %c0_i32_0 = arith.constant 0 : i32
    %c0_i32_1 = arith.constant 0 : i32
    return %c0_i32, %c0_i32_0 : i32, i32
  }
  func.func @transform_4(%arg0: i32) -> (i32, i32, i32) {
    %c0_i32 = arith.constant 0 : i32
    %c0_i32_0 = arith.constant 0 : i32
    %c0_i32_1 = arith.constant 0 : i32
    return %arg0, %c0_i32, %c0_i32_0 : i32, i32, i32
  }
  func.func @transform_5(%arg0: i32) -> (i32, i32, i32) {
    %c0_i32 = arith.constant 0 : i32
    %c0_i32_0 = arith.constant 0 : i32
    %c0_i32_1 = arith.constant 0 : i32
    return %arg0, %c0_i32, %c0_i32_0 : i32, i32, i32
  }
}

module attributes {stable_mosaic.version = 11 : i64} {
  func.func @_pre_conv3x3_kernel(%arg0: i32, %arg1: memref<1x256x4xf32, #tpu.memory_space<vmem>>, %arg2: memref<1x4xf32, #tpu.memory_space<vmem>>, %arg3: memref<1x4xf32, #tpu.memory_space<vmem>>, %arg4: memref<36x4xbf16, #tpu.memory_space<vmem>>, %arg5: memref<1x256x4xf32, #tpu.memory_space<vmem>>, %arg6: memref<1x8x4xf32, #tpu.memory_space<vmem>>) attributes {dimension_semantics = [#tpu.dimension_semantics<parallel>], iteration_bounds = array<i64: 2>, scalar_prefetch = 0 : i64, scratch_operands = 0 : i64, tpu.core_type = #tpu.core_type<tc>, window_params = [{transform_indices = @transform_0, window_bounds = array<i64: 1, 256, 4>}, {pipeline_mode = #tpu.pipeline_mode<synchronous>, transform_indices = @transform_1, window_bounds = array<i64: 1, 4>}, {pipeline_mode = #tpu.pipeline_mode<synchronous>, transform_indices = @transform_2, window_bounds = array<i64: 1, 4>}, {pipeline_mode = #tpu.pipeline_mode<synchronous>, transform_indices = @transform_3, window_bounds = array<i64: 36, 4>}, {transform_indices = @transform_4, window_bounds = array<i64: 1, 256, 4>}, {transform_indices = @transform_5, window_bounds = array<i64: 1, 8, 4>}]} {
    %c0 = arith.constant 0 : index
    %c0_0 = arith.constant 0 : index
    %c0_1 = arith.constant 0 : index
    %0 = vector.load %arg1[%c0, %c0_0, %c0_1] : memref<1x256x4xf32, #tpu.memory_space<vmem>>, vector<1x256x4xf32>
    %1 = vector.shape_cast %0 : vector<1x256x4xf32> to vector<256x4xf32>
    %c0_2 = arith.constant 0 : index
    %c0_3 = arith.constant 0 : index
    %2 = vector.load %arg2[%c0_2, %c0_3] : memref<1x4xf32, #tpu.memory_space<vmem>>, vector<1x4xf32>
    %3 = vector.broadcast %2 : vector<1x4xf32> to vector<256x4xf32>
    %4 = arith.mulf %1, %3 : vector<256x4xf32>
    %c0_4 = arith.constant 0 : index
    %c0_5 = arith.constant 0 : index
    %5 = vector.load %arg3[%c0_4, %c0_5] : memref<1x4xf32, #tpu.memory_space<vmem>>, vector<1x4xf32>
    %6 = vector.broadcast %5 : vector<1x4xf32> to vector<256x4xf32>
    %7 = arith.addf %4, %6 : vector<256x4xf32>
    %cst = arith.constant 0.000000e+00 : f32
    %8 = vector.broadcast %cst : f32 to vector<256x4xf32>
    %9 = arith.maximumf %7, %8 : vector<256x4xf32>
    %10 = arith.truncf %9 : vector<256x4xf32> to vector<256x4xbf16>
    %cst_6 = arith.constant 0.000000e+00 : bf16
    %11 = vector.broadcast %cst_6 : bf16 to vector<24x4xbf16>
    %12 = tpu.concatenate %11, %10, %11 in 0 : vector<24x4xbf16>, vector<256x4xbf16>, vector<24x4xbf16> -> vector<304x4xbf16>
    %13 = tpu.iota {dimensions = array<i32: 0>} : vector<256x1xi32>
    %c16_i32 = arith.constant 16 : i32
    %14 = vector.broadcast %c16_i32 : i32 to vector<256x1xi32>
    %15 = arith.remsi %13, %14 : vector<256x1xi32>
    %c0_i32 = arith.constant 0 : i32
    %16 = vector.broadcast %c0_i32 : i32 to vector<256x1xi32>
    %17 = arith.cmpi sgt, %15, %16 : vector<256x1xi32>
    %18 = arith.extui %17 : vector<256x1xi1> to vector<256x1xi32>
    %19 = arith.sitofp %18 : vector<256x1xi32> to vector<256x1xf32>
    %20 = arith.truncf %19 : vector<256x1xf32> to vector<256x1xbf16>
    %c15_i32 = arith.constant 15 : i32
    %21 = vector.broadcast %c15_i32 : i32 to vector<256x1xi32>
    %22 = arith.cmpi slt, %15, %21 : vector<256x1xi32>
    %23 = arith.extui %22 : vector<256x1xi1> to vector<256x1xi32>
    %24 = arith.sitofp %23 : vector<256x1xi32> to vector<256x1xf32>
    %25 = arith.truncf %24 : vector<256x1xf32> to vector<256x1xbf16>
    %26 = vector.extract_strided_slice %12 {offsets = [7, 0], sizes = [256, 4], strides = [1, 1]} : vector<304x4xbf16> to vector<256x4xbf16>
    %27 = vector.broadcast %20 : vector<256x1xbf16> to vector<256x4xbf16>
    %28 = arith.mulf %26, %27 : vector<256x4xbf16>
    %29 = vector.extract_strided_slice %12 {offsets = [8, 0], sizes = [256, 4], strides = [1, 1]} : vector<304x4xbf16> to vector<256x4xbf16>
    %30 = vector.extract_strided_slice %12 {offsets = [9, 0], sizes = [256, 4], strides = [1, 1]} : vector<304x4xbf16> to vector<256x4xbf16>
    %31 = vector.broadcast %25 : vector<256x1xbf16> to vector<256x4xbf16>
    %32 = arith.mulf %30, %31 : vector<256x4xbf16>
    %33 = vector.extract_strided_slice %12 {offsets = [23, 0], sizes = [256, 4], strides = [1, 1]} : vector<304x4xbf16> to vector<256x4xbf16>
    %34 = vector.broadcast %20 : vector<256x1xbf16> to vector<256x4xbf16>
    %35 = arith.mulf %33, %34 : vector<256x4xbf16>
    %36 = vector.extract_strided_slice %12 {offsets = [24, 0], sizes = [256, 4], strides = [1, 1]} : vector<304x4xbf16> to vector<256x4xbf16>
    %37 = vector.extract_strided_slice %12 {offsets = [25, 0], sizes = [256, 4], strides = [1, 1]} : vector<304x4xbf16> to vector<256x4xbf16>
    %38 = vector.broadcast %25 : vector<256x1xbf16> to vector<256x4xbf16>
    %39 = arith.mulf %37, %38 : vector<256x4xbf16>
    %40 = vector.extract_strided_slice %12 {offsets = [39, 0], sizes = [256, 4], strides = [1, 1]} : vector<304x4xbf16> to vector<256x4xbf16>
    %41 = vector.broadcast %20 : vector<256x1xbf16> to vector<256x4xbf16>
    %42 = arith.mulf %40, %41 : vector<256x4xbf16>
    %43 = vector.extract_strided_slice %12 {offsets = [40, 0], sizes = [256, 4], strides = [1, 1]} : vector<304x4xbf16> to vector<256x4xbf16>
    %44 = vector.extract_strided_slice %12 {offsets = [41, 0], sizes = [256, 4], strides = [1, 1]} : vector<304x4xbf16> to vector<256x4xbf16>
    %45 = vector.broadcast %25 : vector<256x1xbf16> to vector<256x4xbf16>
    %46 = arith.mulf %44, %45 : vector<256x4xbf16>
    %47 = tpu.concatenate %28, %29, %32, %35, %36, %39, %42, %43, %46 in 1 : vector<256x4xbf16>, vector<256x4xbf16>, vector<256x4xbf16>, vector<256x4xbf16>, vector<256x4xbf16>, vector<256x4xbf16>, vector<256x4xbf16>, vector<256x4xbf16>, vector<256x4xbf16> -> vector<256x36xbf16>
    %c0_7 = arith.constant 0 : index
    %c0_8 = arith.constant 0 : index
    %48 = vector.load %arg4[%c0_7, %c0_8] : memref<36x4xbf16, #tpu.memory_space<vmem>>, vector<36x4xbf16>
    %cst_9 = arith.constant dense<0.000000e+00> : vector<256x4xf32>
    %49 = tpu.matmul %47, %48, %cst_9 {dimension_numbers = #tpu.dot_dimension_numbers<[1], [0], [0], [1], [0, 0, 1, 1], [], []>} : vector<256x36xbf16>, vector<36x4xbf16>, vector<256x4xf32> -> vector<256x4xf32>
    %c0_10 = arith.constant 0 : index
    %c0_11 = arith.constant 0 : index
    %c0_12 = arith.constant 0 : index
    %50 = vector.load %arg5[%c0_10, %c0_11, %c0_12] : memref<1x256x4xf32, #tpu.memory_space<vmem>>, vector<1x256x4xf32>
    %51 = vector.shape_cast %50 : vector<1x256x4xf32> to vector<256x4xf32>
    %52 = vector.shape_cast %49 : vector<256x4xf32> to vector<1x256x4xf32>
    tpu.vector_store %arg5[%c0_10, %c0_11, %c0_12], %52 {strides = array<i32>} : memref<1x256x4xf32, #tpu.memory_space<vmem>>, vector<1x256x4xf32>,
    %cst_13 = arith.constant dense<0.000000e+00> : vector<4xf32>
    %53 = vector.multi_reduction <add>, %49, %cst_13 [0] : vector<256x4xf32> to vector<4xf32>
    %54 = vector.shape_cast %53 : vector<4xf32> to vector<1x4xf32>
    %cst_14 = arith.constant 3.906250e-03 : f32
    %55 = vector.broadcast %cst_14 : f32 to vector<1x4xf32>
    %56 = arith.mulf %54, %55 : vector<1x4xf32>
    %57 = vector.broadcast %56 : vector<1x4xf32> to vector<256x4xf32>
    %58 = arith.subf %49, %57 : vector<256x4xf32>
    %59 = arith.mulf %58, %58 : vector<256x4xf32>
    %cst_15 = arith.constant dense<0.000000e+00> : vector<4xf32>
    %60 = vector.multi_reduction <add>, %59, %cst_15 [0] : vector<256x4xf32> to vector<4xf32>
    %61 = vector.shape_cast %60 : vector<4xf32> to vector<1x4xf32>
    %cst_16 = arith.constant 0.000000e+00 : f32
    %62 = vector.broadcast %cst_16 : f32 to vector<6x4xf32>
    %63 = tpu.concatenate %56, %61, %62 in 0 : vector<1x4xf32>, vector<1x4xf32>, vector<6x4xf32> -> vector<8x4xf32>
    %c0_17 = arith.constant 0 : index
    %c0_18 = arith.constant 0 : index
    %c0_19 = arith.constant 0 : index
    %64 = vector.load %arg6[%c0_17, %c0_18, %c0_19] : memref<1x8x4xf32, #tpu.memory_space<vmem>>, vector<1x8x4xf32>
    %65 = vector.shape_cast %64 : vector<1x8x4xf32> to vector<8x4xf32>
    %66 = vector.shape_cast %63 : vector<8x4xf32> to vector<1x8x4xf32>
    tpu.vector_store %arg6[%c0_17, %c0_18, %c0_19], %66 {strides = array<i32>} : memref<1x8x4xf32, #tpu.memory_space<vmem>>, vector<1x8x4xf32>,
    return
  }
  func.func @transform_0(%arg0: i32) -> (i32, i32, i32) {
    %c0_i32 = arith.constant 0 : i32
    %c0_i32_0 = arith.constant 0 : i32
    %c0_i32_1 = arith.constant 0 : i32
    return %arg0, %c0_i32, %c0_i32_0 : i32, i32, i32
  }
  func.func @transform_1(%arg0: i32) -> (i32, i32) {
    %c0_i32 = arith.constant 0 : i32
    %c0_i32_0 = arith.constant 0 : i32
    %c0_i32_1 = arith.constant 0 : i32
    return %c0_i32, %c0_i32_0 : i32, i32
  }
  func.func @transform_2(%arg0: i32) -> (i32, i32) {
    %c0_i32 = arith.constant 0 : i32
    %c0_i32_0 = arith.constant 0 : i32
    %c0_i32_1 = arith.constant 0 : i32
    return %c0_i32, %c0_i32_0 : i32, i32
  }
  func.func @transform_3(%arg0: i32) -> (i32, i32) {
    %c0_i32 = arith.constant 0 : i32
    %c0_i32_0 = arith.constant 0 : i32
    %c0_i32_1 = arith.constant 0 : i32
    return %c0_i32, %c0_i32_0 : i32, i32
  }
  func.func @transform_4(%arg0: i32) -> (i32, i32, i32) {
    %c0_i32 = arith.constant 0 : i32
    %c0_i32_0 = arith.constant 0 : i32
    %c0_i32_1 = arith.constant 0 : i32
    return %arg0, %c0_i32, %c0_i32_0 : i32, i32, i32
  }
  func.func @transform_5(%arg0: i32) -> (i32, i32, i32) {
    %c0_i32 = arith.constant 0 : i32
    %c0_i32_0 = arith.constant 0 : i32
    %c0_i32_1 = arith.constant 0 : i32
    return %arg0, %c0_i32, %c0_i32_0 : i32, i32, i32
  }
}

module attributes {stable_mosaic.version = 11 : i64} {
  func.func @_head_kernel(%arg0: i32, %arg1: memref<1x256x4xf32, #tpu.memory_space<vmem>>, %arg2: memref<1x256x4xf32, #tpu.memory_space<vmem>>, %arg3: memref<1x4xf32, #tpu.memory_space<vmem>>, %arg4: memref<1x4xf32, #tpu.memory_space<vmem>>, %arg5: memref<4x8xbf16, #tpu.memory_space<vmem>>, %arg6: memref<1x4xf32, #tpu.memory_space<vmem>>, %arg7: memref<1x4xf32, #tpu.memory_space<vmem>>, %arg8: memref<4x8xbf16, #tpu.memory_space<vmem>>, %arg9: memref<1x256x8xf32, #tpu.memory_space<vmem>>) attributes {dimension_semantics = [#tpu.dimension_semantics<parallel>], iteration_bounds = array<i64: 2>, scalar_prefetch = 0 : i64, scratch_operands = 0 : i64, tpu.core_type = #tpu.core_type<tc>, window_params = [{transform_indices = @transform_0, window_bounds = array<i64: 1, 256, 4>}, {transform_indices = @transform_1, window_bounds = array<i64: 1, 256, 4>}, {pipeline_mode = #tpu.pipeline_mode<synchronous>, transform_indices = @transform_2, window_bounds = array<i64: 1, 4>}, {pipeline_mode = #tpu.pipeline_mode<synchronous>, transform_indices = @transform_3, window_bounds = array<i64: 1, 4>}, {pipeline_mode = #tpu.pipeline_mode<synchronous>, transform_indices = @transform_4, window_bounds = array<i64: 4, 8>}, {pipeline_mode = #tpu.pipeline_mode<synchronous>, transform_indices = @transform_5, window_bounds = array<i64: 1, 4>}, {pipeline_mode = #tpu.pipeline_mode<synchronous>, transform_indices = @transform_6, window_bounds = array<i64: 1, 4>}, {pipeline_mode = #tpu.pipeline_mode<synchronous>, transform_indices = @transform_7, window_bounds = array<i64: 4, 8>}, {transform_indices = @transform_8, window_bounds = array<i64: 1, 256, 8>}]} {
    %c0 = arith.constant 0 : index
    %c0_0 = arith.constant 0 : index
    %c0_1 = arith.constant 0 : index
    %0 = vector.load %arg1[%c0, %c0_0, %c0_1] : memref<1x256x4xf32, #tpu.memory_space<vmem>>, vector<1x256x4xf32>
    %1 = vector.shape_cast %0 : vector<1x256x4xf32> to vector<256x4xf32>
    %c0_2 = arith.constant 0 : index
    %c0_3 = arith.constant 0 : index
    %2 = vector.load %arg3[%c0_2, %c0_3] : memref<1x4xf32, #tpu.memory_space<vmem>>, vector<1x4xf32>
    %3 = vector.broadcast %2 : vector<1x4xf32> to vector<256x4xf32>
    %4 = arith.mulf %1, %3 : vector<256x4xf32>
    %c0_4 = arith.constant 0 : index
    %c0_5 = arith.constant 0 : index
    %5 = vector.load %arg4[%c0_4, %c0_5] : memref<1x4xf32, #tpu.memory_space<vmem>>, vector<1x4xf32>
    %6 = vector.broadcast %5 : vector<1x4xf32> to vector<256x4xf32>
    %7 = arith.addf %4, %6 : vector<256x4xf32>
    %cst = arith.constant 0.000000e+00 : f32
    %8 = vector.broadcast %cst : f32 to vector<256x4xf32>
    %9 = arith.maximumf %7, %8 : vector<256x4xf32>
    %10 = arith.truncf %9 : vector<256x4xf32> to vector<256x4xbf16>
    %c0_6 = arith.constant 0 : index
    %c0_7 = arith.constant 0 : index
    %11 = vector.load %arg5[%c0_6, %c0_7] : memref<4x8xbf16, #tpu.memory_space<vmem>>, vector<4x8xbf16>
    %cst_8 = arith.constant dense<0.000000e+00> : vector<256x8xf32>
    %12 = tpu.matmul %10, %11, %cst_8 {dimension_numbers = #tpu.dot_dimension_numbers<[1], [0], [0], [1], [0, 0, 1, 1], [], []>} : vector<256x4xbf16>, vector<4x8xbf16>, vector<256x8xf32> -> vector<256x8xf32>
    %c0_9 = arith.constant 0 : index
    %c0_10 = arith.constant 0 : index
    %c0_11 = arith.constant 0 : index
    %13 = vector.load %arg2[%c0_9, %c0_10, %c0_11] : memref<1x256x4xf32, #tpu.memory_space<vmem>>, vector<1x256x4xf32>
    %14 = vector.shape_cast %13 : vector<1x256x4xf32> to vector<256x4xf32>
    %c0_12 = arith.constant 0 : index
    %c0_13 = arith.constant 0 : index
    %15 = vector.load %arg6[%c0_12, %c0_13] : memref<1x4xf32, #tpu.memory_space<vmem>>, vector<1x4xf32>
    %16 = vector.broadcast %15 : vector<1x4xf32> to vector<256x4xf32>
    %17 = arith.mulf %14, %16 : vector<256x4xf32>
    %c0_14 = arith.constant 0 : index
    %c0_15 = arith.constant 0 : index
    %18 = vector.load %arg7[%c0_14, %c0_15] : memref<1x4xf32, #tpu.memory_space<vmem>>, vector<1x4xf32>
    %19 = vector.broadcast %18 : vector<1x4xf32> to vector<256x4xf32>
    %20 = arith.addf %17, %19 : vector<256x4xf32>
    %cst_16 = arith.constant 0.000000e+00 : f32
    %21 = vector.broadcast %cst_16 : f32 to vector<256x4xf32>
    %22 = arith.maximumf %20, %21 : vector<256x4xf32>
    %23 = arith.truncf %22 : vector<256x4xf32> to vector<256x4xbf16>
    %c0_17 = arith.constant 0 : index
    %c0_18 = arith.constant 0 : index
    %24 = vector.load %arg8[%c0_17, %c0_18] : memref<4x8xbf16, #tpu.memory_space<vmem>>, vector<4x8xbf16>
    %cst_19 = arith.constant dense<0.000000e+00> : vector<256x8xf32>
    %25 = tpu.matmul %23, %24, %cst_19 {dimension_numbers = #tpu.dot_dimension_numbers<[1], [0], [0], [1], [0, 0, 1, 1], [], []>} : vector<256x4xbf16>, vector<4x8xbf16>, vector<256x8xf32> -> vector<256x8xf32>
    %26 = arith.addf %12, %25 : vector<256x8xf32>
    %c0_20 = arith.constant 0 : index
    %c0_21 = arith.constant 0 : index
    %c0_22 = arith.constant 0 : index
    %27 = vector.load %arg9[%c0_20, %c0_21, %c0_22] : memref<1x256x8xf32, #tpu.memory_space<vmem>>, vector<1x256x8xf32>
    %28 = vector.shape_cast %27 : vector<1x256x8xf32> to vector<256x8xf32>
    %29 = vector.shape_cast %26 : vector<256x8xf32> to vector<1x256x8xf32>
    tpu.vector_store %arg9[%c0_20, %c0_21, %c0_22], %29 {strides = array<i32>} : memref<1x256x8xf32, #tpu.memory_space<vmem>>, vector<1x256x8xf32>,
    return
  }
  func.func @transform_0(%arg0: i32) -> (i32, i32, i32) {
    %c0_i32 = arith.constant 0 : i32
    %c0_i32_0 = arith.constant 0 : i32
    %c0_i32_1 = arith.constant 0 : i32
    return %arg0, %c0_i32, %c0_i32_0 : i32, i32, i32
  }
  func.func @transform_1(%arg0: i32) -> (i32, i32, i32) {
    %c0_i32 = arith.constant 0 : i32
    %c0_i32_0 = arith.constant 0 : i32
    %c0_i32_1 = arith.constant 0 : i32
    return %arg0, %c0_i32, %c0_i32_0 : i32, i32, i32
  }
  func.func @transform_2(%arg0: i32) -> (i32, i32) {
    %c0_i32 = arith.constant 0 : i32
    %c0_i32_0 = arith.constant 0 : i32
    %c0_i32_1 = arith.constant 0 : i32
    return %c0_i32, %c0_i32_0 : i32, i32
  }
  func.func @transform_3(%arg0: i32) -> (i32, i32) {
    %c0_i32 = arith.constant 0 : i32
    %c0_i32_0 = arith.constant 0 : i32
    %c0_i32_1 = arith.constant 0 : i32
    return %c0_i32, %c0_i32_0 : i32, i32
  }
  func.func @transform_4(%arg0: i32) -> (i32, i32) {
    %c0_i32 = arith.constant 0 : i32
    %c0_i32_0 = arith.constant 0 : i32
    %c0_i32_1 = arith.constant 0 : i32
    return %c0_i32, %c0_i32_0 : i32, i32
  }
  func.func @transform_5(%arg0: i32) -> (i32, i32) {
    %c0_i32 = arith.constant 0 : i32
    %c0_i32_0 = arith.constant 0 : i32
    %c0_i32_1 = arith.constant 0 : i32
    return %c0_i32, %c0_i32_0 : i32, i32
  }
  func.func @transform_6(%arg0: i32) -> (i32, i32) {
    %c0_i32 = arith.constant 0 : i32
    %c0_i32_0 = arith.constant 0 : i32
    %c0_i32_1 = arith.constant 0 : i32
    return %c0_i32, %c0_i32_0 : i32, i32
  }
  func.func @transform_7(%arg0: i32) -> (i32, i32) {
    %c0_i32 = arith.constant 0 : i32
    %c0_i32_0 = arith.constant 0 : i32
    %c0_i32_1 = arith.constant 0 : i32
    return %c0_i32, %c0_i32_0 : i32, i32
  }
  func.func @transform_8(%arg0: i32) -> (i32, i32, i32) {
    %c0_i32 = arith.constant 0 : i32
    %c0_i32_0 = arith.constant 0 : i32
    %c0_i32_1 = arith.constant 0 : i32
    return %arg0, %c0_i32, %c0_i32_0 : i32, i32, i32
  }
}

</mosaic_0001>

<llo_original>
// kernel: residual_block_preact_nhwc.4
$region0: #{residual_block_preact_nhwc.4}
  #allocation0 [shape = 'u32[]', space=smem, size = 0x4, offset = 0x4, fixed_abs, tag = 'smem constant byte address 0x4 - core index']
  #allocation1 [shape = 'u32[144,128]{1,0:T(1,128)}', space=vmem, size = 0x12000, scoped, tag = 'internal scratch']
  %s0 = inlined_call_operand.vmem [shape: f32[2,256,4], index: 0, kind: input, shape index: {}]
  %s1 = inlined_call_operand.vmem [shape: f32[2,8,4], index: 1, kind: output, shape index: {}]
  %s2 = sld [smem:[#allocation0]]
  $region37: #{residual_block_preact_nhwc.4} parent=0
    _
  %s4 = ssub.s32 1, %s2
  %s5 = scalar_select 0, %s4, %s2
  loop: start=0, step=1, limit=4
  $region2: #{residual_block_preact_nhwc.4} parent=0 // loop_pre_header
    _
  $region3: #{residual_block_preact_nhwc.4} parent=0 // loop_header
    %s7 = sphi 0, %s11
    %p8 = scmp.ge.s32.totalorder %s7, 4
    %s17 = sphi 0, %s19
    %s20 = sphi 0, %s17
    %s21 = sphi 0, %s20
    %s37 = sphi 0, %s21
    %s43 = sphi 0, %s45
    %s46 = sphi 0, %s43
    %s47 = sphi 0, %s46
    %s63 = sphi 0, %s47
  $region4: #{residual_block_preact_nhwc.4} parent=0 // loop_header_branch
    %10 = sbr.rel (%p8) target = $region8
  $region5: #{residual_block_preact_nhwc.4} parent=0 // loop_body
    %s12 = ssub.s32 %s7, 1
    %s13 = ssub.s32 %s7, 2
    %s14 = sadd.s32 %s7, 1
    %s15 = ssub.s32 %s7, %s14
    %p16 = scmp.eq.s32.totalorder %s15, 0
    %s18 = sadd.s32 %s17, 1
    %s19 = scalar_select %p16, %s17, %s18
    %p22 = pneg %p16
    %p23 = scmp.eq.s32.totalorder %s7, 1
    %p24 = por %p22, %p23
    %p25 = scmp.ne.s32.totalorder %s17, %s20
    %p26 = scmp.eq.s32.totalorder %s7, 0
    %p27 = por %p25, %p26
    %p28 = scmp.ne.s32.totalorder %s17, %s20
    %p29 = scmp.eq.s32.totalorder %s12, 1
    %p30 = por %p28, %p29
    %p31 = scmp.ne.s32.totalorder %s20, %s21
    %p32 = scmp.eq.s32.totalorder %s12, 0
    %p33 = por %p31, %p32
    %p34 = scmp.ne.s32.totalorder %s20, %s21
    %p35 = scmp.eq.s32.totalorder %s13, 1
    %p36 = por %p34, %p35
    %p38 = scmp.ne.s32.totalorder %s21, %s37
    %p39 = scmp.eq.s32.totalorder %s13, 0
    %p40 = por %p38, %p39
    %s41 = ssub.s32 %s7, %s14
    %p42 = scmp.eq.s32.totalorder %s41, 0
    %s44 = sadd.s32 %s43, 1
    %s45 = scalar_select %p42, %s43, %s44
    %p48 = pneg %p42
    %p49 = scmp.eq.s32.totalorder %s7, 1
    %p50 = por %p48, %p49
    %p51 = scmp.ne.s32.totalorder %s43, %s46
    %p52 = scmp.eq.s32.totalorder %s7, 0
    %p53 = por %p51, %p52
    %p54 = scmp.ne.s32.totalorder %s43, %s46
    %p55 = scmp.eq.s32.totalorder %s12, 1
    %p56 = por %p54, %p55
    %p57 = scmp.ne.s32.totalorder %s46, %s47
    %p58 = scmp.eq.s32.totalorder %s12, 0
    %p59 = por %p57, %p58
    %p60 = scmp.ne.s32.totalorder %s46, %s47
    %p61 = scmp.eq.s32.totalorder %s13, 1
    %p62 = por %p60, %p61
    %p64 = scmp.ne.s32.totalorder %s47, %s63
    %p65 = scmp.eq.s32.totalorder %s13, 0
    %p66 = por %p64, %p65
    %p67 = scmp.le.s32.totalorder 1, %s7
    %p68 = scmp.lt.s32.totalorder %s7, 3
    %p69 = pnand %p67, %p68
    %p70 = pneg %p69
    // Predicated region
    $region9: #{residual_block_preact_nhwc.4} parent=5 // pred_check
      _
    $region10: #{residual_block_preact_nhwc.4} parent=5 // pred_check_branch
      %72 = sbr.rel (%p69) target = $region12
    $region11: #{residual_block_preact_nhwc.4} parent=5 // pred_region
      %s73 = ssub.s32 %s7, 1
    $region12: #{residual_block_preact_nhwc.4} parent=5 // pred_fallthru
      _
    %p74 = scmp.lt.s32.totalorder %s7, 2
    // Predicated region
    $region13: #{residual_block_preact_nhwc.4} parent=5 // pred_check
      %p75 = pneg %p74
    $region14: #{residual_block_preact_nhwc.4} parent=5 // pred_check_branch
      %77 = sbr.rel (%p75) target = $region16
    $region15: #{residual_block_preact_nhwc.4} parent=5 // pred_region
      // Predicated region
      $region17: #{residual_block_preact_nhwc.4} parent=15 // pred_check
        %p78 = pneg %p27
      $region18: #{residual_block_preact_nhwc.4} parent=15 // pred_check_branch
        %80 = sbr.rel (%p78) target = $region20
      $region19: #{residual_block_preact_nhwc.4} parent=15 // pred_region
        %p81 = scmp.lt.s32.totalorder %s7, 1
        %s82 = scalar_select %p81, %s7, 1
        %s83 = smul.addr %s82, 32
        %s84 = smul.addr %s83, 8
        %s85 = scalar_lea.vmem %s0, %s84
      $region20: #{residual_block_preact_nhwc.4} parent=15 // pred_fallthru
        _
    $region16: #{residual_block_preact_nhwc.4} parent=5 // pred_fallthru
      _
    %p86 = scmp.le.s32.totalorder 1, %s7
    %p87 = scmp.lt.s32.totalorder %s7, 3
    %p88 = pnand %p86, %p87
    %p89 = pneg %p88
    // Predicated region
    $region21: #{residual_block_preact_nhwc.4} parent=5 // pred_check
      _
    $region22: #{residual_block_preact_nhwc.4} parent=5 // pred_check_branch
      %91 = sbr.rel (%p88) target = $region24
    $region23: #{residual_block_preact_nhwc.4} parent=5 // pred_region
      %s92 = ssub.s32 %s7, 1
      %p93 = scmp.lt.s32.totalorder %s12, 1
      %s94 = scalar_select %p93, %s12, 1
      %s95 = smul.addr %s94, 32
      %s96 = smul.addr %s95, 8
      %s97 = scalar_lea.vmem %s0, %s96
      %p98 = pneg %p33
      %p99 = pneg %p30
      %p100 = pneg %p59
      %p101 = pneg %p56
      %p102 = scmp.lt.s32.totalorder %s12, 1
      %s103 = scalar_select %p102, %s12, 1
      %s104 = smul.addr %s103, 8
      %s105 = scalar_lea.vmem %s1, %s104
      %p106 = scmp.lt.s32.totalorder %s12, 1
      %s107 = scalar_select %p106, %s12, 1
      %s108 = smul.addr %s107, 32
      %s109 = smul.addr %s108, 8
      %s110 = scalar_lea.vmem %s0, %s109
      %p111 = scmp.lt.s32.totalorder %s12, 1
      %s112 = scalar_select %p111, %s12, 1
      %s113 = smul.addr %s112, 8
      %s114 = scalar_lea.vmem %s1, %s113
      %v115 = vld [vmem:[%s110] sm:$0xff]
      %v116 = vld [vmem:[%s110 + $0x8] sm:$0xff]
      %v117 = vld [vmem:[%s110 + $0x10] sm:$0xff]
      %v118 = vld [vmem:[%s110 + $0x18] sm:$0xff]
      %v119 = vld [vmem:[%s110 + $0x20] sm:$0xff]
      %v120 = vld [vmem:[%s110 + $0x28] sm:$0xff]
      %v121 = vld [vmem:[%s110 + $0x30] sm:$0xff]
      %v122 = vld [vmem:[%s110 + $0x38] sm:$0xff]
      %v123 = vld [vmem:[%s110 + $0x40] sm:$0xff]
      %v124 = vld [vmem:[%s110 + $0x48] sm:$0xff]
      %v125 = vld [vmem:[%s110 + $0x50] sm:$0xff]
      %v126 = vld [vmem:[%s110 + $0x58] sm:$0xff]
      %v127 = vld [vmem:[%s110 + $0x60] sm:$0xff]
      %v128 = vld [vmem:[%s110 + $0x68] sm:$0xff]
      %v129 = vld [vmem:[%s110 + $0x70] sm:$0xff]
      %v130 = vld [vmem:[%s110 + $0x78] sm:$0xff]
      %v131 = vld [vmem:[%s110 + $0x80] sm:$0xff]
      %v132 = vld [vmem:[%s110 + $0x88] sm:$0xff]
      %v133 = vld [vmem:[%s110 + $0x90] sm:$0xff]
      %v134 = vld [vmem:[%s110 + $0x98] sm:$0xff]
      %v135 = vld [vmem:[%s110 + $0xa0] sm:$0xff]
      %v136 = vld [vmem:[%s110 + $0xa8] sm:$0xff]
      %v137 = vld [vmem:[%s110 + $0xb0] sm:$0xff]
      %v138 = vld [vmem:[%s110 + $0xb8] sm:$0xff]
      %v139 = vld [vmem:[%s110 + $0xc0] sm:$0xff]
      %v140 = vld [vmem:[%s110 + $0xc8] sm:$0xff]
      %v141 = vld [vmem:[%s110 + $0xd0] sm:$0xff]
      %v142 = vld [vmem:[%s110 + $0xd8] sm:$0xff]
      %v143 = vld [vmem:[%s110 + $0xe0] sm:$0xff]
      %v144 = vld [vmem:[%s110 + $0xe8] sm:$0xff]
      %v145 = vld [vmem:[%s110 + $0xf0] sm:$0xff]
      %v146 = vld [vmem:[%s110 + $0xf8] sm:$0xff]
      %vm147 = vcmask 31744
      %v148 = vsel %vm147, %v115, 0.0
      %v149 = vsel %vm147, %v116, 0.0
      %v150 = vadd.f32 %v148, %v149
      %v151 = vsel %vm147, %v117, 0.0
      %v152 = vadd.f32 %v150, %v151
      %v153 = vsel %vm147, %v118, 0.0
      %v154 = vadd.f32 %v152, %v153
      %v155 = vsel %vm147, %v119, 0.0
      %v156 = vadd.f32 %v154, %v155
      %v157 = vsel %vm147, %v120, 0.0
      %v158 = vadd.f32 %v156, %v157
      %v159 = vsel %vm147, %v121, 0.0
      %v160 = vadd.f32 %v158, %v159
      %v161 = vsel %vm147, %v122, 0.0
      %v162 = vadd.f32 %v160, %v161
      %v163 = vsel %vm147, %v123, 0.0
      %v164 = vadd.f32 %v162, %v163
      %v165 = vsel %vm147, %v124, 0.0
      %v166 = vadd.f32 %v164, %v165
      %v167 = vsel %vm147, %v125, 0.0
      %v168 = vadd.f32 %v166, %v167
      %v169 = vsel %vm147, %v126, 0.0
      %v170 = vadd.f32 %v168, %v169
      %v171 = vsel %vm147, %v127, 0.0
      %v172 = vadd.f32 %v170, %v171
      %v173 = vsel %vm147, %v128, 0.0
      %v174 = vadd.f32 %v172, %v173
      %v175 = vsel %vm147, %v129, 0.0
      %v176 = vadd.f32 %v174, %v175
      %v177 = vsel %vm147, %v130, 0.0
      %v178 = vadd.f32 %v176, %v177
      %v179 = vsel %vm147, %v131, 0.0
      %v180 = vadd.f32 %v178, %v179
      %v181 = vsel %vm147, %v132, 0.0
      %v182 = vadd.f32 %v180, %v181
      %v183 = vsel %vm147, %v133, 0.0
      %v184 = vadd.f32 %v182, %v183
      %v185 = vsel %vm147, %v134, 0.0
      %v186 = vadd.f32 %v184, %v185
      %v187 = vsel %vm147, %v135, 0.0
      %v188 = vadd.f32 %v186, %v187
      %v189 = vsel %vm147, %v136, 0.0
      %v190 = vadd.f32 %v188, %v189
      %v191 = vsel %vm147, %v137, 0.0
      %v192 = vadd.f32 %v190, %v191
      %v193 = vsel %vm147, %v138, 0.0
      %v194 = vadd.f32 %v192, %v193
      %v195 = vsel %vm147, %v139, 0.0
      %v196 = vadd.f32 %v194, %v195
      %v197 = vsel %vm147, %v140, 0.0
      %v198 = vadd.f32 %v196, %v197
      %v199 = vsel %vm147, %v141, 0.0
      %v200 = vadd.f32 %v198, %v199
      %v201 = vsel %vm147, %v142, 0.0
      %v202 = vadd.f32 %v200, %v201
      %v203 = vsel %vm147, %v143, 0.0
      %v204 = vadd.f32 %v202, %v203
      %v205 = vsel %vm147, %v144, 0.0
      %v206 = vadd.f32 %v204, %v205
      %v207 = vsel %vm147, %v145, 0.0
      %v208 = vadd.f32 %v206, %v207
      %v209 = vsel %vm147, %v146, 0.0
      %v210 = vadd.f32 %v208, %v209
      %v211 = vrot.slane %v210, 4
      %v212 = vadd.f32 %v210, %v211
      %v213 = vrot.slane %v212, 2
      %v214 = vadd.f32 %v212, %v213
      %v215 = vrot.slane %v214, 1
      %v216 = vadd.f32 %v214, %v215
      %v217 = vmul.f32 %v216, 0.00390625
      %v218 = vsub.f32 %v115, %v217
      %v219 = vsub.f32 %v116, %v217
      %v220 = vsub.f32 %v117, %v217
      %v221 = vsub.f32 %v118, %v217
      %v222 = vsub.f32 %v119, %v217
      %v223 = vsub.f32 %v120, %v217
      %v224 = vsub.f32 %v121, %v217
      %v225 = vsub.f32 %v122, %v217
      %v226 = vsub.f32 %v123, %v217
      %v227 = vsub.f32 %v124, %v217
      %v228 = vsub.f32 %v125, %v217
      %v229 = vsub.f32 %v126, %v217
      %v230 = vsub.f32 %v127, %v217
      %v231 = vsub.f32 %v128, %v217
      %v232 = vsub.f32 %v129, %v217
      %v233 = vsub.f32 %v130, %v217
      %v234 = vsub.f32 %v131, %v217
      %v235 = vsub.f32 %v132, %v217
      %v236 = vsub.f32 %v133, %v217
      %v237 = vsub.f32 %v134, %v217
      %v238 = vsub.f32 %v135, %v217
      %v239 = vsub.f32 %v136, %v217
      %v240 = vsub.f32 %v137, %v217
      %v241 = vsub.f32 %v138, %v217
      %v242 = vsub.f32 %v139, %v217
      %v243 = vsub.f32 %v140, %v217
      %v244 = vsub.f32 %v141, %v217
      %v245 = vsub.f32 %v142, %v217
      %v246 = vsub.f32 %v143, %v217
      %v247 = vsub.f32 %v144, %v217
      %v248 = vsub.f32 %v145, %v217
      %v249 = vsub.f32 %v146, %v217
      %v250 = vmul.f32 %v218, %v218
      %v251 = vmul.f32 %v219, %v219
      %v252 = vmul.f32 %v220, %v220
      %v253 = vmul.f32 %v221, %v221
      %v254 = vmul.f32 %v222, %v222
      %v255 = vmul.f32 %v223, %v223
      %v256 = vmul.f32 %v224, %v224
      %v257 = vmul.f32 %v225, %v225
      %v258 = vmul.f32 %v226, %v226
      %v259 = vmul.f32 %v227, %v227
      %v260 = vmul.f32 %v228, %v228
      %v261 = vmul.f32 %v229, %v229
      %v262 = vmul.f32 %v230, %v230
      %v263 = vmul.f32 %v231, %v231
      %v264 = vmul.f32 %v232, %v232
      %v265 = vmul.f32 %v233, %v233
      %v266 = vmul.f32 %v234, %v234
      %v267 = vmul.f32 %v235, %v235
      %v268 = vmul.f32 %v236, %v236
      %v269 = vmul.f32 %v237, %v237
      %v270 = vmul.f32 %v238, %v238
      %v271 = vmul.f32 %v239, %v239
      %v272 = vmul.f32 %v240, %v240
      %v273 = vmul.f32 %v241, %v241
      %v274 = vmul.f32 %v242, %v242
      %v275 = vmul.f32 %v243, %v243
      %v276 = vmul.f32 %v244, %v244
      %v277 = vmul.f32 %v245, %v245
      %v278 = vmul.f32 %v246, %v246
      %v279 = vmul.f32 %v247, %v247
      %v280 = vmul.f32 %v248, %v248
      %v281 = vmul.f32 %v249, %v249
      %v282 = vsel %vm147, %v250, 0.0
      %v283 = vsel %vm147, %v251, 0.0
      %v284 = vadd.f32 %v282, %v283
      %v285 = vsel %vm147, %v252, 0.0
      %v286 = vadd.f32 %v284, %v285
      %v287 = vsel %vm147, %v253, 0.0
      %v288 = vadd.f32 %v286, %v287
      %v289 = vsel %vm147, %v254, 0.0
      %v290 = vadd.f32 %v288, %v289
      %v291 = vsel %vm147, %v255, 0.0
      %v292 = vadd.f32 %v290, %v291
      %v293 = vsel %vm147, %v256, 0.0
      %v294 = vadd.f32 %v292, %v293
      %v295 = vsel %vm147, %v257, 0.0
      %v296 = vadd.f32 %v294, %v295
      %v297 = vsel %vm147, %v258, 0.0
      %v298 = vadd.f32 %v296, %v297
      %v299 = vsel %vm147, %v259, 0.0
      %v300 = vadd.f32 %v298, %v299
      %v301 = vsel %vm147, %v260, 0.0
      %v302 = vadd.f32 %v300, %v301
      %v303 = vsel %vm147, %v261, 0.0
      %v304 = vadd.f32 %v302, %v303
      %v305 = vsel %vm147, %v262, 0.0
      %v306 = vadd.f32 %v304, %v305
      %v307 = vsel %vm147, %v263, 0.0
      %v308 = vadd.f32 %v306, %v307
      %v309 = vsel %vm147, %v264, 0.0
      %v310 = vadd.f32 %v308, %v309
      %v311 = vsel %vm147, %v265, 0.0
      %v312 = vadd.f32 %v310, %v311
      %v313 = vsel %vm147, %v266, 0.0
      %v314 = vadd.f32 %v312, %v313
      %v315 = vsel %vm147, %v267, 0.0
      %v316 = vadd.f32 %v314, %v315
      %v317 = vsel %vm147, %v268, 0.0
      %v318 = vadd.f32 %v316, %v317
      %v319 = vsel %vm147, %v269, 0.0
      %v320 = vadd.f32 %v318, %v319
      %v321 = vsel %vm147, %v270, 0.0
      %v322 = vadd.f32 %v320, %v321
      %v323 = vsel %vm147, %v271, 0.0
      %v324 = vadd.f32 %v322, %v323
      %v325 = vsel %vm147, %v272, 0.0
      %v326 = vadd.f32 %v324, %v325
      %v327 = vsel %vm147, %v273, 0.0
      %v328 = vadd.f32 %v326, %v327
      %v329 = vsel %vm147, %v274, 0.0
      %v330 = vadd.f32 %v328, %v329
      %v331 = vsel %vm147, %v275, 0.0
      %v332 = vadd.f32 %v330, %v331
      %v333 = vsel %vm147, %v276, 0.0
      %v334 = vadd.f32 %v332, %v333
      %v335 = vsel %vm147, %v277, 0.0
      %v336 = vadd.f32 %v334, %v335
      %v337 = vsel %vm147, %v278, 0.0
      %v338 = vadd.f32 %v336, %v337
      %v339 = vsel %vm147, %v279, 0.0
      %v340 = vadd.f32 %v338, %v339
      %v341 = vsel %vm147, %v280, 0.0
      %v342 = vadd.f32 %v340, %v341
      %v343 = vsel %vm147, %v281, 0.0
      %v344 = vadd.f32 %v342, %v343
      %v345 = vrot.slane %v344, 4
      %v346 = vadd.f32 %v344, %v345
      %v347 = vrot.slane %v346, 2
      %v348 = vadd.f32 %v346, %v347
      %v349 = vrot.slane %v348, 1
      %v350 = vadd.f32 %v348, %v349
      %vm351 = vcmask 1040384
      %v352 = vsel %vm351, %v217, %v350
      %vm353 = vcmask 1041408
      %v354 = vsel %vm353, %v352, 0.0
      %355 = vst.msk [vmem:[%s114] sm:$0xff] %vm147, %v354
      %p356 = scmp.lt.s32.totalorder %s12, 1
      %s357 = scalar_select %p356, %s12, 1
      %s358 = smul.addr %s357, 8
      %s359 = scalar_lea.vmem %s1, %s358
      // Predicated region
      $region25: #{residual_block_preact_nhwc.4} parent=23 // pred_check
        %p360 = pneg %p56
      $region26: #{residual_block_preact_nhwc.4} parent=23 // pred_check_branch
        %362 = sbr.rel (%p360) target = $region28
      $region27: #{residual_block_preact_nhwc.4} parent=23 // pred_region
        _
      $region28: #{residual_block_preact_nhwc.4} parent=23 // pred_fallthru
        _
    $region24: #{residual_block_preact_nhwc.4} parent=5 // pred_fallthru
      _
    %p363 = scmp.le.s32.totalorder 2, %s7
    // Predicated region
    $region29: #{residual_block_preact_nhwc.4} parent=5 // pred_check
      %p364 = pneg %p363
    $region30: #{residual_block_preact_nhwc.4} parent=5 // pred_check_branch
      %366 = sbr.rel (%p364) target = $region32
    $region31: #{residual_block_preact_nhwc.4} parent=5 // pred_region
      %s367 = ssub.s32 %s7, 2
      // Predicated region
      $region33: #{residual_block_preact_nhwc.4} parent=31 // pred_check
        %p368 = pneg %p62
      $region34: #{residual_block_preact_nhwc.4} parent=31 // pred_check_branch
        %370 = sbr.rel (%p368) target = $region36
      $region35: #{residual_block_preact_nhwc.4} parent=31 // pred_region
        %p371 = scmp.lt.s32.totalorder %s13, 1
        %s372 = scalar_select %p371, %s13, 1
        %s373 = smul.addr %s372, 8
        %s374 = scalar_lea.vmem %s1, %s373
      $region36: #{residual_block_preact_nhwc.4} parent=31 // pred_fallthru
        _
    $region32: #{residual_block_preact_nhwc.4} parent=5 // pred_fallthru
      _
  $region6: #{residual_block_preact_nhwc.4} parent=0 // loop_footer
    %s11 = sadd.s32 1, %s7
  $region7: #{residual_block_preact_nhwc.4} parent=0 // loop_footer_branch
    %6 = sbr.rel target = $region3
  $region8: #{residual_block_preact_nhwc.4} parent=0 // loop_exit
    _

// kernel: residual_block_preact_nhwc.5
$region0: #{residual_block_preact_nhwc.5}
  #allocation0 [shape = 'u32[]', space=smem, size = 0x4, offset = 0x4, fixed_abs, tag = 'smem constant byte address 0x4 - core index']
  #allocation1 [shape = 'u32[144,128]{1,0:T(1,128)}', space=vmem, size = 0x12000, scoped, tag = 'internal scratch']
  %s0 = inlined_call_operand.vmem [shape: f32[2,256,4], index: 0, kind: input, shape index: {}]
  %s1 = inlined_call_operand.vmem [shape: f32[1,4], index: 1, kind: input, shape index: {}]
  %s2 = inlined_call_operand.vmem [shape: f32[1,4], index: 2, kind: input, shape index: {}]
  %s3 = inlined_call_operand.vmem [shape: bf16[4,4], index: 3, kind: input, shape index: {}]
  %s4 = inlined_call_operand.vmem [shape: f32[2,256,4], index: 4, kind: output, shape index: {0}]
  %s5 = inlined_call_operand.vmem [shape: f32[2,8,4], index: 5, kind: output, shape index: {1}]
  %6 = xla_tuple %s4, %s5
  %s7 = sld [smem:[#allocation0]]
  $region57: #{residual_block_preact_nhwc.5} parent=0
    _
  %s9 = ssub.s32 1, %s7
  %s10 = scalar_select 0, %s9, %s7
  loop: start=0, step=1, limit=4
  $region2: #{residual_block_preact_nhwc.5} parent=0 // loop_pre_header
    _
  $region3: #{residual_block_preact_nhwc.5} parent=0 // loop_header
    %s12 = sphi 0, %s16
    %p13 = scmp.ge.s32.totalorder %s12, 4
    %s22 = sphi 0, %s24
    %s25 = sphi 0, %s22
    %s26 = sphi 0, %s25
    %s42 = sphi 0, %s26
    %s46 = sphi 0, %s46
    %s48 = sphi 0, %s46
    %s49 = sphi 0, %s48
    %s63 = sphi 0, %s49
    %s67 = sphi 0, %s67
    %s69 = sphi 0, %s67
    %s70 = sphi 0, %s69
    %s84 = sphi 0, %s70
    %s88 = sphi 0, %s88
    %s90 = sphi 0, %s88
    %s91 = sphi 0, %s90
    %s105 = sphi 0, %s91
    %s111 = sphi 0, %s113
    %s114 = sphi 0, %s111
    %s115 = sphi 0, %s114
    %s131 = sphi 0, %s115
    %s137 = sphi 0, %s139
    %s140 = sphi 0, %s137
    %s141 = sphi 0, %s140
    %s157 = sphi 0, %s141
  $region4: #{residual_block_preact_nhwc.5} parent=0 // loop_header_branch
    %15 = sbr.rel (%p13) target = $region8
  $region5: #{residual_block_preact_nhwc.5} parent=0 // loop_body
    %s17 = ssub.s32 %s12, 1
    %s18 = ssub.s32 %s12, 2
    %s19 = sadd.s32 %s12, 1
    %s20 = ssub.s32 %s12, %s19
    %p21 = scmp.eq.s32.totalorder %s20, 0
    %s23 = sadd.s32 %s22, 1
    %s24 = scalar_select %p21, %s22, %s23
    %p27 = pneg %p21
    %p28 = scmp.eq.s32.totalorder %s12, 1
    %p29 = por %p27, %p28
    %p30 = scmp.ne.s32.totalorder %s22, %s25
    %p31 = scmp.eq.s32.totalorder %s12, 0
    %p32 = por %p30, %p31
    %p33 = scmp.ne.s32.totalorder %s22, %s25
    %p34 = scmp.eq.s32.totalorder %s17, 1
    %p35 = por %p33, %p34
    %p36 = scmp.ne.s32.totalorder %s25, %s26
    %p37 = scmp.eq.s32.totalorder %s17, 0
    %p38 = por %p36, %p37
    %p39 = scmp.ne.s32.totalorder %s25, %s26
    %p40 = scmp.eq.s32.totalorder %s18, 1
    %p41 = por %p39, %p40
    %p43 = scmp.ne.s32.totalorder %s26, %s42
    %p44 = scmp.eq.s32.totalorder %s18, 0
    %p45 = por %p43, %p44
    %s47 = sadd.s32 %s46, 1
    %p50 = scmp.eq.s32.totalorder %s12, 1
    %p51 = scmp.ne.s32.totalorder %s46, %s48
    %p52 = scmp.eq.s32.totalorder %s12, 0
    %p53 = por %p51, %p52
    %p54 = scmp.ne.s32.totalorder %s46, %s48
    %p55 = scmp.eq.s32.totalorder %s17, 1
    %p56 = por %p54, %p55
    %p57 = scmp.ne.s32.totalorder %s48, %s49
    %p58 = scmp.eq.s32.totalorder %s17, 0
    %p59 = por %p57, %p58
    %p60 = scmp.ne.s32.totalorder %s48, %s49
    %p61 = scmp.eq.s32.totalorder %s18, 1
    %p62 = por %p60, %p61
    %p64 = scmp.ne.s32.totalorder %s49, %s63
    %p65 = scmp.eq.s32.totalorder %s18, 0
    %p66 = por %p64, %p65
    %s68 = sadd.s32 %s67, 1
    %p71 = scmp.eq.s32.totalorder %s12, 1
    %p72 = scmp.ne.s32.totalorder %s67, %s69
    %p73 = scmp.eq.s32.totalorder %s12, 0
    %p74 = por %p72, %p73
    %p75 = scmp.ne.s32.totalorder %s67, %s69
    %p76 = scmp.eq.s32.totalorder %s17, 1
    %p77 = por %p75, %p76
    %p78 = scmp.ne.s32.totalorder %s69, %s70
    %p79 = scmp.eq.s32.totalorder %s17, 0
    %p80 = por %p78, %p79
    %p81 = scmp.ne.s32.totalorder %s69, %s70
    %p82 = scmp.eq.s32.totalorder %s18, 1
    %p83 = por %p81, %p82
    %p85 = scmp.ne.s32.totalorder %s70, %s84
    %p86 = scmp.eq.s32.totalorder %s18, 0
    %p87 = por %p85, %p86
    %s89 = sadd.s32 %s88, 1
    %p92 = scmp.eq.s32.totalorder %s12, 1
    %p93 = scmp.ne.s32.totalorder %s88, %s90
    %p94 = scmp.eq.s32.totalorder %s12, 0
    %p95 = por %p93, %p94
    %p96 = scmp.ne.s32.totalorder %s88, %s90
    %p97 = scmp.eq.s32.totalorder %s17, 1
    %p98 = por %p96, %p97
    %p99 = scmp.ne.s32.totalorder %s90, %s91
    %p100 = scmp.eq.s32.totalorder %s17, 0
    %p101 = por %p99, %p100
    %p102 = scmp.ne.s32.totalorder %s90, %s91
    %p103 = scmp.eq.s32.totalorder %s18, 1
    %p104 = por %p102, %p103
    %p106 = scmp.ne.s32.totalorder %s91, %s105
    %p107 = scmp.eq.s32.totalorder %s18, 0
    %p108 = por %p106, %p107
    %s109 = ssub.s32 %s12, %s19
    %p110 = scmp.eq.s32.totalorder %s109, 0
    %s112 = sadd.s32 %s111, 1
    %s113 = scalar_select %p110, %s111, %s112
    %p116 = pneg %p110
    %p117 = scmp.eq.s32.totalorder %s12, 1
    %p118 = por %p116, %p117
    %p119 = scmp.ne.s32.totalorder %s111, %s114
    %p120 = scmp.eq.s32.totalorder %s12, 0
    %p121 = por %p119, %p120
    %p122 = scmp.ne.s32.totalorder %s111, %s114
    %p123 = scmp.eq.s32.totalorder %s17, 1
    %p124 = por %p122, %p123
    %p125 = scmp.ne.s32.totalorder %s114, %s115
    %p126 = scmp.eq.s32.totalorder %s17, 0
    %p127 = por %p125, %p126
    %p128 = scmp.ne.s32.totalorder %s114, %s115
    %p129 = scmp.eq.s32.totalorder %s18, 1
    %p130 = por %p128, %p129
    %p132 = scmp.ne.s32.totalorder %s115, %s131
    %p133 = scmp.eq.s32.totalorder %s18, 0
    %p134 = por %p132, %p133
    %s135 = ssub.s32 %s12, %s19
    %p136 = scmp.eq.s32.totalorder %s135, 0
    %s138 = sadd.s32 %s137, 1
    %s139 = scalar_select %p136, %s137, %s138
    %p142 = pneg %p136
    %p143 = scmp.eq.s32.totalorder %s12, 1
    %p144 = por %p142, %p143
    %p145 = scmp.ne.s32.totalorder %s137, %s140
    %p146 = scmp.eq.s32.totalorder %s12, 0
    %p147 = por %p145, %p146
    %p148 = scmp.ne.s32.totalorder %s137, %s140
    %p149 = scmp.eq.s32.totalorder %s17, 1
    %p150 = por %p148, %p149
    %p151 = scmp.ne.s32.totalorder %s140, %s141
    %p152 = scmp.eq.s32.totalorder %s17, 0
    %p153 = por %p151, %p152
    %p154 = scmp.ne.s32.totalorder %s140, %s141
    %p155 = scmp.eq.s32.totalorder %s18, 1
    %p156 = por %p154, %p155
    %p158 = scmp.ne.s32.totalorder %s141, %s157
    %p159 = scmp.eq.s32.totalorder %s18, 0
    %p160 = por %p158, %p159
    %p161 = scmp.le.s32.totalorder 1, %s12
    %p162 = scmp.lt.s32.totalorder %s12, 3
    %p163 = pnand %p161, %p162
    %p164 = pneg %p163
    // Predicated region
    $region9: #{residual_block_preact_nhwc.5} parent=5 // pred_check
      _
    $region10: #{residual_block_preact_nhwc.5} parent=5 // pred_check_branch
      %166 = sbr.rel (%p163) target = $region12
    $region11: #{residual_block_preact_nhwc.5} parent=5 // pred_region
      %s167 = ssub.s32 %s12, 1
      // Predicated region
      $region13: #{residual_block_preact_nhwc.5} parent=11 // pred_check
        %p168 = pneg %p59
      $region14: #{residual_block_preact_nhwc.5} parent=11 // pred_check_branch
        %170 = sbr.rel (%p168) target = $region16
      $region15: #{residual_block_preact_nhwc.5} parent=11 // pred_region
        _
      $region16: #{residual_block_preact_nhwc.5} parent=11 // pred_fallthru
        _
      // Predicated region
      $region17: #{residual_block_preact_nhwc.5} parent=11 // pred_check
        %p171 = pneg %p80
      $region18: #{residual_block_preact_nhwc.5} parent=11 // pred_check_branch
        %173 = sbr.rel (%p171) target = $region20
      $region19: #{residual_block_preact_nhwc.5} parent=11 // pred_region
        _
      $region20: #{residual_block_preact_nhwc.5} parent=11 // pred_fallthru
        _
      // Predicated region
      $region21: #{residual_block_preact_nhwc.5} parent=11 // pred_check
        %p174 = pneg %p101
      $region22: #{residual_block_preact_nhwc.5} parent=11 // pred_check_branch
        %176 = sbr.rel (%p174) target = $region24
      $region23: #{residual_block_preact_nhwc.5} parent=11 // pred_region
        _
      $region24: #{residual_block_preact_nhwc.5} parent=11 // pred_fallthru
        _
    $region12: #{residual_block_preact_nhwc.5} parent=5 // pred_fallthru
      _
    %p177 = scmp.lt.s32.totalorder %s12, 2
    // Predicated region
    $region25: #{residual_block_preact_nhwc.5} parent=5 // pred_check
      %p178 = pneg %p177
    $region26: #{residual_block_preact_nhwc.5} parent=5 // pred_check_branch
      %180 = sbr.rel (%p178) target = $region28
    $region27: #{residual_block_preact_nhwc.5} parent=5 // pred_region
      // Predicated region
      $region29: #{residual_block_preact_nhwc.5} parent=27 // pred_check
        %p181 = pneg %p32
      $region30: #{residual_block_preact_nhwc.5} parent=27 // pred_check_branch
        %183 = sbr.rel (%p181) target = $region32
      $region31: #{residual_block_preact_nhwc.5} parent=27 // pred_region
        %p184 = scmp.lt.s32.totalorder %s12, 1
        %s185 = scalar_select %p184, %s12, 1
        %s186 = smul.addr %s185, 32
        %s187 = smul.addr %s186, 8
        %s188 = scalar_lea.vmem %s0, %s187
      $region32: #{residual_block_preact_nhwc.5} parent=27 // pred_fallthru
        _
    $region28: #{residual_block_preact_nhwc.5} parent=5 // pred_fallthru
      _
    %p189 = scmp.le.s32.totalorder 1, %s12
    %p190 = scmp.lt.s32.totalorder %s12, 3
    %p191 = pnand %p189, %p190
    %p192 = pneg %p191
    // Predicated region
    $region33: #{residual_block_preact_nhwc.5} parent=5 // pred_check
      _
    $region34: #{residual_block_preact_nhwc.5} parent=5 // pred_check_branch
      %194 = sbr.rel (%p191) target = $region36
    $region35: #{residual_block_preact_nhwc.5} parent=5 // pred_region
      %s195 = ssub.s32 %s12, 1
      %p196 = scmp.lt.s32.totalorder %s17, 1
      %s197 = scalar_select %p196, %s17, 1
      %s198 = smul.addr %s197, 32
      %s199 = smul.addr %s198, 8
      %s200 = scalar_lea.vmem %s0, %s199
      %p201 = pneg %p38
      %p202 = pneg %p35
      %p203 = pneg %p59
      %p204 = pneg %p56
      %p205 = pneg %p80
      %p206 = pneg %p77
      %p207 = pneg %p101
      %p208 = pneg %p98
      %p209 = pneg %p127
      %p210 = pneg %p124
      %p211 = scmp.lt.s32.totalorder %s17, 1
      %s212 = scalar_select %p211, %s17, 1
      %s213 = smul.addr %s212, 32
      %s214 = smul.addr %s213, 8
      %s215 = scalar_lea.vmem %s4, %s214
      %p216 = pneg %p153
      %p217 = pneg %p150
      %p218 = scmp.lt.s32.totalorder %s17, 1
      %s219 = scalar_select %p218, %s17, 1
      %s220 = smul.addr %s219, 8
      %s221 = scalar_lea.vmem %s5, %s220
      %p222 = scmp.lt.s32.totalorder %s17, 1
      %s223 = scalar_select %p222, %s17, 1
      %s224 = smul.addr %s223, 32
      %s225 = smul.addr %s224, 8
      %s226 = scalar_lea.vmem %s0, %s225
      %p227 = scmp.lt.s32.totalorder %s17, 1
      %s228 = scalar_select %p227, %s17, 1
      %s229 = smul.addr %s228, 32
      %s230 = smul.addr %s229, 8
      %s231 = scalar_lea.vmem %s4, %s230
      %p232 = scmp.lt.s32.totalorder %s17, 1
      %s233 = scalar_select %p232, %s17, 1
      %s234 = smul.addr %s233, 8
      %s235 = scalar_lea.vmem %s5, %s234
      %v237 = vld [vmem:[%s226] sm:$0xff]
      %v238 = vld [vmem:[%s226 + $0x8] sm:$0xff]
      %v239 = vld [vmem:[%s226 + $0x10] sm:$0xff]
      %v240 = vld [vmem:[%s226 + $0x18] sm:$0xff]
      %v241 = vld [vmem:[%s226 + $0x20] sm:$0xff]
      %v242 = vld [vmem:[%s226 + $0x28] sm:$0xff]
      %v243 = vld [vmem:[%s226 + $0x30] sm:$0xff]
      %v244 = vld [vmem:[%s226 + $0x38] sm:$0xff]
      %v245 = vld [vmem:[%s226 + $0x40] sm:$0xff]
      %v246 = vld [vmem:[%s226 + $0x48] sm:$0xff]
      %v247 = vld [vmem:[%s226 + $0x50] sm:$0xff]
      %v248 = vld [vmem:[%s226 + $0x58] sm:$0xff]
      %v249 = vld [vmem:[%s226 + $0x60] sm:$0xff]
      %v250 = vld [vmem:[%s226 + $0x68] sm:$0xff]
      %v251 = vld [vmem:[%s226 + $0x70] sm:$0xff]
      %v252 = vld [vmem:[%s226 + $0x78] sm:$0xff]
      %v253 = vld [vmem:[%s226 + $0x80] sm:$0xff]
      %v254 = vld [vmem:[%s226 + $0x88] sm:$0xff]
      %v255 = vld [vmem:[%s226 + $0x90] sm:$0xff]
      %v256 = vld [vmem:[%s226 + $0x98] sm:$0xff]
      %v257 = vld [vmem:[%s226 + $0xa0] sm:$0xff]
      %v258 = vld [vmem:[%s226 + $0xa8] sm:$0xff]
      %v259 = vld [vmem:[%s226 + $0xb0] sm:$0xff]
      %v260 = vld [vmem:[%s226 + $0xb8] sm:$0xff]
      %v261 = vld [vmem:[%s226 + $0xc0] sm:$0xff]
      %v262 = vld [vmem:[%s226 + $0xc8] sm:$0xff]
      %v263 = vld [vmem:[%s226 + $0xd0] sm:$0xff]
      %v264 = vld [vmem:[%s226 + $0xd8] sm:$0xff]
      %v265 = vld [vmem:[%s226 + $0xe0] sm:$0xff]
      %v266 = vld [vmem:[%s226 + $0xe8] sm:$0xff]
      %v267 = vld [vmem:[%s226 + $0xf0] sm:$0xff]
      %v268 = vld [vmem:[%s226 + $0xf8] sm:$0xff]
      %v269 = vld [vmem:[%s1] sm:$0x1]
      %v271 = vlaneseq
      %v272 = vshrl.u32 %v271, 7
      %v273 = vsub.s32 0, %v272
      %v274 = vrot.slane %v269, %v273
      %v276 = vmul.f32 %v237, %v274
      %v277 = vmul.f32 %v238, %v274
      %v278 = vmul.f32 %v239, %v274
      %v279 = vmul.f32 %v240, %v274
      %v280 = vmul.f32 %v241, %v274
      %v281 = vmul.f32 %v242, %v274
      %v282 = vmul.f32 %v243, %v274
      %v283 = vmul.f32 %v244, %v274
      %v284 = vmul.f32 %v245, %v274
      %v285 = vmul.f32 %v246, %v274
      %v286 = vmul.f32 %v247, %v274
      %v287 = vmul.f32 %v248, %v274
      %v288 = vmul.f32 %v249, %v274
      %v289 = vmul.f32 %v250, %v274
      %v290 = vmul.f32 %v251, %v274
      %v291 = vmul.f32 %v252, %v274
      %v292 = vmul.f32 %v253, %v274
      %v293 = vmul.f32 %v254, %v274
      %v294 = vmul.f32 %v255, %v274
      %v295 = vmul.f32 %v256, %v274
      %v296 = vmul.f32 %v257, %v274
      %v297 = vmul.f32 %v258, %v274
      %v298 = vmul.f32 %v259, %v274
      %v299 = vmul.f32 %v260, %v274
      %v300 = vmul.f32 %v261, %v274
      %v301 = vmul.f32 %v262, %v274
      %v302 = vmul.f32 %v263, %v274
      %v303 = vmul.f32 %v264, %v274
      %v304 = vmul.f32 %v265, %v274
      %v305 = vmul.f32 %v266, %v274
      %v306 = vmul.f32 %v267, %v274
      %v307 = vmul.f32 %v268, %v274
      %v308 = vld [vmem:[%s2] sm:$0x1]
      %v310 = vlaneseq
      %v311 = vshrl.u32 %v310, 7
      %v312 = vsub.s32 0, %v311
      %v313 = vrot.slane %v308, %v312
      %v315 = vadd.f32 %v276, %v313
      %v316 = vadd.f32 %v277, %v313
      %v317 = vadd.f32 %v278, %v313
      %v318 = vadd.f32 %v279, %v313
      %v319 = vadd.f32 %v280, %v313
      %v320 = vadd.f32 %v281, %v313
      %v321 = vadd.f32 %v282, %v313
      %v322 = vadd.f32 %v283, %v313
      %v323 = vadd.f32 %v284, %v313
      %v324 = vadd.f32 %v285, %v313
      %v325 = vadd.f32 %v286, %v313
      %v326 = vadd.f32 %v287, %v313
      %v327 = vadd.f32 %v288, %v313
      %v328 = vadd.f32 %v289, %v313
      %v329 = vadd.f32 %v290, %v313
      %v330 = vadd.f32 %v291, %v313
      %v331 = vadd.f32 %v292, %v313
      %v332 = vadd.f32 %v293, %v313
      %v333 = vadd.f32 %v294, %v313
      %v334 = vadd.f32 %v295, %v313
      %v335 = vadd.f32 %v296, %v313
      %v336 = vadd.f32 %v297, %v313
      %v337 = vadd.f32 %v298, %v313
      %v338 = vadd.f32 %v299, %v313
      %v339 = vadd.f32 %v300, %v313
      %v340 = vadd.f32 %v301, %v313
      %v341 = vadd.f32 %v302, %v313
      %v342 = vadd.f32 %v303, %v313
      %v343 = vadd.f32 %v304, %v313
      %v344 = vadd.f32 %v305, %v313
      %v345 = vadd.f32 %v306, %v313
      %v346 = vadd.f32 %v307, %v313
      %v347 = vmax.f32 %v315, 0.0
      %v348 = vmax.f32 %v316, 0.0
      %v349 = vmax.f32 %v317, 0.0
      %v350 = vmax.f32 %v318, 0.0
      %v351 = vmax.f32 %v319, 0.0
      %v352 = vmax.f32 %v320, 0.0
      %v353 = vmax.f32 %v321, 0.0
      %v354 = vmax.f32 %v322, 0.0
      %v355 = vmax.f32 %v323, 0.0
      %v356 = vmax.f32 %v324, 0.0
      %v357 = vmax.f32 %v325, 0.0
      %v358 = vmax.f32 %v326, 0.0
      %v359 = vmax.f32 %v327, 0.0
      %v360 = vmax.f32 %v328, 0.0
      %v361 = vmax.f32 %v329, 0.0
      %v362 = vmax.f32 %v330, 0.0
      %v363 = vmax.f32 %v331, 0.0
      %v364 = vmax.f32 %v332, 0.0
      %v365 = vmax.f32 %v333, 0.0
      %v366 = vmax.f32 %v334, 0.0
      %v367 = vmax.f32 %v335, 0.0
      %v368 = vmax.f32 %v336, 0.0
      %v369 = vmax.f32 %v337, 0.0
      %v370 = vmax.f32 %v338, 0.0
      %v371 = vmax.f32 %v339, 0.0
      %v372 = vmax.f32 %v340, 0.0
      %v373 = vmax.f32 %v341, 0.0
      %v374 = vmax.f32 %v342, 0.0
      %v375 = vmax.f32 %v343, 0.0
      %v376 = vmax.f32 %v344, 0.0
      %v377 = vmax.f32 %v345, 0.0
      %v378 = vmax.f32 %v346, 0.0
      %v379 = vpack.c.bf16 %v348, %v347
      %v380 = vpack.c.bf16 %v350, %v349
      %v381 = vpack.c.bf16 %v352, %v351
      %v382 = vpack.c.bf16 %v354, %v353
      %v383 = vpack.c.bf16 %v356, %v355
      %v384 = vpack.c.bf16 %v358, %v357
      %v385 = vpack.c.bf16 %v360, %v359
      %v386 = vpack.c.bf16 %v362, %v361
      %v387 = vpack.c.bf16 %v364, %v363
      %v388 = vpack.c.bf16 %v366, %v365
      %v389 = vpack.c.bf16 %v368, %v367
      %v390 = vpack.c.bf16 %v370, %v369
      %v391 = vpack.c.bf16 %v372, %v371
      %v392 = vpack.c.bf16 %v374, %v373
      %v393 = vpack.c.bf16 %v376, %v375
      %v394 = vpack.c.bf16 %v378, %v377
      %v395 = vld [vmem:[%s3] sm:$0x3]
      %vm396 = vcmask 31744
      %v398 = vsel %vm396, %v379, 0
      %v401 = vsel %vm396, %v380, 0
      %v404 = vsel %vm396, %v381, 0
      %v407 = vsel %vm396, %v382, 0
      %v410 = vsel %vm396, %v383, 0
      %v413 = vsel %vm396, %v384, 0
      %v416 = vsel %vm396, %v385, 0
      %v419 = vsel %vm396, %v386, 0
      %v422 = vsel %vm396, %v387, 0
      %v425 = vsel %vm396, %v388, 0
      %v428 = vsel %vm396, %v389, 0
      %v431 = vsel %vm396, %v390, 0
      %v434 = vsel %vm396, %v391, 0
      %v437 = vsel %vm396, %v392, 0
      %v440 = vsel %vm396, %v393, 0
      %v443 = vsel %vm396, %v394, 0
      %vm445 = vcmask 1041408
      %v447 = vsel %vm445, %v395, 0
      %449 = vmatprep.subr.bf16.mxu0 0
      %450 = vmatpush1.bf16.msra.mxu0 0
      %451 = vmatprep.subr.bf16.mxu0 0
      %452 = vmatpush1.bf16.msra.mxu0 0
      %453 = vmatprep.subr.bf16.mxu0 0
      %454 = vmatpush1.bf16.msra.mxu0 0
      %455 = vmatprep.subr.bf16.mxu0 0
      %456 = vmatpush1.bf16.msra.mxu0 0
      %457 = vmatprep.subr.bf16.mxu0 0
      %458 = vmatpush1.bf16.msra.mxu0 0
      %459 = vmatprep.subr.bf16.mxu0 0
      %460 = vmatpush1.bf16.msra.mxu0 0
      %461 = vmatprep.subr.bf16.mxu0 0
      %462 = vmatpush1.bf16.msra.mxu0 0
      %463 = vmatprep.subr.bf16.mxu0 0
      %464 = vmatpush1.bf16.msra.mxu0 %v447
      %465 = vmatprep.subr.bf16.mxu0 0
      %466 = vmatpush2.bf16.msra.mxu0 0
      %467 = vmatprep.subr.bf16.mxu0 0
      %468 = vmatpush2.bf16.msra.mxu0 0
      %469 = vmatprep.subr.bf16.mxu0 0
      %470 = vmatpush2.bf16.msra.mxu0 0
      %471 = vmatprep.subr.bf16.mxu0 0
      %472 = vmatpush2.bf16.msra.mxu0 0
      %473 = vmatprep.subr.bf16.mxu0 0
      %474 = vmatpush2.bf16.msra.mxu0 0
      %475 = vmatprep.subr.bf16.mxu0 0
      %476 = vmatpush2.bf16.msra.mxu0 0
      %477 = vmatprep.subr.bf16.mxu0 0
      %478 = vmatpush2.bf16.msra.mxu0 0
      %479 = vmatprep.subr.bf16.mxu0 0
      %480 = vmatpush2.bf16.msra.mxu0 0
      %481 = vmatprep.mubr.bf16.mxu0 0
      %482 = vmatmul.mubr.bf16.gmra.mxu0 %v398
      %v483 = vpop.f32.mrf.mxu0
      %v484 = vadd.f32 0.0, %v483
      %v485 = vpop.f32.mrf.mxu0
      %v486 = vpop.f32.mrf.mxu0
      %v487 = vadd.f32 0.0, %v486
      %v488 = vpop.f32.mrf.mxu0
      %489 = vmatprep.mubr.bf16.mxu0 0
      %490 = vmatmul.mubr.bf16.gmra.mxu0 %v401
      %v491 = vpop.f32.mrf.mxu0
      %v492 = vadd.f32 0.0, %v491
      %v493 = vpop.f32.mrf.mxu0
      %v494 = vpop.f32.mrf.mxu0
      %v495 = vadd.f32 0.0, %v494
      %v496 = vpop.f32.mrf.mxu0
      %497 = vmatprep.mubr.bf16.mxu0 0
      %498 = vmatmul.mubr.bf16.gmra.mxu0 %v404
      %v499 = vpop.f32.mrf.mxu0
      %v500 = vadd.f32 0.0, %v499
      %v501 = vpop.f32.mrf.mxu0
      %v502 = vpop.f32.mrf.mxu0
      %v503 = vadd.f32 0.0, %v502
      %v504 = vpop.f32.mrf.mxu0
      %505 = vmatprep.mubr.bf16.mxu0 0
      %506 = vmatmul.mubr.bf16.gmra.mxu0 %v407
      %v507 = vpop.f32.mrf.mxu0
      %v508 = vadd.f32 0.0, %v507
      %v509 = vpop.f32.mrf.mxu0
      %v510 = vpop.f32.mrf.mxu0
      %v511 = vadd.f32 0.0, %v510
      %v512 = vpop.f32.mrf.mxu0
      %513 = vmatprep.mubr.bf16.mxu0 0
      %514 = vmatmul.mubr.bf16.gmra.mxu0 %v410
      %v515 = vpop.f32.mrf.mxu0
      %v516 = vadd.f32 0.0, %v515
      %v517 = vpop.f32.mrf.mxu0
      %v518 = vpop.f32.mrf.mxu0
      %v519 = vadd.f32 0.0, %v518
      %v520 = vpop.f32.mrf.mxu0
      %521 = vmatprep.mubr.bf16.mxu0 0
      %522 = vmatmul.mubr.bf16.gmra.mxu0 %v413
      %v523 = vpop.f32.mrf.mxu0
      %v524 = vadd.f32 0.0, %v523
      %v525 = vpop.f32.mrf.mxu0
      %v526 = vpop.f32.mrf.mxu0
      %v527 = vadd.f32 0.0, %v526
      %v528 = vpop.f32.mrf.mxu0
      %529 = vmatprep.mubr.bf16.mxu0 0
      %530 = vmatmul.mubr.bf16.gmra.mxu0 %v416
      %v531 = vpop.f32.mrf.mxu0
      %v532 = vadd.f32 0.0, %v531
      %v533 = vpop.f32.mrf.mxu0
      %v534 = vpop.f32.mrf.mxu0
      %v535 = vadd.f32 0.0, %v534
      %v536 = vpop.f32.mrf.mxu0
      %537 = vmatprep.mubr.bf16.mxu0 0
      %538 = vmatmul.mubr.bf16.gmra.mxu0 %v419
      %v539 = vpop.f32.mrf.mxu0
      %v540 = vadd.f32 0.0, %v539
      %v541 = vpop.f32.mrf.mxu0
      %v542 = vpop.f32.mrf.mxu0
      %v543 = vadd.f32 0.0, %v542
      %v544 = vpop.f32.mrf.mxu0
      %545 = vmatprep.mubr.bf16.mxu0 0
      %546 = vmatmul.mubr.bf16.gmra.mxu0 %v422
      %v547 = vpop.f32.mrf.mxu0
      %v548 = vadd.f32 0.0, %v547
      %v549 = vpop.f32.mrf.mxu0
      %v550 = vpop.f32.mrf.mxu0
      %v551 = vadd.f32 0.0, %v550
      %v552 = vpop.f32.mrf.mxu0
      %553 = vmatprep.mubr.bf16.mxu0 0
      %554 = vmatmul.mubr.bf16.gmra.mxu0 %v425
      %v555 = vpop.f32.mrf.mxu0
      %v556 = vadd.f32 0.0, %v555
      %v557 = vpop.f32.mrf.mxu0
      %v558 = vpop.f32.mrf.mxu0
      %v559 = vadd.f32 0.0, %v558
      %v560 = vpop.f32.mrf.mxu0
      %561 = vmatprep.mubr.bf16.mxu0 0
      %562 = vmatmul.mubr.bf16.gmra.mxu0 %v428
      %v563 = vpop.f32.mrf.mxu0
      %v564 = vadd.f32 0.0, %v563
      %v565 = vpop.f32.mrf.mxu0
      %v566 = vpop.f32.mrf.mxu0
      %v567 = vadd.f32 0.0, %v566
      %v568 = vpop.f32.mrf.mxu0
      %569 = vmatprep.mubr.bf16.mxu0 0
      %570 = vmatmul.mubr.bf16.gmra.mxu0 %v431
      %v571 = vpop.f32.mrf.mxu0
      %v572 = vadd.f32 0.0, %v571
      %v573 = vpop.f32.mrf.mxu0
      %v574 = vpop.f32.mrf.mxu0
      %v575 = vadd.f32 0.0, %v574
      %v576 = vpop.f32.mrf.mxu0
      %577 = vmatprep.mubr.bf16.mxu0 0
      %578 = vmatmul.mubr.bf16.gmra.mxu0 %v434
      %v579 = vpop.f32.mrf.mxu0
      %v580 = vadd.f32 0.0, %v579
      %v581 = vpop.f32.mrf.mxu0
      %v582 = vpop.f32.mrf.mxu0
      %v583 = vadd.f32 0.0, %v582
      %v584 = vpop.f32.mrf.mxu0
      %585 = vmatprep.mubr.bf16.mxu0 0
      %586 = vmatmul.mubr.bf16.gmra.mxu0 %v437
      %v587 = vpop.f32.mrf.mxu0
      %v588 = vadd.f32 0.0, %v587
      %v589 = vpop.f32.mrf.mxu0
      %v590 = vpop.f32.mrf.mxu0
      %v591 = vadd.f32 0.0, %v590
      %v592 = vpop.f32.mrf.mxu0
      %593 = vmatprep.mubr.bf16.mxu0 0
      %594 = vmatmul.mubr.bf16.gmra.mxu0 %v440
      %v595 = vpop.f32.mrf.mxu0
      %v596 = vadd.f32 0.0, %v595
      %v597 = vpop.f32.mrf.mxu0
      %v598 = vpop.f32.mrf.mxu0
      %v599 = vadd.f32 0.0, %v598
      %v600 = vpop.f32.mrf.mxu0
      %601 = vmatprep.mubr.bf16.mxu0 0
      %602 = vmatmul.mubr.bf16.gmra.mxu0 %v443
      %v603 = vpop.f32.mrf.mxu0
      %v604 = vadd.f32 0.0, %v603
      %v605 = vpop.f32.mrf.mxu0
      %v606 = vpop.f32.mrf.mxu0
      %v607 = vadd.f32 0.0, %v606
      %v608 = vpop.f32.mrf.mxu0
      %609 = vdwg.mxu0
      %610 = vst.msk [vmem:[%s231] sm:$0xff] %vm396, %v484
      %611 = vst.msk [vmem:[%s231 + $0x8] sm:$0xff] %vm396, %v487
      %612 = vst.msk [vmem:[%s231 + $0x10] sm:$0xff] %vm396, %v492
      %613 = vst.msk [vmem:[%s231 + $0x18] sm:$0xff] %vm396, %v495
      %614 = vst.msk [vmem:[%s231 + $0x20] sm:$0xff] %vm396, %v500
      %615 = vst.msk [vmem:[%s231 + $0x28] sm:$0xff] %vm396, %v503
      %616 = vst.msk [vmem:[%s231 + $0x30] sm:$0xff] %vm396, %v508
      %617 = vst.msk [vmem:[%s231 + $0x38] sm:$0xff] %vm396, %v511
      %618 = vst.msk [vmem:[%s231 + $0x40] sm:$0xff] %vm396, %v516
      %619 = vst.msk [vmem:[%s231 + $0x48] sm:$0xff] %vm396, %v519
      %620 = vst.msk [vmem:[%s231 + $0x50] sm:$0xff] %vm396, %v524
      %621 = vst.msk [vmem:[%s231 + $0x58] sm:$0xff] %vm396, %v527
      %622 = vst.msk [vmem:[%s231 + $0x60] sm:$0xff] %vm396, %v532
      %623 = vst.msk [vmem:[%s231 + $0x68] sm:$0xff] %vm396, %v535
      %624 = vst.msk [vmem:[%s231 + $0x70] sm:$0xff] %vm396, %v540
      %625 = vst.msk [vmem:[%s231 + $0x78] sm:$0xff] %vm396, %v543
      %626 = vst.msk [vmem:[%s231 + $0x80] sm:$0xff] %vm396, %v548
      %627 = vst.msk [vmem:[%s231 + $0x88] sm:$0xff] %vm396, %v551
      %628 = vst.msk [vmem:[%s231 + $0x90] sm:$0xff] %vm396, %v556
      %629 = vst.msk [vmem:[%s231 + $0x98] sm:$0xff] %vm396, %v559
      %630 = vst.msk [vmem:[%s231 + $0xa0] sm:$0xff] %vm396, %v564
      %631 = vst.msk [vmem:[%s231 + $0xa8] sm:$0xff] %vm396, %v567
      %632 = vst.msk [vmem:[%s231 + $0xb0] sm:$0xff] %vm396, %v572
      %633 = vst.msk [vmem:[%s231 + $0xb8] sm:$0xff] %vm396, %v575
      %634 = vst.msk [vmem:[%s231 + $0xc0] sm:$0xff] %vm396, %v580
      %635 = vst.msk [vmem:[%s231 + $0xc8] sm:$0xff] %vm396, %v583
      %636 = vst.msk [vmem:[%s231 + $0xd0] sm:$0xff] %vm396, %v588
      %637 = vst.msk [vmem:[%s231 + $0xd8] sm:$0xff] %vm396, %v591
      %638 = vst.msk [vmem:[%s231 + $0xe0] sm:$0xff] %vm396, %v596
      %639 = vst.msk [vmem:[%s231 + $0xe8] sm:$0xff] %vm396, %v599
      %640 = vst.msk [vmem:[%s231 + $0xf0] sm:$0xff] %vm396, %v604
      %641 = vst.msk [vmem:[%s231 + $0xf8] sm:$0xff] %vm396, %v607
      %v642 = vsel %vm396, %v484, 0.0
      %v643 = vsel %vm396, %v487, 0.0
      %v644 = vadd.f32 %v642, %v643
      %v645 = vsel %vm396, %v492, 0.0
      %v646 = vadd.f32 %v644, %v645
      %v647 = vsel %vm396, %v495, 0.0
      %v648 = vadd.f32 %v646, %v647
      %v649 = vsel %vm396, %v500, 0.0
      %v650 = vadd.f32 %v648, %v649
      %v651 = vsel %vm396, %v503, 0.0
      %v652 = vadd.f32 %v650, %v651
      %v653 = vsel %vm396, %v508, 0.0
      %v654 = vadd.f32 %v652, %v653
      %v655 = vsel %vm396, %v511, 0.0
      %v656 = vadd.f32 %v654, %v655
      %v657 = vsel %vm396, %v516, 0.0
      %v658 = vadd.f32 %v656, %v657
      %v659 = vsel %vm396, %v519, 0.0
      %v660 = vadd.f32 %v658, %v659
      %v661 = vsel %vm396, %v524, 0.0
      %v662 = vadd.f32 %v660, %v661
      %v663 = vsel %vm396, %v527, 0.0
      %v664 = vadd.f32 %v662, %v663
      %v665 = vsel %vm396, %v532, 0.0
      %v666 = vadd.f32 %v664, %v665
      %v667 = vsel %vm396, %v535, 0.0
      %v668 = vadd.f32 %v666, %v667
      %v669 = vsel %vm396, %v540, 0.0
      %v670 = vadd.f32 %v668, %v669
      %v671 = vsel %vm396, %v543, 0.0
      %v672 = vadd.f32 %v670, %v671
      %v673 = vsel %vm396, %v548, 0.0
      %v674 = vadd.f32 %v672, %v673
      %v675 = vsel %vm396, %v551, 0.0
      %v676 = vadd.f32 %v674, %v675
      %v677 = vsel %vm396, %v556, 0.0
      %v678 = vadd.f32 %v676, %v677
      %v679 = vsel %vm396, %v559, 0.0
      %v680 = vadd.f32 %v678, %v679
      %v681 = vsel %vm396, %v564, 0.0
      %v682 = vadd.f32 %v680, %v681
      %v683 = vsel %vm396, %v567, 0.0
      %v684 = vadd.f32 %v682, %v683
      %v685 = vsel %vm396, %v572, 0.0
      %v686 = vadd.f32 %v684, %v685
      %v687 = vsel %vm396, %v575, 0.0
      %v688 = vadd.f32 %v686, %v687
      %v689 = vsel %vm396, %v580, 0.0
      %v690 = vadd.f32 %v688, %v689
      %v691 = vsel %vm396, %v583, 0.0
      %v692 = vadd.f32 %v690, %v691
      %v693 = vsel %vm396, %v588, 0.0
      %v694 = vadd.f32 %v692, %v693
      %v695 = vsel %vm396, %v591, 0.0
      %v696 = vadd.f32 %v694, %v695
      %v697 = vsel %vm396, %v596, 0.0
      %v698 = vadd.f32 %v696, %v697
      %v699 = vsel %vm396, %v599, 0.0
      %v700 = vadd.f32 %v698, %v699
      %v701 = vsel %vm396, %v604, 0.0
      %v702 = vadd.f32 %v700, %v701
      %v703 = vsel %vm396, %v607, 0.0
      %v704 = vadd.f32 %v702, %v703
      %v705 = vrot.slane %v704, 4
      %v706 = vadd.f32 %v704, %v705
      %v707 = vrot.slane %v706, 2
      %v708 = vadd.f32 %v706, %v707
      %v709 = vrot.slane %v708, 1
      %v710 = vadd.f32 %v708, %v709
      %v711 = vmul.f32 %v710, 0.00390625
      %v712 = vsub.f32 %v484, %v711
      %v713 = vsub.f32 %v487, %v711
      %v714 = vsub.f32 %v492, %v711
      %v715 = vsub.f32 %v495, %v711
      %v716 = vsub.f32 %v500, %v711
      %v717 = vsub.f32 %v503, %v711
      %v718 = vsub.f32 %v508, %v711
      %v719 = vsub.f32 %v511, %v711
      %v720 = vsub.f32 %v516, %v711
      %v721 = vsub.f32 %v519, %v711
      %v722 = vsub.f32 %v524, %v711
      %v723 = vsub.f32 %v527, %v711
      %v724 = vsub.f32 %v532, %v711
      %v725 = vsub.f32 %v535, %v711
      %v726 = vsub.f32 %v540, %v711
      %v727 = vsub.f32 %v543, %v711
      %v728 = vsub.f32 %v548, %v711
      %v729 = vsub.f32 %v551, %v711
      %v730 = vsub.f32 %v556, %v711
      %v731 = vsub.f32 %v559, %v711
      %v732 = vsub.f32 %v564, %v711
      %v733 = vsub.f32 %v567, %v711
      %v734 = vsub.f32 %v572, %v711
      %v735 = vsub.f32 %v575, %v711
      %v736 = vsub.f32 %v580, %v711
      %v737 = vsub.f32 %v583, %v711
      %v738 = vsub.f32 %v588, %v711
      %v739 = vsub.f32 %v591, %v711
      %v740 = vsub.f32 %v596, %v711
      %v741 = vsub.f32 %v599, %v711
      %v742 = vsub.f32 %v604, %v711
      %v743 = vsub.f32 %v607, %v711
      %v744 = vmul.f32 %v712, %v712
      %v745 = vmul.f32 %v713, %v713
      %v746 = vmul.f32 %v714, %v714
      %v747 = vmul.f32 %v715, %v715
      %v748 = vmul.f32 %v716, %v716
      %v749 = vmul.f32 %v717, %v717
      %v750 = vmul.f32 %v718, %v718
      %v751 = vmul.f32 %v719, %v719
      %v752 = vmul.f32 %v720, %v720
      %v753 = vmul.f32 %v721, %v721
      %v754 = vmul.f32 %v722, %v722
      %v755 = vmul.f32 %v723, %v723
      %v756 = vmul.f32 %v724, %v724
      %v757 = vmul.f32 %v725, %v725
      %v758 = vmul.f32 %v726, %v726
      %v759 = vmul.f32 %v727, %v727
      %v760 = vmul.f32 %v728, %v728
      %v761 = vmul.f32 %v729, %v729
      %v762 = vmul.f32 %v730, %v730
      %v763 = vmul.f32 %v731, %v731
      %v764 = vmul.f32 %v732, %v732
      %v765 = vmul.f32 %v733, %v733
      %v766 = vmul.f32 %v734, %v734
      %v767 = vmul.f32 %v735, %v735
      %v768 = vmul.f32 %v736, %v736
      %v769 = vmul.f32 %v737, %v737
      %v770 = vmul.f32 %v738, %v738
      %v771 = vmul.f32 %v739, %v739
      %v772 = vmul.f32 %v740, %v740
      %v773 = vmul.f32 %v741, %v741
      %v774 = vmul.f32 %v742, %v742
      %v775 = vmul.f32 %v743, %v743
      %v776 = vsel %vm396, %v744, 0.0
      %v777 = vsel %vm396, %v745, 0.0
      %v778 = vadd.f32 %v776, %v777
      %v779 = vsel %vm396, %v746, 0.0
      %v780 = vadd.f32 %v778, %v779
      %v781 = vsel %vm396, %v747, 0.0
      %v782 = vadd.f32 %v780, %v781
      %v783 = vsel %vm396, %v748, 0.0
      %v784 = vadd.f32 %v782, %v783
      %v785 = vsel %vm396, %v749, 0.0
      %v786 = vadd.f32 %v784, %v785
      %v787 = vsel %vm396, %v750, 0.0
      %v788 = vadd.f32 %v786, %v787
      %v789 = vsel %vm396, %v751, 0.0
      %v790 = vadd.f32 %v788, %v789
      %v791 = vsel %vm396, %v752, 0.0
      %v792 = vadd.f32 %v790, %v791
      %v793 = vsel %vm396, %v753, 0.0
      %v794 = vadd.f32 %v792, %v793
      %v795 = vsel %vm396, %v754, 0.0
      %v796 = vadd.f32 %v794, %v795
      %v797 = vsel %vm396, %v755, 0.0
      %v798 = vadd.f32 %v796, %v797
      %v799 = vsel %vm396, %v756, 0.0
      %v800 = vadd.f32 %v798, %v799
      %v801 = vsel %vm396, %v757, 0.0
      %v802 = vadd.f32 %v800, %v801
      %v803 = vsel %vm396, %v758, 0.0
      %v804 = vadd.f32 %v802, %v803
      %v805 = vsel %vm396, %v759, 0.0
      %v806 = vadd.f32 %v804, %v805
      %v807 = vsel %vm396, %v760, 0.0
      %v808 = vadd.f32 %v806, %v807
      %v809 = vsel %vm396, %v761, 0.0
      %v810 = vadd.f32 %v808, %v809
      %v811 = vsel %vm396, %v762, 0.0
      %v812 = vadd.f32 %v810, %v811
      %v813 = vsel %vm396, %v763, 0.0
      %v814 = vadd.f32 %v812, %v813
      %v815 = vsel %vm396, %v764, 0.0
      %v816 = vadd.f32 %v814, %v815
      %v817 = vsel %vm396, %v765, 0.0
      %v818 = vadd.f32 %v816, %v817
      %v819 = vsel %vm396, %v766, 0.0
      %v820 = vadd.f32 %v818, %v819
      %v821 = vsel %vm396, %v767, 0.0
      %v822 = vadd.f32 %v820, %v821
      %v823 = vsel %vm396, %v768, 0.0
      %v824 = vadd.f32 %v822, %v823
      %v825 = vsel %vm396, %v769, 0.0
      %v826 = vadd.f32 %v824, %v825
      %v827 = vsel %vm396, %v770, 0.0
      %v828 = vadd.f32 %v826, %v827
      %v829 = vsel %vm396, %v771, 0.0
      %v830 = vadd.f32 %v828, %v829
      %v831 = vsel %vm396, %v772, 0.0
      %v832 = vadd.f32 %v830, %v831
      %v833 = vsel %vm396, %v773, 0.0
      %v834 = vadd.f32 %v832, %v833
      %v835 = vsel %vm396, %v774, 0.0
      %v836 = vadd.f32 %v834, %v835
      %v837 = vsel %vm396, %v775, 0.0
      %v838 = vadd.f32 %v836, %v837
      %v839 = vrot.slane %v838, 4
      %v840 = vadd.f32 %v838, %v839
      %v841 = vrot.slane %v840, 2
      %v842 = vadd.f32 %v840, %v841
      %v843 = vrot.slane %v842, 1
      %v844 = vadd.f32 %v842, %v843
      %vm845 = vcmask 1040384
      %v846 = vsel %vm845, %v711, %v844
      %v847 = vsel %vm445, %v846, 0.0
      %848 = vst.msk [vmem:[%s235] sm:$0xff] %vm396, %v847
      %p849 = scmp.lt.s32.totalorder %s17, 1
      %s850 = scalar_select %p849, %s17, 1
      %s851 = smul.addr %s850, 32
      %s852 = smul.addr %s851, 8
      %s853 = scalar_lea.vmem %s4, %s852
      %p854 = scmp.lt.s32.totalorder %s17, 1
      %s855 = scalar_select %p854, %s17, 1
      %s856 = smul.addr %s855, 8
      %s857 = scalar_lea.vmem %s5, %s856
      // Predicated region
      $region37: #{residual_block_preact_nhwc.5} parent=35 // pred_check
        %p858 = pneg %p124
      $region38: #{residual_block_preact_nhwc.5} parent=35 // pred_check_branch
        %860 = sbr.rel (%p858) target = $region40
      $region39: #{residual_block_preact_nhwc.5} parent=35 // pred_region
        _
      $region40: #{residual_block_preact_nhwc.5} parent=35 // pred_fallthru
        _
      // Predicated region
      $region41: #{residual_block_preact_nhwc.5} parent=35 // pred_check
        %p861 = pneg %p150
      $region42: #{residual_block_preact_nhwc.5} parent=35 // pred_check_branch
        %863 = sbr.rel (%p861) target = $region44
      $region43: #{residual_block_preact_nhwc.5} parent=35 // pred_region
        _
      $region44: #{residual_block_preact_nhwc.5} parent=35 // pred_fallthru
        _
    $region36: #{residual_block_preact_nhwc.5} parent=5 // pred_fallthru
      _
    %p864 = scmp.le.s32.totalorder 2, %s12
    // Predicated region
    $region45: #{residual_block_preact_nhwc.5} parent=5 // pred_check
      %p865 = pneg %p864
    $region46: #{residual_block_preact_nhwc.5} parent=5 // pred_check_branch
      %867 = sbr.rel (%p865) target = $region48
    $region47: #{residual_block_preact_nhwc.5} parent=5 // pred_region
      %s868 = ssub.s32 %s12, 2
      // Predicated region
      $region49: #{residual_block_preact_nhwc.5} parent=47 // pred_check
        %p869 = pneg %p130
      $region50: #{residual_block_preact_nhwc.5} parent=47 // pred_check_branch
        %871 = sbr.rel (%p869) target = $region52
      $region51: #{residual_block_preact_nhwc.5} parent=47 // pred_region
        %p872 = scmp.lt.s32.totalorder %s18, 1
        %s873 = scalar_select %p872, %s18, 1
        %s874 = smul.addr %s873, 32
        %s875 = smul.addr %s874, 8
        %s876 = scalar_lea.vmem %s4, %s875
      $region52: #{residual_block_preact_nhwc.5} parent=47 // pred_fallthru
        _
      // Predicated region
      $region53: #{residual_block_preact_nhwc.5} parent=47 // pred_check
        %p877 = pneg %p156
      $region54: #{residual_block_preact_nhwc.5} parent=47 // pred_check_branch
        %879 = sbr.rel (%p877) target = $region56
      $region55: #{residual_block_preact_nhwc.5} parent=47 // pred_region
        %p880 = scmp.lt.s32.totalorder %s18, 1
        %s881 = scalar_select %p880, %s18, 1
        %s882 = smul.addr %s881, 8
        %s883 = scalar_lea.vmem %s5, %s882
      $region56: #{residual_block_preact_nhwc.5} parent=47 // pred_fallthru
        _
    $region48: #{residual_block_preact_nhwc.5} parent=5 // pred_fallthru
      _
  $region6: #{residual_block_preact_nhwc.5} parent=0 // loop_footer
    %s16 = sadd.s32 1, %s12
  $region7: #{residual_block_preact_nhwc.5} parent=0 // loop_footer_branch
    %11 = sbr.rel target = $region3
  $region8: #{residual_block_preact_nhwc.5} parent=0 // loop_exit
    _

// kernel: residual_block_preact_nhwc.7
$region0: #{residual_block_preact_nhwc.7}
  #allocation0 [shape = 'u32[]', space=smem, size = 0x4, offset = 0x4, fixed_abs, tag = 'smem constant byte address 0x4 - core index']
  #allocation1 [shape = 'u32[144,128]{1,0:T(1,128)}', space=vmem, size = 0x12000, scoped, tag = 'internal scratch']
  %s0 = inlined_call_operand.vmem [shape: f32[2,256,4], index: 0, kind: input, shape index: {}]
  %s1 = inlined_call_operand.vmem [shape: f32[2,256,4], index: 1, kind: input, shape index: {}]
  %s2 = inlined_call_operand.vmem [shape: f32[1,4], index: 2, kind: input, shape index: {}]
  %s3 = inlined_call_operand.vmem [shape: f32[1,4], index: 3, kind: input, shape index: {}]
  %s4 = inlined_call_operand.vmem [shape: bf16[4,8], index: 4, kind: input, shape index: {}]
  %s5 = inlined_call_operand.vmem [shape: f32[1,4], index: 5, kind: input, shape index: {}]
  %s6 = inlined_call_operand.vmem [shape: f32[1,4], index: 6, kind: input, shape index: {}]
  %s7 = inlined_call_operand.vmem [shape: bf16[4,8], index: 7, kind: input, shape index: {}]
  %s8 = inlined_call_operand.vmem [shape: f32[2,256,8], index: 8, kind: output, shape index: {}]
  %s9 = sld [smem:[#allocation0]]
  $region65: #{residual_block_preact_nhwc.7} parent=0
    _
  %s11 = ssub.s32 1, %s9
  %s12 = scalar_select 0, %s11, %s9
  loop: start=0, step=1, limit=4
  $region2: #{residual_block_preact_nhwc.7} parent=0 // loop_pre_header
    _
  $region3: #{residual_block_preact_nhwc.7} parent=0 // loop_header
    %s14 = sphi 0, %s18
    %p15 = scmp.ge.s32.totalorder %s14, 4
    %s24 = sphi 0, %s26
    %s27 = sphi 0, %s24
    %s28 = sphi 0, %s27
    %s44 = sphi 0, %s28
    %s50 = sphi 0, %s52
    %s53 = sphi 0, %s50
    %s54 = sphi 0, %s53
    %s70 = sphi 0, %s54
    %s74 = sphi 0, %s74
    %s76 = sphi 0, %s74
    %s77 = sphi 0, %s76
    %s91 = sphi 0, %s77
    %s95 = sphi 0, %s95
    %s97 = sphi 0, %s95
    %s98 = sphi 0, %s97
    %s112 = sphi 0, %s98
    %s116 = sphi 0, %s116
    %s118 = sphi 0, %s116
    %s119 = sphi 0, %s118
    %s133 = sphi 0, %s119
    %s137 = sphi 0, %s137
    %s139 = sphi 0, %s137
    %s140 = sphi 0, %s139
    %s154 = sphi 0, %s140
    %s158 = sphi 0, %s158
    %s160 = sphi 0, %s158
    %s161 = sphi 0, %s160
    %s175 = sphi 0, %s161
    %s179 = sphi 0, %s179
    %s181 = sphi 0, %s179
    %s182 = sphi 0, %s181
    %s196 = sphi 0, %s182
    %s202 = sphi 0, %s204
    %s205 = sphi 0, %s202
    %s206 = sphi 0, %s205
    %s222 = sphi 0, %s206
  $region4: #{residual_block_preact_nhwc.7} parent=0 // loop_header_branch
    %17 = sbr.rel (%p15) target = $region8
  $region5: #{residual_block_preact_nhwc.7} parent=0 // loop_body
    %s19 = ssub.s32 %s14, 1
    %s20 = ssub.s32 %s14, 2
    %s21 = sadd.s32 %s14, 1
    %s22 = ssub.s32 %s14, %s21
    %p23 = scmp.eq.s32.totalorder %s22, 0
    %s25 = sadd.s32 %s24, 1
    %s26 = scalar_select %p23, %s24, %s25
    %p29 = pneg %p23
    %p30 = scmp.eq.s32.totalorder %s14, 1
    %p31 = por %p29, %p30
    %p32 = scmp.ne.s32.totalorder %s24, %s27
    %p33 = scmp.eq.s32.totalorder %s14, 0
    %p34 = por %p32, %p33
    %p35 = scmp.ne.s32.totalorder %s24, %s27
    %p36 = scmp.eq.s32.totalorder %s19, 1
    %p37 = por %p35, %p36
    %p38 = scmp.ne.s32.totalorder %s27, %s28
    %p39 = scmp.eq.s32.totalorder %s19, 0
    %p40 = por %p38, %p39
    %p41 = scmp.ne.s32.totalorder %s27, %s28
    %p42 = scmp.eq.s32.totalorder %s20, 1
    %p43 = por %p41, %p42
    %p45 = scmp.ne.s32.totalorder %s28, %s44
    %p46 = scmp.eq.s32.totalorder %s20, 0
    %p47 = por %p45, %p46
    %s48 = ssub.s32 %s14, %s21
    %p49 = scmp.eq.s32.totalorder %s48, 0
    %s51 = sadd.s32 %s50, 1
    %s52 = scalar_select %p49, %s50, %s51
    %p55 = pneg %p49
    %p56 = scmp.eq.s32.totalorder %s14, 1
    %p57 = por %p55, %p56
    %p58 = scmp.ne.s32.totalorder %s50, %s53
    %p59 = scmp.eq.s32.totalorder %s14, 0
    %p60 = por %p58, %p59
    %p61 = scmp.ne.s32.totalorder %s50, %s53
    %p62 = scmp.eq.s32.totalorder %s19, 1
    %p63 = por %p61, %p62
    %p64 = scmp.ne.s32.totalorder %s53, %s54
    %p65 = scmp.eq.s32.totalorder %s19, 0
    %p66 = por %p64, %p65
    %p67 = scmp.ne.s32.totalorder %s53, %s54
    %p68 = scmp.eq.s32.totalorder %s20, 1
    %p69 = por %p67, %p68
    %p71 = scmp.ne.s32.totalorder %s54, %s70
    %p72 = scmp.eq.s32.totalorder %s20, 0
    %p73 = por %p71, %p72
    %s75 = sadd.s32 %s74, 1
    %p78 = scmp.eq.s32.totalorder %s14, 1
    %p79 = scmp.ne.s32.totalorder %s74, %s76
    %p80 = scmp.eq.s32.totalorder %s14, 0
    %p81 = por %p79, %p80
    %p82 = scmp.ne.s32.totalorder %s74, %s76
    %p83 = scmp.eq.s32.totalorder %s19, 1
    %p84 = por %p82, %p83
    %p85 = scmp.ne.s32.totalorder %s76, %s77
    %p86 = scmp.eq.s32.totalorder %s19, 0
    %p87 = por %p85, %p86
    %p88 = scmp.ne.s32.totalorder %s76, %s77
    %p89 = scmp.eq.s32.totalorder %s20, 1
    %p90 = por %p88, %p89
    %p92 = scmp.ne.s32.totalorder %s77, %s91
    %p93 = scmp.eq.s32.totalorder %s20, 0
    %p94 = por %p92, %p93
    %s96 = sadd.s32 %s95, 1
    %p99 = scmp.eq.s32.totalorder %s14, 1
    %p100 = scmp.ne.s32.totalorder %s95, %s97
    %p101 = scmp.eq.s32.totalorder %s14, 0
    %p102 = por %p100, %p101
    %p103 = scmp.ne.s32.totalorder %s95, %s97
    %p104 = scmp.eq.s32.totalorder %s19, 1
    %p105 = por %p103, %p104
    %p106 = scmp.ne.s32.totalorder %s97, %s98
    %p107 = scmp.eq.s32.totalorder %s19, 0
    %p108 = por %p106, %p107
    %p109 = scmp.ne.s32.totalorder %s97, %s98
    %p110 = scmp.eq.s32.totalorder %s20, 1
    %p111 = por %p109, %p110
    %p113 = scmp.ne.s32.totalorder %s98, %s112
    %p114 = scmp.eq.s32.totalorder %s20, 0
    %p115 = por %p113, %p114
    %s117 = sadd.s32 %s116, 1
    %p120 = scmp.eq.s32.totalorder %s14, 1
    %p121 = scmp.ne.s32.totalorder %s116, %s118
    %p122 = scmp.eq.s32.totalorder %s14, 0
    %p123 = por %p121, %p122
    %p124 = scmp.ne.s32.totalorder %s116, %s118
    %p125 = scmp.eq.s32.totalorder %s19, 1
    %p126 = por %p124, %p125
    %p127 = scmp.ne.s32.totalorder %s118, %s119
    %p128 = scmp.eq.s32.totalorder %s19, 0
    %p129 = por %p127, %p128
    %p130 = scmp.ne.s32.totalorder %s118, %s119
    %p131 = scmp.eq.s32.totalorder %s20, 1
    %p132 = por %p130, %p131
    %p134 = scmp.ne.s32.totalorder %s119, %s133
    %p135 = scmp.eq.s32.totalorder %s20, 0
    %p136 = por %p134, %p135
    %s138 = sadd.s32 %s137, 1
    %p141 = scmp.eq.s32.totalorder %s14, 1
    %p142 = scmp.ne.s32.totalorder %s137, %s139
    %p143 = scmp.eq.s32.totalorder %s14, 0
    %p144 = por %p142, %p143
    %p145 = scmp.ne.s32.totalorder %s137, %s139
    %p146 = scmp.eq.s32.totalorder %s19, 1
    %p147 = por %p145, %p146
    %p148 = scmp.ne.s32.totalorder %s139, %s140
    %p149 = scmp.eq.s32.totalorder %s19, 0
    %p150 = por %p148, %p149
    %p151 = scmp.ne.s32.totalorder %s139, %s140
    %p152 = scmp.eq.s32.totalorder %s20, 1
    %p153 = por %p151, %p152
    %p155 = scmp.ne.s32.totalorder %s140, %s154
    %p156 = scmp.eq.s32.totalorder %s20, 0
    %p157 = por %p155, %p156
    %s159 = sadd.s32 %s158, 1
    %p162 = scmp.eq.s32.totalorder %s14, 1
    %p163 = scmp.ne.s32.totalorder %s158, %s160
    %p164 = scmp.eq.s32.totalorder %s14, 0
    %p165 = por %p163, %p164
    %p166 = scmp.ne.s32.totalorder %s158, %s160
    %p167 = scmp.eq.s32.totalorder %s19, 1
    %p168 = por %p166, %p167
    %p169 = scmp.ne.s32.totalorder %s160, %s161
    %p170 = scmp.eq.s32.totalorder %s19, 0
    %p171 = por %p169, %p170
    %p172 = scmp.ne.s32.totalorder %s160, %s161
    %p173 = scmp.eq.s32.totalorder %s20, 1
    %p174 = por %p172, %p173
    %p176 = scmp.ne.s32.totalorder %s161, %s175
    %p177 = scmp.eq.s32.totalorder %s20, 0
    %p178 = por %p176, %p177
    %s180 = sadd.s32 %s179, 1
    %p183 = scmp.eq.s32.totalorder %s14, 1
    %p184 = scmp.ne.s32.totalorder %s179, %s181
    %p185 = scmp.eq.s32.totalorder %s14, 0
    %p186 = por %p184, %p185
    %p187 = scmp.ne.s32.totalorder %s179, %s181
    %p188 = scmp.eq.s32.totalorder %s19, 1
    %p189 = por %p187, %p188
    %p190 = scmp.ne.s32.totalorder %s181, %s182
    %p191 = scmp.eq.s32.totalorder %s19, 0
    %p192 = por %p190, %p191
    %p193 = scmp.ne.s32.totalorder %s181, %s182
    %p194 = scmp.eq.s32.totalorder %s20, 1
    %p195 = por %p193, %p194
    %p197 = scmp.ne.s32.totalorder %s182, %s196
    %p198 = scmp.eq.s32.totalorder %s20, 0
    %p199 = por %p197, %p198
    %s200 = ssub.s32 %s14, %s21
    %p201 = scmp.eq.s32.totalorder %s200, 0
    %s203 = sadd.s32 %s202, 1
    %s204 = scalar_select %p201, %s202, %s203
    %p207 = pneg %p201
    %p208 = scmp.eq.s32.totalorder %s14, 1
    %p209 = por %p207, %p208
    %p210 = scmp.ne.s32.totalorder %s202, %s205
    %p211 = scmp.eq.s32.totalorder %s14, 0
    %p212 = por %p210, %p211
    %p213 = scmp.ne.s32.totalorder %s202, %s205
    %p214 = scmp.eq.s32.totalorder %s19, 1
    %p215 = por %p213, %p214
    %p216 = scmp.ne.s32.totalorder %s205, %s206
    %p217 = scmp.eq.s32.totalorder %s19, 0
    %p218 = por %p216, %p217
    %p219 = scmp.ne.s32.totalorder %s205, %s206
    %p220 = scmp.eq.s32.totalorder %s20, 1
    %p221 = por %p219, %p220
    %p223 = scmp.ne.s32.totalorder %s206, %s222
    %p224 = scmp.eq.s32.totalorder %s20, 0
    %p225 = por %p223, %p224
    %p226 = scmp.le.s32.totalorder 1, %s14
    %p227 = scmp.lt.s32.totalorder %s14, 3
    %p228 = pnand %p226, %p227
    %p229 = pneg %p228
    // Predicated region
    $region9: #{residual_block_preact_nhwc.7} parent=5 // pred_check
      _
    $region10: #{residual_block_preact_nhwc.7} parent=5 // pred_check_branch
      %231 = sbr.rel (%p228) target = $region12
    $region11: #{residual_block_preact_nhwc.7} parent=5 // pred_region
      %s232 = ssub.s32 %s14, 1
      // Predicated region
      $region13: #{residual_block_preact_nhwc.7} parent=11 // pred_check
        %p233 = pneg %p87
      $region14: #{residual_block_preact_nhwc.7} parent=11 // pred_check_branch
        %235 = sbr.rel (%p233) target = $region16
      $region15: #{residual_block_preact_nhwc.7} parent=11 // pred_region
        _
      $region16: #{residual_block_preact_nhwc.7} parent=11 // pred_fallthru
        _
      // Predicated region
      $region17: #{residual_block_preact_nhwc.7} parent=11 // pred_check
        %p236 = pneg %p108
      $region18: #{residual_block_preact_nhwc.7} parent=11 // pred_check_branch
        %238 = sbr.rel (%p236) target = $region20
      $region19: #{residual_block_preact_nhwc.7} parent=11 // pred_region
        _
      $region20: #{residual_block_preact_nhwc.7} parent=11 // pred_fallthru
        _
      // Predicated region
      $region21: #{residual_block_preact_nhwc.7} parent=11 // pred_check
        %p239 = pneg %p129
      $region22: #{residual_block_preact_nhwc.7} parent=11 // pred_check_branch
        %241 = sbr.rel (%p239) target = $region24
      $region23: #{residual_block_preact_nhwc.7} parent=11 // pred_region
        _
      $region24: #{residual_block_preact_nhwc.7} parent=11 // pred_fallthru
        _
      // Predicated region
      $region25: #{residual_block_preact_nhwc.7} parent=11 // pred_check
        %p242 = pneg %p150
      $region26: #{residual_block_preact_nhwc.7} parent=11 // pred_check_branch
        %244 = sbr.rel (%p242) target = $region28
      $region27: #{residual_block_preact_nhwc.7} parent=11 // pred_region
        _
      $region28: #{residual_block_preact_nhwc.7} parent=11 // pred_fallthru
        _
      // Predicated region
      $region29: #{residual_block_preact_nhwc.7} parent=11 // pred_check
        %p245 = pneg %p171
      $region30: #{residual_block_preact_nhwc.7} parent=11 // pred_check_branch
        %247 = sbr.rel (%p245) target = $region32
      $region31: #{residual_block_preact_nhwc.7} parent=11 // pred_region
        _
      $region32: #{residual_block_preact_nhwc.7} parent=11 // pred_fallthru
        _
      // Predicated region
      $region33: #{residual_block_preact_nhwc.7} parent=11 // pred_check
        %p248 = pneg %p192
      $region34: #{residual_block_preact_nhwc.7} parent=11 // pred_check_branch
        %250 = sbr.rel (%p248) target = $region36
      $region35: #{residual_block_preact_nhwc.7} parent=11 // pred_region
        _
      $region36: #{residual_block_preact_nhwc.7} parent=11 // pred_fallthru
        _
    $region12: #{residual_block_preact_nhwc.7} parent=5 // pred_fallthru
      _
    %p251 = scmp.lt.s32.totalorder %s14, 2
    // Predicated region
    $region37: #{residual_block_preact_nhwc.7} parent=5 // pred_check
      %p252 = pneg %p251
    $region38: #{residual_block_preact_nhwc.7} parent=5 // pred_check_branch
      %254 = sbr.rel (%p252) target = $region40
    $region39: #{residual_block_preact_nhwc.7} parent=5 // pred_region
      // Predicated region
      $region41: #{residual_block_preact_nhwc.7} parent=39 // pred_check
        %p255 = pneg %p34
      $region42: #{residual_block_preact_nhwc.7} parent=39 // pred_check_branch
        %257 = sbr.rel (%p255) target = $region44
      $region43: #{residual_block_preact_nhwc.7} parent=39 // pred_region
        %p258 = scmp.lt.s32.totalorder %s14, 1
        %s259 = scalar_select %p258, %s14, 1
        %s260 = smul.addr %s259, 32
        %s261 = smul.addr %s260, 8
        %s262 = scalar_lea.vmem %s0, %s261
      $region44: #{residual_block_preact_nhwc.7} parent=39 // pred_fallthru
        _
      // Predicated region
      $region45: #{residual_block_preact_nhwc.7} parent=39 // pred_check
        %p263 = pneg %p60
      $region46: #{residual_block_preact_nhwc.7} parent=39 // pred_check_branch
        %265 = sbr.rel (%p263) target = $region48
      $region47: #{residual_block_preact_nhwc.7} parent=39 // pred_region
        %p266 = scmp.lt.s32.totalorder %s14, 1
        %s267 = scalar_select %p266, %s14, 1
        %s268 = smul.addr %s267, 32
        %s269 = smul.addr %s268, 8
        %s270 = scalar_lea.vmem %s1, %s269
      $region48: #{residual_block_preact_nhwc.7} parent=39 // pred_fallthru
        _
    $region40: #{residual_block_preact_nhwc.7} parent=5 // pred_fallthru
      _
    %p271 = scmp.le.s32.totalorder 1, %s14
    %p272 = scmp.lt.s32.totalorder %s14, 3
    %p273 = pnand %p271, %p272
    %p274 = pneg %p273
    // Predicated region
    $region49: #{residual_block_preact_nhwc.7} parent=5 // pred_check
      _
    $region50: #{residual_block_preact_nhwc.7} parent=5 // pred_check_branch
      %276 = sbr.rel (%p273) target = $region52
    $region51: #{residual_block_preact_nhwc.7} parent=5 // pred_region
      %s277 = ssub.s32 %s14, 1
      %p278 = scmp.lt.s32.totalorder %s19, 1
      %s279 = scalar_select %p278, %s19, 1
      %s280 = smul.addr %s279, 32
      %s281 = smul.addr %s280, 8
      %s282 = scalar_lea.vmem %s0, %s281
      %p283 = pneg %p40
      %p284 = pneg %p37
      %p285 = scmp.lt.s32.totalorder %s19, 1
      %s286 = scalar_select %p285, %s19, 1
      %s287 = smul.addr %s286, 32
      %s288 = smul.addr %s287, 8
      %s289 = scalar_lea.vmem %s1, %s288
      %p290 = pneg %p66
      %p291 = pneg %p63
      %p292 = pneg %p87
      %p293 = pneg %p84
      %p294 = pneg %p108
      %p295 = pneg %p105
      %p296 = pneg %p129
      %p297 = pneg %p126
      %p298 = pneg %p150
      %p299 = pneg %p147
      %p300 = pneg %p171
      %p301 = pneg %p168
      %p302 = pneg %p192
      %p303 = pneg %p189
      %p304 = pneg %p218
      %p305 = pneg %p215
      %p306 = scmp.lt.s32.totalorder %s19, 1
      %s307 = scalar_select %p306, %s19, 1
      %s308 = smul.addr %s307, 32
      %s309 = smul.addr %s308, 8
      %s310 = scalar_lea.vmem %s8, %s309
      %p311 = scmp.lt.s32.totalorder %s19, 1
      %s312 = scalar_select %p311, %s19, 1
      %s313 = smul.addr %s312, 32
      %s314 = smul.addr %s313, 8
      %s315 = scalar_lea.vmem %s0, %s314
      %p316 = scmp.lt.s32.totalorder %s19, 1
      %s317 = scalar_select %p316, %s19, 1
      %s318 = smul.addr %s317, 32
      %s319 = smul.addr %s318, 8
      %s320 = scalar_lea.vmem %s1, %s319
      %p321 = scmp.lt.s32.totalorder %s19, 1
      %s322 = scalar_select %p321, %s19, 1
      %s323 = smul.addr %s322, 32
      %s324 = smul.addr %s323, 8
      %s325 = scalar_lea.vmem %s8, %s324
      %v327 = vld [vmem:[%s315] sm:$0xff]
      %v328 = vld [vmem:[%s315 + $0x8] sm:$0xff]
      %v329 = vld [vmem:[%s315 + $0x10] sm:$0xff]
      %v330 = vld [vmem:[%s315 + $0x18] sm:$0xff]
      %v331 = vld [vmem:[%s315 + $0x20] sm:$0xff]
      %v332 = vld [vmem:[%s315 + $0x28] sm:$0xff]
      %v333 = vld [vmem:[%s315 + $0x30] sm:$0xff]
      %v334 = vld [vmem:[%s315 + $0x38] sm:$0xff]
      %v335 = vld [vmem:[%s315 + $0x40] sm:$0xff]
      %v336 = vld [vmem:[%s315 + $0x48] sm:$0xff]
      %v337 = vld [vmem:[%s315 + $0x50] sm:$0xff]
      %v338 = vld [vmem:[%s315 + $0x58] sm:$0xff]
      %v339 = vld [vmem:[%s315 + $0x60] sm:$0xff]
      %v340 = vld [vmem:[%s315 + $0x68] sm:$0xff]
      %v341 = vld [vmem:[%s315 + $0x70] sm:$0xff]
      %v342 = vld [vmem:[%s315 + $0x78] sm:$0xff]
      %v343 = vld [vmem:[%s315 + $0x80] sm:$0xff]
      %v344 = vld [vmem:[%s315 + $0x88] sm:$0xff]
      %v345 = vld [vmem:[%s315 + $0x90] sm:$0xff]
      %v346 = vld [vmem:[%s315 + $0x98] sm:$0xff]
      %v347 = vld [vmem:[%s315 + $0xa0] sm:$0xff]
      %v348 = vld [vmem:[%s315 + $0xa8] sm:$0xff]
      %v349 = vld [vmem:[%s315 + $0xb0] sm:$0xff]
      %v350 = vld [vmem:[%s315 + $0xb8] sm:$0xff]
      %v351 = vld [vmem:[%s315 + $0xc0] sm:$0xff]
      %v352 = vld [vmem:[%s315 + $0xc8] sm:$0xff]
      %v353 = vld [vmem:[%s315 + $0xd0] sm:$0xff]
      %v354 = vld [vmem:[%s315 + $0xd8] sm:$0xff]
      %v355 = vld [vmem:[%s315 + $0xe0] sm:$0xff]
      %v356 = vld [vmem:[%s315 + $0xe8] sm:$0xff]
      %v357 = vld [vmem:[%s315 + $0xf0] sm:$0xff]
      %v358 = vld [vmem:[%s315 + $0xf8] sm:$0xff]
      %v359 = vld [vmem:[%s2] sm:$0x1]
      %v361 = vlaneseq
      %v362 = vshrl.u32 %v361, 7
      %v363 = vsub.s32 0, %v362
      %v364 = vrot.slane %v359, %v363
      %v366 = vmul.f32 %v327, %v364
      %v367 = vmul.f32 %v328, %v364
      %v368 = vmul.f32 %v329, %v364
      %v369 = vmul.f32 %v330, %v364
      %v370 = vmul.f32 %v331, %v364
      %v371 = vmul.f32 %v332, %v364
      %v372 = vmul.f32 %v333, %v364
      %v373 = vmul.f32 %v334, %v364
      %v374 = vmul.f32 %v335, %v364
      %v375 = vmul.f32 %v336, %v364
      %v376 = vmul.f32 %v337, %v364
      %v377 = vmul.f32 %v338, %v364
      %v378 = vmul.f32 %v339, %v364
      %v379 = vmul.f32 %v340, %v364
      %v380 = vmul.f32 %v341, %v364
      %v381 = vmul.f32 %v342, %v364
      %v382 = vmul.f32 %v343, %v364
      %v383 = vmul.f32 %v344, %v364
      %v384 = vmul.f32 %v345, %v364
      %v385 = vmul.f32 %v346, %v364
      %v386 = vmul.f32 %v347, %v364
      %v387 = vmul.f32 %v348, %v364
      %v388 = vmul.f32 %v349, %v364
      %v389 = vmul.f32 %v350, %v364
      %v390 = vmul.f32 %v351, %v364
      %v391 = vmul.f32 %v352, %v364
      %v392 = vmul.f32 %v353, %v364
      %v393 = vmul.f32 %v354, %v364
      %v394 = vmul.f32 %v355, %v364
      %v395 = vmul.f32 %v356, %v364
      %v396 = vmul.f32 %v357, %v364
      %v397 = vmul.f32 %v358, %v364
      %v398 = vld [vmem:[%s3] sm:$0x1]
      %v400 = vlaneseq
      %v401 = vshrl.u32 %v400, 7
      %v402 = vsub.s32 0, %v401
      %v403 = vrot.slane %v398, %v402
      %v405 = vadd.f32 %v366, %v403
      %v406 = vadd.f32 %v367, %v403
      %v407 = vadd.f32 %v368, %v403
      %v408 = vadd.f32 %v369, %v403
      %v409 = vadd.f32 %v370, %v403
      %v410 = vadd.f32 %v371, %v403
      %v411 = vadd.f32 %v372, %v403
      %v412 = vadd.f32 %v373, %v403
      %v413 = vadd.f32 %v374, %v403
      %v414 = vadd.f32 %v375, %v403
      %v415 = vadd.f32 %v376, %v403
      %v416 = vadd.f32 %v377, %v403
      %v417 = vadd.f32 %v378, %v403
      %v418 = vadd.f32 %v379, %v403
      %v419 = vadd.f32 %v380, %v403
      %v420 = vadd.f32 %v381, %v403
      %v421 = vadd.f32 %v382, %v403
      %v422 = vadd.f32 %v383, %v403
      %v423 = vadd.f32 %v384, %v403
      %v424 = vadd.f32 %v385, %v403
      %v425 = vadd.f32 %v386, %v403
      %v426 = vadd.f32 %v387, %v403
      %v427 = vadd.f32 %v388, %v403
      %v428 = vadd.f32 %v389, %v403
      %v429 = vadd.f32 %v390, %v403
      %v430 = vadd.f32 %v391, %v403
      %v431 = vadd.f32 %v392, %v403
      %v432 = vadd.f32 %v393, %v403
      %v433 = vadd.f32 %v394, %v403
      %v434 = vadd.f32 %v395, %v403
      %v435 = vadd.f32 %v396, %v403
      %v436 = vadd.f32 %v397, %v403
      %v437 = vmax.f32 %v405, 0.0
      %v438 = vmax.f32 %v406, 0.0
      %v439 = vmax.f32 %v407, 0.0
      %v440 = vmax.f32 %v408, 0.0
      %v441 = vmax.f32 %v409, 0.0
      %v442 = vmax.f32 %v410, 0.0
      %v443 = vmax.f32 %v411, 0.0
      %v444 = vmax.f32 %v412, 0.0
      %v445 = vmax.f32 %v413, 0.0
      %v446 = vmax.f32 %v414, 0.0
      %v447 = vmax.f32 %v415, 0.0
      %v448 = vmax.f32 %v416, 0.0
      %v449 = vmax.f32 %v417, 0.0
      %v450 = vmax.f32 %v418, 0.0
      %v451 = vmax.f32 %v419, 0.0
      %v452 = vmax.f32 %v420, 0.0
      %v453 = vmax.f32 %v421, 0.0
      %v454 = vmax.f32 %v422, 0.0
      %v455 = vmax.f32 %v423, 0.0
      %v456 = vmax.f32 %v424, 0.0
      %v457 = vmax.f32 %v425, 0.0
      %v458 = vmax.f32 %v426, 0.0
      %v459 = vmax.f32 %v427, 0.0
      %v460 = vmax.f32 %v428, 0.0
      %v461 = vmax.f32 %v429, 0.0
      %v462 = vmax.f32 %v430, 0.0
      %v463 = vmax.f32 %v431, 0.0
      %v464 = vmax.f32 %v432, 0.0
      %v465 = vmax.f32 %v433, 0.0
      %v466 = vmax.f32 %v434, 0.0
      %v467 = vmax.f32 %v435, 0.0
      %v468 = vmax.f32 %v436, 0.0
      %v469 = vpack.c.bf16 %v438, %v437
      %v470 = vpack.c.bf16 %v440, %v439
      %v471 = vpack.c.bf16 %v442, %v441
      %v472 = vpack.c.bf16 %v444, %v443
      %v473 = vpack.c.bf16 %v446, %v445
      %v474 = vpack.c.bf16 %v448, %v447
      %v475 = vpack.c.bf16 %v450, %v449
      %v476 = vpack.c.bf16 %v452, %v451
      %v477 = vpack.c.bf16 %v454, %v453
      %v478 = vpack.c.bf16 %v456, %v455
      %v479 = vpack.c.bf16 %v458, %v457
      %v480 = vpack.c.bf16 %v460, %v459
      %v481 = vpack.c.bf16 %v462, %v461
      %v482 = vpack.c.bf16 %v464, %v463
      %v483 = vpack.c.bf16 %v466, %v465
      %v484 = vpack.c.bf16 %v468, %v467
      %v485 = vld [vmem:[%s4] sm:$0x3]
      %v486 = vld [vmem:[%s320] sm:$0xff]
      %v487 = vld [vmem:[%s320 + $0x8] sm:$0xff]
      %v488 = vld [vmem:[%s320 + $0x10] sm:$0xff]
      %v489 = vld [vmem:[%s320 + $0x18] sm:$0xff]
      %v490 = vld [vmem:[%s320 + $0x20] sm:$0xff]
      %v491 = vld [vmem:[%s320 + $0x28] sm:$0xff]
      %v492 = vld [vmem:[%s320 + $0x30] sm:$0xff]
      %v493 = vld [vmem:[%s320 + $0x38] sm:$0xff]
      %v494 = vld [vmem:[%s320 + $0x40] sm:$0xff]
      %v495 = vld [vmem:[%s320 + $0x48] sm:$0xff]
      %v496 = vld [vmem:[%s320 + $0x50] sm:$0xff]
      %v497 = vld [vmem:[%s320 + $0x58] sm:$0xff]
      %v498 = vld [vmem:[%s320 + $0x60] sm:$0xff]
      %v499 = vld [vmem:[%s320 + $0x68] sm:$0xff]
      %v500 = vld [vmem:[%s320 + $0x70] sm:$0xff]
      %v501 = vld [vmem:[%s320 + $0x78] sm:$0xff]
      %v502 = vld [vmem:[%s320 + $0x80] sm:$0xff]
      %v503 = vld [vmem:[%s320 + $0x88] sm:$0xff]
      %v504 = vld [vmem:[%s320 + $0x90] sm:$0xff]
      %v505 = vld [vmem:[%s320 + $0x98] sm:$0xff]
      %v506 = vld [vmem:[%s320 + $0xa0] sm:$0xff]
      %v507 = vld [vmem:[%s320 + $0xa8] sm:$0xff]
      %v508 = vld [vmem:[%s320 + $0xb0] sm:$0xff]
      %v509 = vld [vmem:[%s320 + $0xb8] sm:$0xff]
      %v510 = vld [vmem:[%s320 + $0xc0] sm:$0xff]
      %v511 = vld [vmem:[%s320 + $0xc8] sm:$0xff]
      %v512 = vld [vmem:[%s320 + $0xd0] sm:$0xff]
      %v513 = vld [vmem:[%s320 + $0xd8] sm:$0xff]
      %v514 = vld [vmem:[%s320 + $0xe0] sm:$0xff]
      %v515 = vld [vmem:[%s320 + $0xe8] sm:$0xff]
      %v516 = vld [vmem:[%s320 + $0xf0] sm:$0xff]
      %v517 = vld [vmem:[%s320 + $0xf8] sm:$0xff]
      %v518 = vld [vmem:[%s5] sm:$0x1]
      %v520 = vlaneseq
      %v521 = vshrl.u32 %v520, 7
      %v522 = vsub.s32 0, %v521
      %v523 = vrot.slane %v518, %v522
      %v525 = vmul.f32 %v486, %v523
      %v526 = vmul.f32 %v487, %v523
      %v527 = vmul.f32 %v488, %v523
      %v528 = vmul.f32 %v489, %v523
      %v529 = vmul.f32 %v490, %v523
      %v530 = vmul.f32 %v491, %v523
      %v531 = vmul.f32 %v492, %v523
      %v532 = vmul.f32 %v493, %v523
      %v533 = vmul.f32 %v494, %v523
      %v534 = vmul.f32 %v495, %v523
      %v535 = vmul.f32 %v496, %v523
      %v536 = vmul.f32 %v497, %v523
      %v537 = vmul.f32 %v498, %v523
      %v538 = vmul.f32 %v499, %v523
      %v539 = vmul.f32 %v500, %v523
      %v540 = vmul.f32 %v501, %v523
      %v541 = vmul.f32 %v502, %v523
      %v542 = vmul.f32 %v503, %v523
      %v543 = vmul.f32 %v504, %v523
      %v544 = vmul.f32 %v505, %v523
      %v545 = vmul.f32 %v506, %v523
      %v546 = vmul.f32 %v507, %v523
      %v547 = vmul.f32 %v508, %v523
      %v548 = vmul.f32 %v509, %v523
      %v549 = vmul.f32 %v510, %v523
      %v550 = vmul.f32 %v511, %v523
      %v551 = vmul.f32 %v512, %v523
      %v552 = vmul.f32 %v513, %v523
      %v553 = vmul.f32 %v514, %v523
      %v554 = vmul.f32 %v515, %v523
      %v555 = vmul.f32 %v516, %v523
      %v556 = vmul.f32 %v517, %v523
      %v557 = vld [vmem:[%s6] sm:$0x1]
      %v559 = vlaneseq
      %v560 = vshrl.u32 %v559, 7
      %v561 = vsub.s32 0, %v560
      %v562 = vrot.slane %v557, %v561
      %v564 = vadd.f32 %v525, %v562
      %v565 = vadd.f32 %v526, %v562
      %v566 = vadd.f32 %v527, %v562
      %v567 = vadd.f32 %v528, %v562
      %v568 = vadd.f32 %v529, %v562
      %v569 = vadd.f32 %v530, %v562
      %v570 = vadd.f32 %v531, %v562
      %v571 = vadd.f32 %v532, %v562
      %v572 = vadd.f32 %v533, %v562
      %v573 = vadd.f32 %v534, %v562
      %v574 = vadd.f32 %v535, %v562
      %v575 = vadd.f32 %v536, %v562
      %v576 = vadd.f32 %v537, %v562
      %v577 = vadd.f32 %v538, %v562
      %v578 = vadd.f32 %v539, %v562
      %v579 = vadd.f32 %v540, %v562
      %v580 = vadd.f32 %v541, %v562
      %v581 = vadd.f32 %v542, %v562
      %v582 = vadd.f32 %v543, %v562
      %v583 = vadd.f32 %v544, %v562
      %v584 = vadd.f32 %v545, %v562
      %v585 = vadd.f32 %v546, %v562
      %v586 = vadd.f32 %v547, %v562
      %v587 = vadd.f32 %v548, %v562
      %v588 = vadd.f32 %v549, %v562
      %v589 = vadd.f32 %v550, %v562
      %v590 = vadd.f32 %v551, %v562
      %v591 = vadd.f32 %v552, %v562
      %v592 = vadd.f32 %v553, %v562
      %v593 = vadd.f32 %v554, %v562
      %v594 = vadd.f32 %v555, %v562
      %v595 = vadd.f32 %v556, %v562
      %v596 = vmax.f32 %v564, 0.0
      %v597 = vmax.f32 %v565, 0.0
      %v598 = vmax.f32 %v566, 0.0
      %v599 = vmax.f32 %v567, 0.0
      %v600 = vmax.f32 %v568, 0.0
      %v601 = vmax.f32 %v569, 0.0
      %v602 = vmax.f32 %v570, 0.0
      %v603 = vmax.f32 %v571, 0.0
      %v604 = vmax.f32 %v572, 0.0
      %v605 = vmax.f32 %v573, 0.0
      %v606 = vmax.f32 %v574, 0.0
      %v607 = vmax.f32 %v575, 0.0
      %v608 = vmax.f32 %v576, 0.0
      %v609 = vmax.f32 %v577, 0.0
      %v610 = vmax.f32 %v578, 0.0
      %v611 = vmax.f32 %v579, 0.0
      %v612 = vmax.f32 %v580, 0.0
      %v613 = vmax.f32 %v581, 0.0
      %v614 = vmax.f32 %v582, 0.0
      %v615 = vmax.f32 %v583, 0.0
      %v616 = vmax.f32 %v584, 0.0
      %v617 = vmax.f32 %v585, 0.0
      %v618 = vmax.f32 %v586, 0.0
      %v619 = vmax.f32 %v587, 0.0
      %v620 = vmax.f32 %v588, 0.0
      %v621 = vmax.f32 %v589, 0.0
      %v622 = vmax.f32 %v590, 0.0
      %v623 = vmax.f32 %v591, 0.0
      %v624 = vmax.f32 %v592, 0.0
      %v625 = vmax.f32 %v593, 0.0
      %v626 = vmax.f32 %v594, 0.0
      %v627 = vmax.f32 %v595, 0.0
      %v628 = vpack.c.bf16 %v597, %v596
      %v629 = vpack.c.bf16 %v599, %v598
      %v630 = vpack.c.bf16 %v601, %v600
      %v631 = vpack.c.bf16 %v603, %v602
      %v632 = vpack.c.bf16 %v605, %v604
      %v633 = vpack.c.bf16 %v607, %v606
      %v634 = vpack.c.bf16 %v609, %v608
      %v635 = vpack.c.bf16 %v611, %v610
      %v636 = vpack.c.bf16 %v613, %v612
      %v637 = vpack.c.bf16 %v615, %v614
      %v638 = vpack.c.bf16 %v617, %v616
      %v639 = vpack.c.bf16 %v619, %v618
      %v640 = vpack.c.bf16 %v621, %v620
      %v641 = vpack.c.bf16 %v623, %v622
      %v642 = vpack.c.bf16 %v625, %v624
      %v643 = vpack.c.bf16 %v627, %v626
      %v644 = vld [vmem:[%s7] sm:$0x3]
      %vm645 = vcmask 31744
      %v647 = vsel %vm645, %v628, 0
      %v650 = vsel %vm645, %v629, 0
      %v653 = vsel %vm645, %v630, 0
      %v656 = vsel %vm645, %v631, 0
      %v659 = vsel %vm645, %v632, 0
      %v662 = vsel %vm645, %v633, 0
      %v665 = vsel %vm645, %v634, 0
      %v668 = vsel %vm645, %v635, 0
      %v671 = vsel %vm645, %v636, 0
      %v674 = vsel %vm645, %v637, 0
      %v677 = vsel %vm645, %v638, 0
      %v680 = vsel %vm645, %v639, 0
      %v683 = vsel %vm645, %v640, 0
      %v686 = vsel %vm645, %v641, 0
      %v689 = vsel %vm645, %v642, 0
      %v692 = vsel %vm645, %v643, 0
      %vm694 = vcmask 1041408
      %v696 = vsel %vm694, %v644, 0
      %698 = vmatprep.subr.bf16.mxu0 0
      %699 = vmatpush1.bf16.msra.mxu0 0
      %700 = vmatprep.subr.bf16.mxu0 0
      %701 = vmatpush1.bf16.msra.mxu0 0
      %702 = vmatprep.subr.bf16.mxu0 0
      %703 = vmatpush1.bf16.msra.mxu0 0
      %704 = vmatprep.subr.bf16.mxu0 0
      %705 = vmatpush1.bf16.msra.mxu0 0
      %706 = vmatprep.subr.bf16.mxu0 0
      %707 = vmatpush1.bf16.msra.mxu0 0
      %708 = vmatprep.subr.bf16.mxu0 0
      %709 = vmatpush1.bf16.msra.mxu0 0
      %710 = vmatprep.subr.bf16.mxu0 0
      %711 = vmatpush1.bf16.msra.mxu0 0
      %712 = vmatprep.subr.bf16.mxu0 0
      %713 = vmatpush1.bf16.msra.mxu0 %v696
      %714 = vmatprep.subr.bf16.mxu0 0
      %715 = vmatpush2.bf16.msra.mxu0 0
      %716 = vmatprep.subr.bf16.mxu0 0
      %717 = vmatpush2.bf16.msra.mxu0 0
      %718 = vmatprep.subr.bf16.mxu0 0
      %719 = vmatpush2.bf16.msra.mxu0 0
      %720 = vmatprep.subr.bf16.mxu0 0
      %721 = vmatpush2.bf16.msra.mxu0 0
      %722 = vmatprep.subr.bf16.mxu0 0
      %723 = vmatpush2.bf16.msra.mxu0 0
      %724 = vmatprep.subr.bf16.mxu0 0
      %725 = vmatpush2.bf16.msra.mxu0 0
      %726 = vmatprep.subr.bf16.mxu0 0
      %727 = vmatpush2.bf16.msra.mxu0 0
      %728 = vmatprep.subr.bf16.mxu0 0
      %729 = vmatpush2.bf16.msra.mxu0 0
      %730 = vmatprep.mubr.bf16.mxu0 0
      %731 = vmatmul.mubr.bf16.gmra.mxu0 %v647
      %v732 = vpop.f32.mrf.mxu0
      %v733 = vadd.f32 0.0, %v732
      %v734 = vpop.f32.mrf.mxu0
      %v735 = vpop.f32.mrf.mxu0
      %v736 = vadd.f32 0.0, %v735
      %v737 = vpop.f32.mrf.mxu0
      %738 = vmatprep.mubr.bf16.mxu0 0
      %739 = vmatmul.mubr.bf16.gmra.mxu0 %v650
      %v740 = vpop.f32.mrf.mxu0
      %v741 = vadd.f32 0.0, %v740
      %v742 = vpop.f32.mrf.mxu0
      %v743 = vpop.f32.mrf.mxu0
      %v744 = vadd.f32 0.0, %v743
      %v745 = vpop.f32.mrf.mxu0
      %746 = vmatprep.mubr.bf16.mxu0 0
      %747 = vmatmul.mubr.bf16.gmra.mxu0 %v653
      %v748 = vpop.f32.mrf.mxu0
      %v749 = vadd.f32 0.0, %v748
      %v750 = vpop.f32.mrf.mxu0
      %v751 = vpop.f32.mrf.mxu0
      %v752 = vadd.f32 0.0, %v751
      %v753 = vpop.f32.mrf.mxu0
      %754 = vmatprep.mubr.bf16.mxu0 0
      %755 = vmatmul.mubr.bf16.gmra.mxu0 %v656
      %v756 = vpop.f32.mrf.mxu0
      %v757 = vadd.f32 0.0, %v756
      %v758 = vpop.f32.mrf.mxu0
      %v759 = vpop.f32.mrf.mxu0
      %v760 = vadd.f32 0.0, %v759
      %v761 = vpop.f32.mrf.mxu0
      %762 = vmatprep.mubr.bf16.mxu0 0
      %763 = vmatmul.mubr.bf16.gmra.mxu0 %v659
      %v764 = vpop.f32.mrf.mxu0
      %v765 = vadd.f32 0.0, %v764
      %v766 = vpop.f32.mrf.mxu0
      %v767 = vpop.f32.mrf.mxu0
      %v768 = vadd.f32 0.0, %v767
      %v769 = vpop.f32.mrf.mxu0
      %770 = vmatprep.mubr.bf16.mxu0 0
      %771 = vmatmul.mubr.bf16.gmra.mxu0 %v662
      %v772 = vpop.f32.mrf.mxu0
      %v773 = vadd.f32 0.0, %v772
      %v774 = vpop.f32.mrf.mxu0
      %v775 = vpop.f32.mrf.mxu0
      %v776 = vadd.f32 0.0, %v775
      %v777 = vpop.f32.mrf.mxu0
      %778 = vmatprep.mubr.bf16.mxu0 0
      %779 = vmatmul.mubr.bf16.gmra.mxu0 %v665
      %v780 = vpop.f32.mrf.mxu0
      %v781 = vadd.f32 0.0, %v780
      %v782 = vpop.f32.mrf.mxu0
      %v783 = vpop.f32.mrf.mxu0
      %v784 = vadd.f32 0.0, %v783
      %v785 = vpop.f32.mrf.mxu0
      %786 = vmatprep.mubr.bf16.mxu0 0
      %787 = vmatmul.mubr.bf16.gmra.mxu0 %v668
      %v788 = vpop.f32.mrf.mxu0
      %v789 = vadd.f32 0.0, %v788
      %v790 = vpop.f32.mrf.mxu0
      %v791 = vpop.f32.mrf.mxu0
      %v792 = vadd.f32 0.0, %v791
      %v793 = vpop.f32.mrf.mxu0
      %794 = vmatprep.mubr.bf16.mxu0 0
      %795 = vmatmul.mubr.bf16.gmra.mxu0 %v671
      %v796 = vpop.f32.mrf.mxu0
      %v797 = vadd.f32 0.0, %v796
      %v798 = vpop.f32.mrf.mxu0
      %v799 = vpop.f32.mrf.mxu0
      %v800 = vadd.f32 0.0, %v799
      %v801 = vpop.f32.mrf.mxu0
      %802 = vmatprep.mubr.bf16.mxu0 0
      %803 = vmatmul.mubr.bf16.gmra.mxu0 %v674
      %v804 = vpop.f32.mrf.mxu0
      %v805 = vadd.f32 0.0, %v804
      %v806 = vpop.f32.mrf.mxu0
      %v807 = vpop.f32.mrf.mxu0
      %v808 = vadd.f32 0.0, %v807
      %v809 = vpop.f32.mrf.mxu0
      %810 = vmatprep.mubr.bf16.mxu0 0
      %811 = vmatmul.mubr.bf16.gmra.mxu0 %v677
      %v812 = vpop.f32.mrf.mxu0
      %v813 = vadd.f32 0.0, %v812
      %v814 = vpop.f32.mrf.mxu0
      %v815 = vpop.f32.mrf.mxu0
      %v816 = vadd.f32 0.0, %v815
      %v817 = vpop.f32.mrf.mxu0
      %818 = vmatprep.mubr.bf16.mxu0 0
      %819 = vmatmul.mubr.bf16.gmra.mxu0 %v680
      %v820 = vpop.f32.mrf.mxu0
      %v821 = vadd.f32 0.0, %v820
      %v822 = vpop.f32.mrf.mxu0
      %v823 = vpop.f32.mrf.mxu0
      %v824 = vadd.f32 0.0, %v823
      %v825 = vpop.f32.mrf.mxu0
      %826 = vmatprep.mubr.bf16.mxu0 0
      %827 = vmatmul.mubr.bf16.gmra.mxu0 %v683
      %v828 = vpop.f32.mrf.mxu0
      %v829 = vadd.f32 0.0, %v828
      %v830 = vpop.f32.mrf.mxu0
      %v831 = vpop.f32.mrf.mxu0
      %v832 = vadd.f32 0.0, %v831
      %v833 = vpop.f32.mrf.mxu0
      %834 = vmatprep.mubr.bf16.mxu0 0
      %835 = vmatmul.mubr.bf16.gmra.mxu0 %v686
      %v836 = vpop.f32.mrf.mxu0
      %v837 = vadd.f32 0.0, %v836
      %v838 = vpop.f32.mrf.mxu0
      %v839 = vpop.f32.mrf.mxu0
      %v840 = vadd.f32 0.0, %v839
      %v841 = vpop.f32.mrf.mxu0
      %842 = vmatprep.mubr.bf16.mxu0 0
      %843 = vmatmul.mubr.bf16.gmra.mxu0 %v689
      %v844 = vpop.f32.mrf.mxu0
      %v845 = vadd.f32 0.0, %v844
      %v846 = vpop.f32.mrf.mxu0
      %v847 = vpop.f32.mrf.mxu0
      %v848 = vadd.f32 0.0, %v847
      %v849 = vpop.f32.mrf.mxu0
      %850 = vmatprep.mubr.bf16.mxu0 0
      %851 = vmatmul.mubr.bf16.gmra.mxu0 %v692
      %v852 = vpop.f32.mrf.mxu0
      %v853 = vadd.f32 0.0, %v852
      %v854 = vpop.f32.mrf.mxu0
      %v855 = vpop.f32.mrf.mxu0
      %v856 = vadd.f32 0.0, %v855
      %v857 = vpop.f32.mrf.mxu0
      %858 = vdwg.mxu0
      %v860 = vsel %vm645, %v469, 0
      %v863 = vsel %vm645, %v470, 0
      %v866 = vsel %vm645, %v471, 0
      %v869 = vsel %vm645, %v472, 0
      %v872 = vsel %vm645, %v473, 0
      %v875 = vsel %vm645, %v474, 0
      %v878 = vsel %vm645, %v475, 0
      %v881 = vsel %vm645, %v476, 0
      %v884 = vsel %vm645, %v477, 0
      %v887 = vsel %vm645, %v478, 0
      %v890 = vsel %vm645, %v479, 0
      %v893 = vsel %vm645, %v480, 0
      %v896 = vsel %vm645, %v481, 0
      %v899 = vsel %vm645, %v482, 0
      %v902 = vsel %vm645, %v483, 0
      %v905 = vsel %vm645, %v484, 0
      %v908 = vsel %vm694, %v485, 0
      %910 = vmatprep.subr.bf16.mxu0 0
      %911 = vmatpush1.bf16.msra.mxu0 0
      %912 = vmatprep.subr.bf16.mxu0 0
      %913 = vmatpush1.bf16.msra.mxu0 0
      %914 = vmatprep.subr.bf16.mxu0 0
      %915 = vmatpush1.bf16.msra.mxu0 0
      %916 = vmatprep.subr.bf16.mxu0 0
      %917 = vmatpush1.bf16.msra.mxu0 0
      %918 = vmatprep.subr.bf16.mxu0 0
      %919 = vmatpush1.bf16.msra.mxu0 0
      %920 = vmatprep.subr.bf16.mxu0 0
      %921 = vmatpush1.bf16.msra.mxu0 0
      %922 = vmatprep.subr.bf16.mxu0 0
      %923 = vmatpush1.bf16.msra.mxu0 0
      %924 = vmatprep.subr.bf16.mxu0 0
      %925 = vmatpush1.bf16.msra.mxu0 %v908
      %926 = vmatprep.subr.bf16.mxu0 0
      %927 = vmatpush2.bf16.msra.mxu0 0
      %928 = vmatprep.subr.bf16.mxu0 0
      %929 = vmatpush2.bf16.msra.mxu0 0
      %930 = vmatprep.subr.bf16.mxu0 0
      %931 = vmatpush2.bf16.msra.mxu0 0
      %932 = vmatprep.subr.bf16.mxu0 0
      %933 = vmatpush2.bf16.msra.mxu0 0
      %934 = vmatprep.subr.bf16.mxu0 0
      %935 = vmatpush2.bf16.msra.mxu0 0
      %936 = vmatprep.subr.bf16.mxu0 0
      %937 = vmatpush2.bf16.msra.mxu0 0
      %938 = vmatprep.subr.bf16.mxu0 0
      %939 = vmatpush2.bf16.msra.mxu0 0
      %940 = vmatprep.subr.bf16.mxu0 0
      %941 = vmatpush2.bf16.msra.mxu0 0
      %942 = vmatprep.mubr.bf16.mxu0 0
      %943 = vmatmul.mubr.bf16.gmra.mxu0 %v860
      %v944 = vpop.f32.mrf.mxu0
      %v945 = vadd.f32 %v733, %v944
      %v946 = vpop.f32.mrf.mxu0
      %v947 = vpop.f32.mrf.mxu0
      %v948 = vadd.f32 %v736, %v947
      %v949 = vpop.f32.mrf.mxu0
      %950 = vmatprep.mubr.bf16.mxu0 0
      %951 = vmatmul.mubr.bf16.gmra.mxu0 %v863
      %v952 = vpop.f32.mrf.mxu0
      %v953 = vadd.f32 %v741, %v952
      %v954 = vpop.f32.mrf.mxu0
      %v955 = vpop.f32.mrf.mxu0
      %v956 = vadd.f32 %v744, %v955
      %v957 = vpop.f32.mrf.mxu0
      %958 = vmatprep.mubr.bf16.mxu0 0
      %959 = vmatmul.mubr.bf16.gmra.mxu0 %v866
      %v960 = vpop.f32.mrf.mxu0
      %v961 = vadd.f32 %v749, %v960
      %v962 = vpop.f32.mrf.mxu0
      %v963 = vpop.f32.mrf.mxu0
      %v964 = vadd.f32 %v752, %v963
      %v965 = vpop.f32.mrf.mxu0
      %966 = vmatprep.mubr.bf16.mxu0 0
      %967 = vmatmul.mubr.bf16.gmra.mxu0 %v869
      %v968 = vpop.f32.mrf.mxu0
      %v969 = vadd.f32 %v757, %v968
      %v970 = vpop.f32.mrf.mxu0
      %v971 = vpop.f32.mrf.mxu0
      %v972 = vadd.f32 %v760, %v971
      %v973 = vpop.f32.mrf.mxu0
      %974 = vmatprep.mubr.bf16.mxu0 0
      %975 = vmatmul.mubr.bf16.gmra.mxu0 %v872
      %v976 = vpop.f32.mrf.mxu0
      %v977 = vadd.f32 %v765, %v976
      %v978 = vpop.f32.mrf.mxu0
      %v979 = vpop.f32.mrf.mxu0
      %v980 = vadd.f32 %v768, %v979
      %v981 = vpop.f32.mrf.mxu0
      %982 = vmatprep.mubr.bf16.mxu0 0
      %983 = vmatmul.mubr.bf16.gmra.mxu0 %v875
      %v984 = vpop.f32.mrf.mxu0
      %v985 = vadd.f32 %v773, %v984
      %v986 = vpop.f32.mrf.mxu0
      %v987 = vpop.f32.mrf.mxu0
      %v988 = vadd.f32 %v776, %v987
      %v989 = vpop.f32.mrf.mxu0
      %990 = vmatprep.mubr.bf16.mxu0 0
      %991 = vmatmul.mubr.bf16.gmra.mxu0 %v878
      %v992 = vpop.f32.mrf.mxu0
      %v993 = vadd.f32 %v781, %v992
      %v994 = vpop.f32.mrf.mxu0
      %v995 = vpop.f32.mrf.mxu0
      %v996 = vadd.f32 %v784, %v995
      %v997 = vpop.f32.mrf.mxu0
      %998 = vmatprep.mubr.bf16.mxu0 0
      %999 = vmatmul.mubr.bf16.gmra.mxu0 %v881
      %v1000 = vpop.f32.mrf.mxu0
      %v1001 = vadd.f32 %v789, %v1000
      %v1002 = vpop.f32.mrf.mxu0
      %v1003 = vpop.f32.mrf.mxu0
      %v1004 = vadd.f32 %v792, %v1003
      %v1005 = vpop.f32.mrf.mxu0
      %1006 = vmatprep.mubr.bf16.mxu0 0
      %1007 = vmatmul.mubr.bf16.gmra.mxu0 %v884
      %v1008 = vpop.f32.mrf.mxu0
      %v1009 = vadd.f32 %v797, %v1008
      %v1010 = vpop.f32.mrf.mxu0
      %v1011 = vpop.f32.mrf.mxu0
      %v1012 = vadd.f32 %v800, %v1011
      %v1013 = vpop.f32.mrf.mxu0
      %1014 = vmatprep.mubr.bf16.mxu0 0
      %1015 = vmatmul.mubr.bf16.gmra.mxu0 %v887
      %v1016 = vpop.f32.mrf.mxu0
      %v1017 = vadd.f32 %v805, %v1016
      %v1018 = vpop.f32.mrf.mxu0
      %v1019 = vpop.f32.mrf.mxu0
      %v1020 = vadd.f32 %v808, %v1019
      %v1021 = vpop.f32.mrf.mxu0
      %1022 = vmatprep.mubr.bf16.mxu0 0
      %1023 = vmatmul.mubr.bf16.gmra.mxu0 %v890
      %v1024 = vpop.f32.mrf.mxu0
      %v1025 = vadd.f32 %v813, %v1024
      %v1026 = vpop.f32.mrf.mxu0
      %v1027 = vpop.f32.mrf.mxu0
      %v1028 = vadd.f32 %v816, %v1027
      %v1029 = vpop.f32.mrf.mxu0
      %1030 = vmatprep.mubr.bf16.mxu0 0
      %1031 = vmatmul.mubr.bf16.gmra.mxu0 %v893
      %v1032 = vpop.f32.mrf.mxu0
      %v1033 = vadd.f32 %v821, %v1032
      %v1034 = vpop.f32.mrf.mxu0
      %v1035 = vpop.f32.mrf.mxu0
      %v1036 = vadd.f32 %v824, %v1035
      %v1037 = vpop.f32.mrf.mxu0
      %1038 = vmatprep.mubr.bf16.mxu0 0
      %1039 = vmatmul.mubr.bf16.gmra.mxu0 %v896
      %v1040 = vpop.f32.mrf.mxu0
      %v1041 = vadd.f32 %v829, %v1040
      %v1042 = vpop.f32.mrf.mxu0
      %v1043 = vpop.f32.mrf.mxu0
      %v1044 = vadd.f32 %v832, %v1043
      %v1045 = vpop.f32.mrf.mxu0
      %1046 = vmatprep.mubr.bf16.mxu0 0
      %1047 = vmatmul.mubr.bf16.gmra.mxu0 %v899
      %v1048 = vpop.f32.mrf.mxu0
      %v1049 = vadd.f32 %v837, %v1048
      %v1050 = vpop.f32.mrf.mxu0
      %v1051 = vpop.f32.mrf.mxu0
      %v1052 = vadd.f32 %v840, %v1051
      %v1053 = vpop.f32.mrf.mxu0
      %1054 = vmatprep.mubr.bf16.mxu0 0
      %1055 = vmatmul.mubr.bf16.gmra.mxu0 %v902
      %v1056 = vpop.f32.mrf.mxu0
      %v1057 = vadd.f32 %v845, %v1056
      %v1058 = vpop.f32.mrf.mxu0
      %v1059 = vpop.f32.mrf.mxu0
      %v1060 = vadd.f32 %v848, %v1059
      %v1061 = vpop.f32.mrf.mxu0
      %1062 = vmatprep.mubr.bf16.mxu0 0
      %1063 = vmatmul.mubr.bf16.gmra.mxu0 %v905
      %v1064 = vpop.f32.mrf.mxu0
      %v1065 = vadd.f32 %v853, %v1064
      %v1066 = vpop.f32.mrf.mxu0
      %v1067 = vpop.f32.mrf.mxu0
      %v1068 = vadd.f32 %v856, %v1067
      %v1069 = vpop.f32.mrf.mxu0
      %1070 = vdwg.mxu0
      %vm1071 = vcmask 64512
      %1072 = vst.msk [vmem:[%s325] sm:$0xff] %vm1071, %v945
      %1073 = vst.msk [vmem:[%s325 + $0x8] sm:$0xff] %vm1071, %v948
      %1074 = vst.msk [vmem:[%s325 + $0x10] sm:$0xff] %vm1071, %v953
      %1075 = vst.msk [vmem:[%s325 + $0x18] sm:$0xff] %vm1071, %v956
      %1076 = vst.msk [vmem:[%s325 + $0x20] sm:$0xff] %vm1071, %v961
      %1077 = vst.msk [vmem:[%s325 + $0x28] sm:$0xff] %vm1071, %v964
      %1078 = vst.msk [vmem:[%s325 + $0x30] sm:$0xff] %vm1071, %v969
      %1079 = vst.msk [vmem:[%s325 + $0x38] sm:$0xff] %vm1071, %v972
      %1080 = vst.msk [vmem:[%s325 + $0x40] sm:$0xff] %vm1071, %v977
      %1081 = vst.msk [vmem:[%s325 + $0x48] sm:$0xff] %vm1071, %v980
      %1082 = vst.msk [vmem:[%s325 + $0x50] sm:$0xff] %vm1071, %v985
      %1083 = vst.msk [vmem:[%s325 + $0x58] sm:$0xff] %vm1071, %v988
      %1084 = vst.msk [vmem:[%s325 + $0x60] sm:$0xff] %vm1071, %v993
      %1085 = vst.msk [vmem:[%s325 + $0x68] sm:$0xff] %vm1071, %v996
      %1086 = vst.msk [vmem:[%s325 + $0x70] sm:$0xff] %vm1071, %v1001
      %1087 = vst.msk [vmem:[%s325 + $0x78] sm:$0xff] %vm1071, %v1004
      %1088 = vst.msk [vmem:[%s325 + $0x80] sm:$0xff] %vm1071, %v1009
      %1089 = vst.msk [vmem:[%s325 + $0x88] sm:$0xff] %vm1071, %v1012
      %1090 = vst.msk [vmem:[%s325 + $0x90] sm:$0xff] %vm1071, %v1017
      %1091 = vst.msk [vmem:[%s325 + $0x98] sm:$0xff] %vm1071, %v1020
      %1092 = vst.msk [vmem:[%s325 + $0xa0] sm:$0xff] %vm1071, %v1025
      %1093 = vst.msk [vmem:[%s325 + $0xa8] sm:$0xff] %vm1071, %v1028
      %1094 = vst.msk [vmem:[%s325 + $0xb0] sm:$0xff] %vm1071, %v1033
      %1095 = vst.msk [vmem:[%s325 + $0xb8] sm:$0xff] %vm1071, %v1036
      %1096 = vst.msk [vmem:[%s325 + $0xc0] sm:$0xff] %vm1071, %v1041
      %1097 = vst.msk [vmem:[%s325 + $0xc8] sm:$0xff] %vm1071, %v1044
      %1098 = vst.msk [vmem:[%s325 + $0xd0] sm:$0xff] %vm1071, %v1049
      %1099 = vst.msk [vmem:[%s325 + $0xd8] sm:$0xff] %vm1071, %v1052
      %1100 = vst.msk [vmem:[%s325 + $0xe0] sm:$0xff] %vm1071, %v1057
      %1101 = vst.msk [vmem:[%s325 + $0xe8] sm:$0xff] %vm1071, %v1060
      %1102 = vst.msk [vmem:[%s325 + $0xf0] sm:$0xff] %vm1071, %v1065
      %1103 = vst.msk [vmem:[%s325 + $0xf8] sm:$0xff] %vm1071, %v1068
      %p1104 = scmp.lt.s32.totalorder %s19, 1
      %s1105 = scalar_select %p1104, %s19, 1
      %s1106 = smul.addr %s1105, 32
      %s1107 = smul.addr %s1106, 8
      %s1108 = scalar_lea.vmem %s8, %s1107
      // Predicated region
      $region53: #{residual_block_preact_nhwc.7} parent=51 // pred_check
        %p1109 = pneg %p215
      $region54: #{residual_block_preact_nhwc.7} parent=51 // pred_check_branch
        %1111 = sbr.rel (%p1109) target = $region56
      $region55: #{residual_block_preact_nhwc.7} parent=51 // pred_region
        _
      $region56: #{residual_block_preact_nhwc.7} parent=51 // pred_fallthru
        _
    $region52: #{residual_block_preact_nhwc.7} parent=5 // pred_fallthru
      _
    %p1112 = scmp.le.s32.totalorder 2, %s14
    // Predicated region
    $region57: #{residual_block_preact_nhwc.7} parent=5 // pred_check
      %p1113 = pneg %p1112
    $region58: #{residual_block_preact_nhwc.7} parent=5 // pred_check_branch
      %1115 = sbr.rel (%p1113) target = $region60
    $region59: #{residual_block_preact_nhwc.7} parent=5 // pred_region
      %s1116 = ssub.s32 %s14, 2
      // Predicated region
      $region61: #{residual_block_preact_nhwc.7} parent=59 // pred_check
        %p1117 = pneg %p221
      $region62: #{residual_block_preact_nhwc.7} parent=59 // pred_check_branch
        %1119 = sbr.rel (%p1117) target = $region64
      $region63: #{residual_block_preact_nhwc.7} parent=59 // pred_region
        %p1120 = scmp.lt.s32.totalorder %s20, 1
        %s1121 = scalar_select %p1120, %s20, 1
        %s1122 = smul.addr %s1121, 32
        %s1123 = smul.addr %s1122, 8
        %s1124 = scalar_lea.vmem %s8, %s1123
      $region64: #{residual_block_preact_nhwc.7} parent=59 // pred_fallthru
        _
    $region60: #{residual_block_preact_nhwc.7} parent=5 // pred_fallthru
      _
  $region6: #{residual_block_preact_nhwc.7} parent=0 // loop_footer
    %s18 = sadd.s32 1, %s14
  $region7: #{residual_block_preact_nhwc.7} parent=0 // loop_footer_branch
    %13 = sbr.rel target = $region3
  $region8: #{residual_block_preact_nhwc.7} parent=0 // loop_exit
    _

// kernel: residual_block_preact_nhwc.6
$region0: #{residual_block_preact_nhwc.6}
  #allocation0 [shape = 'u32[]', space=smem, size = 0x4, offset = 0x4, fixed_abs, tag = 'smem constant byte address 0x4 - core index']
  #allocation1 [shape = 'u32[144,128]{1,0:T(1,128)}', space=vmem, size = 0x12000, scoped, tag = 'internal scratch']
  %s0 = inlined_call_operand.vmem [shape: f32[2,256,4], index: 0, kind: input, shape index: {}]
  %s1 = inlined_call_operand.vmem [shape: f32[1,4], index: 1, kind: input, shape index: {}]
  %s2 = inlined_call_operand.vmem [shape: f32[1,4], index: 2, kind: input, shape index: {}]
  %s3 = inlined_call_operand.vmem [shape: bf16[36,4], index: 3, kind: input, shape index: {}]
  %s4 = inlined_call_operand.vmem [shape: f32[2,256,4], index: 4, kind: output, shape index: {0}]
  %s5 = inlined_call_operand.vmem [shape: f32[2,8,4], index: 5, kind: output, shape index: {1}]
  %6 = xla_tuple %s4, %s5
  %s7 = sld [smem:[#allocation0]]
  $region57: #{residual_block_preact_nhwc.6} parent=0
    _
  %s9 = ssub.s32 1, %s7
  %s10 = scalar_select 0, %s9, %s7
  loop: start=0, step=1, limit=4
  $region2: #{residual_block_preact_nhwc.6} parent=0 // loop_pre_header
    _
  $region3: #{residual_block_preact_nhwc.6} parent=0 // loop_header
    %s12 = sphi 0, %s16
    %p13 = scmp.ge.s32.totalorder %s12, 4
    %s22 = sphi 0, %s24
    %s25 = sphi 0, %s22
    %s26 = sphi 0, %s25
    %s42 = sphi 0, %s26
    %s46 = sphi 0, %s46
    %s48 = sphi 0, %s46
    %s49 = sphi 0, %s48
    %s63 = sphi 0, %s49
    %s67 = sphi 0, %s67
    %s69 = sphi 0, %s67
    %s70 = sphi 0, %s69
    %s84 = sphi 0, %s70
    %s88 = sphi 0, %s88
    %s90 = sphi 0, %s88
    %s91 = sphi 0, %s90
    %s105 = sphi 0, %s91
    %s111 = sphi 0, %s113
    %s114 = sphi 0, %s111
    %s115 = sphi 0, %s114
    %s131 = sphi 0, %s115
    %s137 = sphi 0, %s139
    %s140 = sphi 0, %s137
    %s141 = sphi 0, %s140
    %s157 = sphi 0, %s141
  $region4: #{residual_block_preact_nhwc.6} parent=0 // loop_header_branch
    %15 = sbr.rel (%p13) target = $region8
  $region5: #{residual_block_preact_nhwc.6} parent=0 // loop_body
    %s17 = ssub.s32 %s12, 1
    %s18 = ssub.s32 %s12, 2
    %s19 = sadd.s32 %s12, 1
    %s20 = ssub.s32 %s12, %s19
    %p21 = scmp.eq.s32.totalorder %s20, 0
    %s23 = sadd.s32 %s22, 1
    %s24 = scalar_select %p21, %s22, %s23
    %p27 = pneg %p21
    %p28 = scmp.eq.s32.totalorder %s12, 1
    %p29 = por %p27, %p28
    %p30 = scmp.ne.s32.totalorder %s22, %s25
    %p31 = scmp.eq.s32.totalorder %s12, 0
    %p32 = por %p30, %p31
    %p33 = scmp.ne.s32.totalorder %s22, %s25
    %p34 = scmp.eq.s32.totalorder %s17, 1
    %p35 = por %p33, %p34
    %p36 = scmp.ne.s32.totalorder %s25, %s26
    %p37 = scmp.eq.s32.totalorder %s17, 0
    %p38 = por %p36, %p37
    %p39 = scmp.ne.s32.totalorder %s25, %s26
    %p40 = scmp.eq.s32.totalorder %s18, 1
    %p41 = por %p39, %p40
    %p43 = scmp.ne.s32.totalorder %s26, %s42
    %p44 = scmp.eq.s32.totalorder %s18, 0
    %p45 = por %p43, %p44
    %s47 = sadd.s32 %s46, 1
    %p50 = scmp.eq.s32.totalorder %s12, 1
    %p51 = scmp.ne.s32.totalorder %s46, %s48
    %p52 = scmp.eq.s32.totalorder %s12, 0
    %p53 = por %p51, %p52
    %p54 = scmp.ne.s32.totalorder %s46, %s48
    %p55 = scmp.eq.s32.totalorder %s17, 1
    %p56 = por %p54, %p55
    %p57 = scmp.ne.s32.totalorder %s48, %s49
    %p58 = scmp.eq.s32.totalorder %s17, 0
    %p59 = por %p57, %p58
    %p60 = scmp.ne.s32.totalorder %s48, %s49
    %p61 = scmp.eq.s32.totalorder %s18, 1
    %p62 = por %p60, %p61
    %p64 = scmp.ne.s32.totalorder %s49, %s63
    %p65 = scmp.eq.s32.totalorder %s18, 0
    %p66 = por %p64, %p65
    %s68 = sadd.s32 %s67, 1
    %p71 = scmp.eq.s32.totalorder %s12, 1
    %p72 = scmp.ne.s32.totalorder %s67, %s69
    %p73 = scmp.eq.s32.totalorder %s12, 0
    %p74 = por %p72, %p73
    %p75 = scmp.ne.s32.totalorder %s67, %s69
    %p76 = scmp.eq.s32.totalorder %s17, 1
    %p77 = por %p75, %p76
    %p78 = scmp.ne.s32.totalorder %s69, %s70
    %p79 = scmp.eq.s32.totalorder %s17, 0
    %p80 = por %p78, %p79
    %p81 = scmp.ne.s32.totalorder %s69, %s70
    %p82 = scmp.eq.s32.totalorder %s18, 1
    %p83 = por %p81, %p82
    %p85 = scmp.ne.s32.totalorder %s70, %s84
    %p86 = scmp.eq.s32.totalorder %s18, 0
    %p87 = por %p85, %p86
    %s89 = sadd.s32 %s88, 1
    %p92 = scmp.eq.s32.totalorder %s12, 1
    %p93 = scmp.ne.s32.totalorder %s88, %s90
    %p94 = scmp.eq.s32.totalorder %s12, 0
    %p95 = por %p93, %p94
    %p96 = scmp.ne.s32.totalorder %s88, %s90
    %p97 = scmp.eq.s32.totalorder %s17, 1
    %p98 = por %p96, %p97
    %p99 = scmp.ne.s32.totalorder %s90, %s91
    %p100 = scmp.eq.s32.totalorder %s17, 0
    %p101 = por %p99, %p100
    %p102 = scmp.ne.s32.totalorder %s90, %s91
    %p103 = scmp.eq.s32.totalorder %s18, 1
    %p104 = por %p102, %p103
    %p106 = scmp.ne.s32.totalorder %s91, %s105
    %p107 = scmp.eq.s32.totalorder %s18, 0
    %p108 = por %p106, %p107
    %s109 = ssub.s32 %s12, %s19
    %p110 = scmp.eq.s32.totalorder %s109, 0
    %s112 = sadd.s32 %s111, 1
    %s113 = scalar_select %p110, %s111, %s112
    %p116 = pneg %p110
    %p117 = scmp.eq.s32.totalorder %s12, 1
    %p118 = por %p116, %p117
    %p119 = scmp.ne.s32.totalorder %s111, %s114
    %p120 = scmp.eq.s32.totalorder %s12, 0
    %p121 = por %p119, %p120
    %p122 = scmp.ne.s32.totalorder %s111, %s114
    %p123 = scmp.eq.s32.totalorder %s17, 1
    %p124 = por %p122, %p123
    %p125 = scmp.ne.s32.totalorder %s114, %s115
    %p126 = scmp.eq.s32.totalorder %s17, 0
    %p127 = por %p125, %p126
    %p128 = scmp.ne.s32.totalorder %s114, %s115
    %p129 = scmp.eq.s32.totalorder %s18, 1
    %p130 = por %p128, %p129
    %p132 = scmp.ne.s32.totalorder %s115, %s131
    %p133 = scmp.eq.s32.totalorder %s18, 0
    %p134 = por %p132, %p133
    %s135 = ssub.s32 %s12, %s19
    %p136 = scmp.eq.s32.totalorder %s135, 0
    %s138 = sadd.s32 %s137, 1
    %s139 = scalar_select %p136, %s137, %s138
    %p142 = pneg %p136
    %p143 = scmp.eq.s32.totalorder %s12, 1
    %p144 = por %p142, %p143
    %p145 = scmp.ne.s32.totalorder %s137, %s140
    %p146 = scmp.eq.s32.totalorder %s12, 0
    %p147 = por %p145, %p146
    %p148 = scmp.ne.s32.totalorder %s137, %s140
    %p149 = scmp.eq.s32.totalorder %s17, 1
    %p150 = por %p148, %p149
    %p151 = scmp.ne.s32.totalorder %s140, %s141
    %p152 = scmp.eq.s32.totalorder %s17, 0
    %p153 = por %p151, %p152
    %p154 = scmp.ne.s32.totalorder %s140, %s141
    %p155 = scmp.eq.s32.totalorder %s18, 1
    %p156 = por %p154, %p155
    %p158 = scmp.ne.s32.totalorder %s141, %s157
    %p159 = scmp.eq.s32.totalorder %s18, 0
    %p160 = por %p158, %p159
    %p161 = scmp.le.s32.totalorder 1, %s12
    %p162 = scmp.lt.s32.totalorder %s12, 3
    %p163 = pnand %p161, %p162
    %p164 = pneg %p163
    // Predicated region
    $region9: #{residual_block_preact_nhwc.6} parent=5 // pred_check
      _
    $region10: #{residual_block_preact_nhwc.6} parent=5 // pred_check_branch
      %166 = sbr.rel (%p163) target = $region12
    $region11: #{residual_block_preact_nhwc.6} parent=5 // pred_region
      %s167 = ssub.s32 %s12, 1
      // Predicated region
      $region13: #{residual_block_preact_nhwc.6} parent=11 // pred_check
        %p168 = pneg %p59
      $region14: #{residual_block_preact_nhwc.6} parent=11 // pred_check_branch
        %170 = sbr.rel (%p168) target = $region16
      $region15: #{residual_block_preact_nhwc.6} parent=11 // pred_region
        _
      $region16: #{residual_block_preact_nhwc.6} parent=11 // pred_fallthru
        _
      // Predicated region
      $region17: #{residual_block_preact_nhwc.6} parent=11 // pred_check
        %p171 = pneg %p80
      $region18: #{residual_block_preact_nhwc.6} parent=11 // pred_check_branch
        %173 = sbr.rel (%p171) target = $region20
      $region19: #{residual_block_preact_nhwc.6} parent=11 // pred_region
        _
      $region20: #{residual_block_preact_nhwc.6} parent=11 // pred_fallthru
        _
      // Predicated region
      $region21: #{residual_block_preact_nhwc.6} parent=11 // pred_check
        %p174 = pneg %p101
      $region22: #{residual_block_preact_nhwc.6} parent=11 // pred_check_branch
        %176 = sbr.rel (%p174) target = $region24
      $region23: #{residual_block_preact_nhwc.6} parent=11 // pred_region
        _
      $region24: #{residual_block_preact_nhwc.6} parent=11 // pred_fallthru
        _
    $region12: #{residual_block_preact_nhwc.6} parent=5 // pred_fallthru
      _
    %p177 = scmp.lt.s32.totalorder %s12, 2
    // Predicated region
    $region25: #{residual_block_preact_nhwc.6} parent=5 // pred_check
      %p178 = pneg %p177
    $region26: #{residual_block_preact_nhwc.6} parent=5 // pred_check_branch
      %180 = sbr.rel (%p178) target = $region28
    $region27: #{residual_block_preact_nhwc.6} parent=5 // pred_region
      // Predicated region
      $region29: #{residual_block_preact_nhwc.6} parent=27 // pred_check
        %p181 = pneg %p32
      $region30: #{residual_block_preact_nhwc.6} parent=27 // pred_check_branch
        %183 = sbr.rel (%p181) target = $region32
      $region31: #{residual_block_preact_nhwc.6} parent=27 // pred_region
        %p184 = scmp.lt.s32.totalorder %s12, 1
        %s185 = scalar_select %p184, %s12, 1
        %s186 = smul.addr %s185, 32
        %s187 = smul.addr %s186, 8
        %s188 = scalar_lea.vmem %s0, %s187
      $region32: #{residual_block_preact_nhwc.6} parent=27 // pred_fallthru
        _
    $region28: #{residual_block_preact_nhwc.6} parent=5 // pred_fallthru
      _
    %p189 = scmp.le.s32.totalorder 1, %s12
    %p190 = scmp.lt.s32.totalorder %s12, 3
    %p191 = pnand %p189, %p190
    %p192 = pneg %p191
    // Predicated region
    $region33: #{residual_block_preact_nhwc.6} parent=5 // pred_check
      _
    $region34: #{residual_block_preact_nhwc.6} parent=5 // pred_check_branch
      %194 = sbr.rel (%p191) target = $region36
    $region35: #{residual_block_preact_nhwc.6} parent=5 // pred_region
      %s195 = ssub.s32 %s12, 1
      %p196 = scmp.lt.s32.totalorder %s17, 1
      %s197 = scalar_select %p196, %s17, 1
      %s198 = smul.addr %s197, 32
      %s199 = smul.addr %s198, 8
      %s200 = scalar_lea.vmem %s0, %s199
      %p201 = pneg %p38
      %p202 = pneg %p35
      %p203 = pneg %p59
      %p204 = pneg %p56
      %p205 = pneg %p80
      %p206 = pneg %p77
      %p207 = pneg %p101
      %p208 = pneg %p98
      %p209 = pneg %p127
      %p210 = pneg %p124
      %p211 = scmp.lt.s32.totalorder %s17, 1
      %s212 = scalar_select %p211, %s17, 1
      %s213 = smul.addr %s212, 32
      %s214 = smul.addr %s213, 8
      %s215 = scalar_lea.vmem %s4, %s214
      %p216 = pneg %p153
      %p217 = pneg %p150
      %p218 = scmp.lt.s32.totalorder %s17, 1
      %s219 = scalar_select %p218, %s17, 1
      %s220 = smul.addr %s219, 8
      %s221 = scalar_lea.vmem %s5, %s220
      %p222 = scmp.lt.s32.totalorder %s17, 1
      %s223 = scalar_select %p222, %s17, 1
      %s224 = smul.addr %s223, 32
      %s225 = smul.addr %s224, 8
      %s226 = scalar_lea.vmem %s0, %s225
      %p227 = scmp.lt.s32.totalorder %s17, 1
      %s228 = scalar_select %p227, %s17, 1
      %s229 = smul.addr %s228, 32
      %s230 = smul.addr %s229, 8
      %s231 = scalar_lea.vmem %s4, %s230
      %p232 = scmp.lt.s32.totalorder %s17, 1
      %s233 = scalar_select %p232, %s17, 1
      %s234 = smul.addr %s233, 8
      %s235 = scalar_lea.vmem %s5, %s234
      %v237 = vld [vmem:[%s226] sm:$0xff]
      %v238 = vld [vmem:[%s226 + $0x8] sm:$0xff]
      %v239 = vld [vmem:[%s226 + $0x10] sm:$0xff]
      %v240 = vld [vmem:[%s226 + $0x18] sm:$0xff]
      %v241 = vld [vmem:[%s226 + $0x20] sm:$0xff]
      %v242 = vld [vmem:[%s226 + $0x28] sm:$0xff]
      %v243 = vld [vmem:[%s226 + $0x30] sm:$0xff]
      %v244 = vld [vmem:[%s226 + $0x38] sm:$0xff]
      %v245 = vld [vmem:[%s226 + $0x40] sm:$0xff]
      %v246 = vld [vmem:[%s226 + $0x48] sm:$0xff]
      %v247 = vld [vmem:[%s226 + $0x50] sm:$0xff]
      %v248 = vld [vmem:[%s226 + $0x58] sm:$0xff]
      %v249 = vld [vmem:[%s226 + $0x60] sm:$0xff]
      %v250 = vld [vmem:[%s226 + $0x68] sm:$0xff]
      %v251 = vld [vmem:[%s226 + $0x70] sm:$0xff]
      %v252 = vld [vmem:[%s226 + $0x78] sm:$0xff]
      %v253 = vld [vmem:[%s226 + $0x80] sm:$0xff]
      %v254 = vld [vmem:[%s226 + $0x88] sm:$0xff]
      %v255 = vld [vmem:[%s226 + $0x90] sm:$0xff]
      %v256 = vld [vmem:[%s226 + $0x98] sm:$0xff]
      %v257 = vld [vmem:[%s226 + $0xa0] sm:$0xff]
      %v258 = vld [vmem:[%s226 + $0xa8] sm:$0xff]
      %v259 = vld [vmem:[%s226 + $0xb0] sm:$0xff]
      %v260 = vld [vmem:[%s226 + $0xb8] sm:$0xff]
      %v261 = vld [vmem:[%s226 + $0xc0] sm:$0xff]
      %v262 = vld [vmem:[%s226 + $0xc8] sm:$0xff]
      %v263 = vld [vmem:[%s226 + $0xd0] sm:$0xff]
      %v264 = vld [vmem:[%s226 + $0xd8] sm:$0xff]
      %v265 = vld [vmem:[%s226 + $0xe0] sm:$0xff]
      %v266 = vld [vmem:[%s226 + $0xe8] sm:$0xff]
      %v267 = vld [vmem:[%s226 + $0xf0] sm:$0xff]
      %v268 = vld [vmem:[%s226 + $0xf8] sm:$0xff]
      %v269 = vld [vmem:[%s1] sm:$0x1]
      %v271 = vlaneseq
      %v272 = vshrl.u32 %v271, 7
      %v273 = vsub.s32 0, %v272
      %v274 = vrot.slane %v269, %v273
      %v276 = vmul.f32 %v237, %v274
      %v277 = vmul.f32 %v238, %v274
      %v278 = vmul.f32 %v239, %v274
      %v279 = vmul.f32 %v240, %v274
      %v280 = vmul.f32 %v241, %v274
      %v281 = vmul.f32 %v242, %v274
      %v282 = vmul.f32 %v243, %v274
      %v283 = vmul.f32 %v244, %v274
      %v284 = vmul.f32 %v245, %v274
      %v285 = vmul.f32 %v246, %v274
      %v286 = vmul.f32 %v247, %v274
      %v287 = vmul.f32 %v248, %v274
      %v288 = vmul.f32 %v249, %v274
      %v289 = vmul.f32 %v250, %v274
      %v290 = vmul.f32 %v251, %v274
      %v291 = vmul.f32 %v252, %v274
      %v292 = vmul.f32 %v253, %v274
      %v293 = vmul.f32 %v254, %v274
      %v294 = vmul.f32 %v255, %v274
      %v295 = vmul.f32 %v256, %v274
      %v296 = vmul.f32 %v257, %v274
      %v297 = vmul.f32 %v258, %v274
      %v298 = vmul.f32 %v259, %v274
      %v299 = vmul.f32 %v260, %v274
      %v300 = vmul.f32 %v261, %v274
      %v301 = vmul.f32 %v262, %v274
      %v302 = vmul.f32 %v263, %v274
      %v303 = vmul.f32 %v264, %v274
      %v304 = vmul.f32 %v265, %v274
      %v305 = vmul.f32 %v266, %v274
      %v306 = vmul.f32 %v267, %v274
      %v307 = vmul.f32 %v268, %v274
      %v308 = vld [vmem:[%s2] sm:$0x1]
      %v310 = vlaneseq
      %v311 = vshrl.u32 %v310, 7
      %v312 = vsub.s32 0, %v311
      %v313 = vrot.slane %v308, %v312
      %v315 = vadd.f32 %v276, %v313
      %v316 = vadd.f32 %v277, %v313
      %v317 = vadd.f32 %v278, %v313
      %v318 = vadd.f32 %v279, %v313
      %v319 = vadd.f32 %v280, %v313
      %v320 = vadd.f32 %v281, %v313
      %v321 = vadd.f32 %v282, %v313
      %v322 = vadd.f32 %v283, %v313
      %v323 = vadd.f32 %v284, %v313
      %v324 = vadd.f32 %v285, %v313
      %v325 = vadd.f32 %v286, %v313
      %v326 = vadd.f32 %v287, %v313
      %v327 = vadd.f32 %v288, %v313
      %v328 = vadd.f32 %v289, %v313
      %v329 = vadd.f32 %v290, %v313
      %v330 = vadd.f32 %v291, %v313
      %v331 = vadd.f32 %v292, %v313
      %v332 = vadd.f32 %v293, %v313
      %v333 = vadd.f32 %v294, %v313
      %v334 = vadd.f32 %v295, %v313
      %v335 = vadd.f32 %v296, %v313
      %v336 = vadd.f32 %v297, %v313
      %v337 = vadd.f32 %v298, %v313
      %v338 = vadd.f32 %v299, %v313
      %v339 = vadd.f32 %v300, %v313
      %v340 = vadd.f32 %v301, %v313
      %v341 = vadd.f32 %v302, %v313
      %v342 = vadd.f32 %v303, %v313
      %v343 = vadd.f32 %v304, %v313
      %v344 = vadd.f32 %v305, %v313
      %v345 = vadd.f32 %v306, %v313
      %v346 = vadd.f32 %v307, %v313
      %v347 = vmax.f32 %v315, 0.0
      %v348 = vmax.f32 %v316, 0.0
      %v349 = vmax.f32 %v317, 0.0
      %v350 = vmax.f32 %v318, 0.0
      %v351 = vmax.f32 %v319, 0.0
      %v352 = vmax.f32 %v320, 0.0
      %v353 = vmax.f32 %v321, 0.0
      %v354 = vmax.f32 %v322, 0.0
      %v355 = vmax.f32 %v323, 0.0
      %v356 = vmax.f32 %v324, 0.0
      %v357 = vmax.f32 %v325, 0.0
      %v358 = vmax.f32 %v326, 0.0
      %v359 = vmax.f32 %v327, 0.0
      %v360 = vmax.f32 %v328, 0.0
      %v361 = vmax.f32 %v329, 0.0
      %v362 = vmax.f32 %v330, 0.0
      %v363 = vmax.f32 %v331, 0.0
      %v364 = vmax.f32 %v332, 0.0
      %v365 = vmax.f32 %v333, 0.0
      %v366 = vmax.f32 %v334, 0.0
      %v367 = vmax.f32 %v335, 0.0
      %v368 = vmax.f32 %v336, 0.0
      %v369 = vmax.f32 %v337, 0.0
      %v370 = vmax.f32 %v338, 0.0
      %v371 = vmax.f32 %v339, 0.0
      %v372 = vmax.f32 %v340, 0.0
      %v373 = vmax.f32 %v341, 0.0
      %v374 = vmax.f32 %v342, 0.0
      %v375 = vmax.f32 %v343, 0.0
      %v376 = vmax.f32 %v344, 0.0
      %v377 = vmax.f32 %v345, 0.0
      %v378 = vmax.f32 %v346, 0.0
      %v379 = vpack.c.bf16 %v348, %v347
      %v380 = vpack.c.bf16 %v350, %v349
      %v381 = vpack.c.bf16 %v352, %v351
      %v382 = vpack.c.bf16 %v354, %v353
      %v383 = vpack.c.bf16 %v356, %v355
      %v384 = vpack.c.bf16 %v358, %v357
      %v385 = vpack.c.bf16 %v360, %v359
      %v386 = vpack.c.bf16 %v362, %v361
      %v387 = vpack.c.bf16 %v364, %v363
      %v388 = vpack.c.bf16 %v366, %v365
      %v389 = vpack.c.bf16 %v368, %v367
      %v390 = vpack.c.bf16 %v370, %v369
      %v391 = vpack.c.bf16 %v372, %v371
      %v392 = vpack.c.bf16 %v374, %v373
      %v393 = vpack.c.bf16 %v376, %v375
      %v394 = vpack.c.bf16 %v378, %v377
      %vm411 = vcmask 1043456
      %v412 = vrot.slane %v379, 4
      %v413 = vrot.slane %v380, 4
      %v414 = vsel %vm411, %v412, %v413
      %v415 = vrot.slane %v381, 4
      %v416 = vsel %vm411, %v413, %v415
      %v417 = vrot.slane %v382, 4
      %v418 = vsel %vm411, %v415, %v417
      %v419 = vrot.slane %v383, 4
      %v420 = vsel %vm411, %v417, %v419
      %v421 = vrot.slane %v384, 4
      %v422 = vsel %vm411, %v419, %v421
      %v423 = vrot.slane %v385, 4
      %v424 = vsel %vm411, %v421, %v423
      %v425 = vrot.slane %v386, 4
      %v426 = vsel %vm411, %v423, %v425
      %v427 = vrot.slane %v387, 4
      %v428 = vsel %vm411, %v425, %v427
      %v429 = vrot.slane %v388, 4
      %v430 = vsel %vm411, %v427, %v429
      %v431 = vrot.slane %v389, 4
      %v432 = vsel %vm411, %v429, %v431
      %v433 = vrot.slane %v390, 4
      %v434 = vsel %vm411, %v431, %v433
      %v435 = vrot.slane %v391, 4
      %v436 = vsel %vm411, %v433, %v435
      %v437 = vrot.slane %v392, 4
      %v438 = vsel %vm411, %v435, %v437
      %v439 = vrot.slane %v393, 4
      %v440 = vsel %vm411, %v437, %v439
      %v441 = vrot.slane %v394, 4
      %v442 = vsel %vm411, %v439, %v441
      %vm458 = vcmask 1043456
      %v461 = vsel %vm458, 0, %v412
      %v464 = vsel %vm458, %v441, 0
      %v466 = vlaneseq
      %v467 = vshrl.u32 %v466, 7
      %v468 = vadd.s32 %v467, 8
      %v469 = vadd.s32 %v467, 16
      %v470 = vadd.s32 %v467, 24
      %v471 = vadd.s32 %v467, 32
      %v472 = vadd.s32 %v467, 40
      %v473 = vadd.s32 %v467, 48
      %v474 = vadd.s32 %v467, 56
      %v475 = vadd.s32 %v467, 64
      %v476 = vadd.s32 %v467, 72
      %v477 = vadd.s32 %v467, 80
      %v478 = vadd.s32 %v467, 88
      %v479 = vadd.s32 %v467, 96
      %v480 = vadd.s32 %v467, 104
      %v481 = vadd.s32 %v467, 112
      %v482 = vadd.s32 %v467, 120
      %v483 = vadd.s32 %v467, 128
      %v484 = vadd.s32 %v467, 136
      %v485 = vadd.s32 %v467, 144
      %v486 = vadd.s32 %v467, 152
      %v487 = vadd.s32 %v467, 160
      %v488 = vadd.s32 %v467, 168
      %v489 = vadd.s32 %v467, 176
      %v490 = vadd.s32 %v467, 184
      %v491 = vadd.s32 %v467, 192
      %v492 = vadd.s32 %v467, 200
      %v493 = vadd.s32 %v467, 208
      %v494 = vadd.s32 %v467, 216
      %v495 = vadd.s32 %v467, 224
      %v496 = vadd.s32 %v467, 232
      %v497 = vadd.s32 %v467, 240
      %v498 = vadd.s32 %v467, 248
      %vm499 = vcmp.lt.s32.totalorder %v467, 0
      %v500 = vsub.s32 0, %v467
      %v501 = vsel %vm499, %v500, %v467
      %v502 = vshrl.u32 %v501, 4
      %v503 = vand.u32 %v501, 15
      %v504 = vsub.s32 0, %v503
      %v505 = vsel %vm499, %v504, %v503
      %vm506 = vcmp.lt.s32.totalorder %v468, 0
      %v507 = vsub.s32 0, %v468
      %v508 = vsel %vm506, %v507, %v468
      %v509 = vshrl.u32 %v508, 4
      %v510 = vand.u32 %v508, 15
      %v511 = vsub.s32 0, %v510
      %v512 = vsel %vm506, %v511, %v510
      %vm513 = vcmp.lt.s32.totalorder %v469, 0
      %v514 = vsub.s32 0, %v469
      %v515 = vsel %vm513, %v514, %v469
      %v516 = vshrl.u32 %v515, 4
      %v517 = vand.u32 %v515, 15
      %v518 = vsub.s32 0, %v517
      %v519 = vsel %vm513, %v518, %v517
      %vm520 = vcmp.lt.s32.totalorder %v470, 0
      %v521 = vsub.s32 0, %v470
      %v522 = vsel %vm520, %v521, %v470
      %v523 = vshrl.u32 %v522, 4
      %v524 = vand.u32 %v522, 15
      %v525 = vsub.s32 0, %v524
      %v526 = vsel %vm520, %v525, %v524
      %vm527 = vcmp.lt.s32.totalorder %v471, 0
      %v528 = vsub.s32 0, %v471
      %v529 = vsel %vm527, %v528, %v471
      %v530 = vshrl.u32 %v529, 4
      %v531 = vand.u32 %v529, 15
      %v532 = vsub.s32 0, %v531
      %v533 = vsel %vm527, %v532, %v531
      %vm534 = vcmp.lt.s32.totalorder %v472, 0
      %v535 = vsub.s32 0, %v472
      %v536 = vsel %vm534, %v535, %v472
      %v537 = vshrl.u32 %v536, 4
      %v538 = vand.u32 %v536, 15
      %v539 = vsub.s32 0, %v538
      %v540 = vsel %vm534, %v539, %v538
      %vm541 = vcmp.lt.s32.totalorder %v473, 0
      %v542 = vsub.s32 0, %v473
      %v543 = vsel %vm541, %v542, %v473
      %v544 = vshrl.u32 %v543, 4
      %v545 = vand.u32 %v543, 15
      %v546 = vsub.s32 0, %v545
      %v547 = vsel %vm541, %v546, %v545
      %vm548 = vcmp.lt.s32.totalorder %v474, 0
      %v549 = vsub.s32 0, %v474
      %v550 = vsel %vm548, %v549, %v474
      %v551 = vshrl.u32 %v550, 4
      %v552 = vand.u32 %v550, 15
      %v553 = vsub.s32 0, %v552
      %v554 = vsel %vm548, %v553, %v552
      %vm555 = vcmp.lt.s32.totalorder %v475, 0
      %v556 = vsub.s32 0, %v475
      %v557 = vsel %vm555, %v556, %v475
      %v558 = vshrl.u32 %v557, 4
      %v559 = vand.u32 %v557, 15
      %v560 = vsub.s32 0, %v559
      %v561 = vsel %vm555, %v560, %v559
      %vm562 = vcmp.lt.s32.totalorder %v476, 0
      %v563 = vsub.s32 0, %v476
      %v564 = vsel %vm562, %v563, %v476
      %v565 = vshrl.u32 %v564, 4
      %v566 = vand.u32 %v564, 15
      %v567 = vsub.s32 0, %v566
      %v568 = vsel %vm562, %v567, %v566
      %vm569 = vcmp.lt.s32.totalorder %v477, 0
      %v570 = vsub.s32 0, %v477
      %v571 = vsel %vm569, %v570, %v477
      %v572 = vshrl.u32 %v571, 4
      %v573 = vand.u32 %v571, 15
      %v574 = vsub.s32 0, %v573
      %v575 = vsel %vm569, %v574, %v573
      %vm576 = vcmp.lt.s32.totalorder %v478, 0
      %v577 = vsub.s32 0, %v478
      %v578 = vsel %vm576, %v577, %v478
      %v579 = vshrl.u32 %v578, 4
      %v580 = vand.u32 %v578, 15
      %v581 = vsub.s32 0, %v580
      %v582 = vsel %vm576, %v581, %v580
      %vm583 = vcmp.lt.s32.totalorder %v479, 0
      %v584 = vsub.s32 0, %v479
      %v585 = vsel %vm583, %v584, %v479
      %v586 = vshrl.u32 %v585, 4
      %v587 = vand.u32 %v585, 15
      %v588 = vsub.s32 0, %v587
      %v589 = vsel %vm583, %v588, %v587
      %vm590 = vcmp.lt.s32.totalorder %v480, 0
      %v591 = vsub.s32 0, %v480
      %v592 = vsel %vm590, %v591, %v480
      %v593 = vshrl.u32 %v592, 4
      %v594 = vand.u32 %v592, 15
      %v595 = vsub.s32 0, %v594
      %v596 = vsel %vm590, %v595, %v594
      %vm597 = vcmp.lt.s32.totalorder %v481, 0
      %v598 = vsub.s32 0, %v481
      %v599 = vsel %vm597, %v598, %v481
      %v600 = vshrl.u32 %v599, 4
      %v601 = vand.u32 %v599, 15
      %v602 = vsub.s32 0, %v601
      %v603 = vsel %vm597, %v602, %v601
      %vm604 = vcmp.lt.s32.totalorder %v482, 0
      %v605 = vsub.s32 0, %v482
      %v606 = vsel %vm604, %v605, %v482
      %v607 = vshrl.u32 %v606, 4
      %v608 = vand.u32 %v606, 15
      %v609 = vsub.s32 0, %v608
      %v610 = vsel %vm604, %v609, %v608
      %vm611 = vcmp.lt.s32.totalorder %v483, 0
      %v612 = vsub.s32 0, %v483
      %v613 = vsel %vm611, %v612, %v483
      %v614 = vshrl.u32 %v613, 4
      %v615 = vand.u32 %v613, 15
      %v616 = vsub.s32 0, %v615
      %v617 = vsel %vm611, %v616, %v615
      %vm618 = vcmp.lt.s32.totalorder %v484, 0
      %v619 = vsub.s32 0, %v484
      %v620 = vsel %vm618, %v619, %v484
      %v621 = vshrl.u32 %v620, 4
      %v622 = vand.u32 %v620, 15
      %v623 = vsub.s32 0, %v622
      %v624 = vsel %vm618, %v623, %v622
      %vm625 = vcmp.lt.s32.totalorder %v485, 0
      %v626 = vsub.s32 0, %v485
      %v627 = vsel %vm625, %v626, %v485
      %v628 = vshrl.u32 %v627, 4
      %v629 = vand.u32 %v627, 15
      %v630 = vsub.s32 0, %v629
      %v631 = vsel %vm625, %v630, %v629
      %vm632 = vcmp.lt.s32.totalorder %v486, 0
      %v633 = vsub.s32 0, %v486
      %v634 = vsel %vm632, %v633, %v486
      %v635 = vshrl.u32 %v634, 4
      %v636 = vand.u32 %v634, 15
      %v637 = vsub.s32 0, %v636
      %v638 = vsel %vm632, %v637, %v636
      %vm639 = vcmp.lt.s32.totalorder %v487, 0
      %v640 = vsub.s32 0, %v487
      %v641 = vsel %vm639, %v640, %v487
      %v642 = vshrl.u32 %v641, 4
      %v643 = vand.u32 %v641, 15
      %v644 = vsub.s32 0, %v643
      %v645 = vsel %vm639, %v644, %v643
      %vm646 = vcmp.lt.s32.totalorder %v488, 0
      %v647 = vsub.s32 0, %v488
      %v648 = vsel %vm646, %v647, %v488
      %v649 = vshrl.u32 %v648, 4
      %v650 = vand.u32 %v648, 15
      %v651 = vsub.s32 0, %v650
      %v652 = vsel %vm646, %v651, %v650
      %vm653 = vcmp.lt.s32.totalorder %v489, 0
      %v654 = vsub.s32 0, %v489
      %v655 = vsel %vm653, %v654, %v489
      %v656 = vshrl.u32 %v655, 4
      %v657 = vand.u32 %v655, 15
      %v658 = vsub.s32 0, %v657
      %v659 = vsel %vm653, %v658, %v657
      %vm660 = vcmp.lt.s32.totalorder %v490, 0
      %v661 = vsub.s32 0, %v490
      %v662 = vsel %vm660, %v661, %v490
      %v663 = vshrl.u32 %v662, 4
      %v664 = vand.u32 %v662, 15
      %v665 = vsub.s32 0, %v664
      %v666 = vsel %vm660, %v665, %v664
      %vm667 = vcmp.lt.s32.totalorder %v491, 0
      %v668 = vsub.s32 0, %v491
      %v669 = vsel %vm667, %v668, %v491
      %v670 = vshrl.u32 %v669, 4
      %v671 = vand.u32 %v669, 15
      %v672 = vsub.s32 0, %v671
      %v673 = vsel %vm667, %v672, %v671
      %vm674 = vcmp.lt.s32.totalorder %v492, 0
      %v675 = vsub.s32 0, %v492
      %v676 = vsel %vm674, %v675, %v492
      %v677 = vshrl.u32 %v676, 4
      %v678 = vand.u32 %v676, 15
      %v679 = vsub.s32 0, %v678
      %v680 = vsel %vm674, %v679, %v678
      %vm681 = vcmp.lt.s32.totalorder %v493, 0
      %v682 = vsub.s32 0, %v493
      %v683 = vsel %vm681, %v682, %v493
      %v684 = vshrl.u32 %v683, 4
      %v685 = vand.u32 %v683, 15
      %v686 = vsub.s32 0, %v685
      %v687 = vsel %vm681, %v686, %v685
      %vm688 = vcmp.lt.s32.totalorder %v494, 0
      %v689 = vsub.s32 0, %v494
      %v690 = vsel %vm688, %v689, %v494
      %v691 = vshrl.u32 %v690, 4
      %v692 = vand.u32 %v690, 15
      %v693 = vsub.s32 0, %v692
      %v694 = vsel %vm688, %v693, %v692
      %vm695 = vcmp.lt.s32.totalorder %v495, 0
      %v696 = vsub.s32 0, %v495
      %v697 = vsel %vm695, %v696, %v495
      %v698 = vshrl.u32 %v697, 4
      %v699 = vand.u32 %v697, 15
      %v700 = vsub.s32 0, %v699
      %v701 = vsel %vm695, %v700, %v699
      %vm702 = vcmp.lt.s32.totalorder %v496, 0
      %v703 = vsub.s32 0, %v496
      %v704 = vsel %vm702, %v703, %v496
      %v705 = vshrl.u32 %v704, 4
      %v706 = vand.u32 %v704, 15
      %v707 = vsub.s32 0, %v706
      %v708 = vsel %vm702, %v707, %v706
      %vm709 = vcmp.lt.s32.totalorder %v497, 0
      %v710 = vsub.s32 0, %v497
      %v711 = vsel %vm709, %v710, %v497
      %v712 = vshrl.u32 %v711, 4
      %v713 = vand.u32 %v711, 15
      %v714 = vsub.s32 0, %v713
      %v715 = vsel %vm709, %v714, %v713
      %vm716 = vcmp.lt.s32.totalorder %v498, 0
      %v717 = vsub.s32 0, %v498
      %v718 = vsel %vm716, %v717, %v498
      %v719 = vshrl.u32 %v718, 4
      %v720 = vand.u32 %v718, 15
      %v721 = vsub.s32 0, %v720
      %v722 = vsel %vm716, %v721, %v720
      %vm723 = vcmp.gt.s32.totalorder %v505, 0
      %vm724 = vcmp.gt.s32.totalorder %v512, 0
      %vm725 = vcmp.gt.s32.totalorder %v519, 0
      %vm726 = vcmp.gt.s32.totalorder %v526, 0
      %vm727 = vcmp.gt.s32.totalorder %v533, 0
      %vm728 = vcmp.gt.s32.totalorder %v540, 0
      %vm729 = vcmp.gt.s32.totalorder %v547, 0
      %vm730 = vcmp.gt.s32.totalorder %v554, 0
      %vm731 = vcmp.gt.s32.totalorder %v561, 0
      %vm732 = vcmp.gt.s32.totalorder %v568, 0
      %vm733 = vcmp.gt.s32.totalorder %v575, 0
      %vm734 = vcmp.gt.s32.totalorder %v582, 0
      %vm735 = vcmp.gt.s32.totalorder %v589, 0
      %vm736 = vcmp.gt.s32.totalorder %v596, 0
      %vm737 = vcmp.gt.s32.totalorder %v603, 0
      %vm738 = vcmp.gt.s32.totalorder %v610, 0
      %vm739 = vcmp.gt.s32.totalorder %v617, 0
      %vm740 = vcmp.gt.s32.totalorder %v624, 0
      %vm741 = vcmp.gt.s32.totalorder %v631, 0
      %vm742 = vcmp.gt.s32.totalorder %v638, 0
      %vm743 = vcmp.gt.s32.totalorder %v645, 0
      %vm744 = vcmp.gt.s32.totalorder %v652, 0
      %vm745 = vcmp.gt.s32.totalorder %v659, 0
      %vm746 = vcmp.gt.s32.totalorder %v666, 0
      %vm747 = vcmp.gt.s32.totalorder %v673, 0
      %vm748 = vcmp.gt.s32.totalorder %v680, 0
      %vm749 = vcmp.gt.s32.totalorder %v687, 0
      %vm750 = vcmp.gt.s32.totalorder %v694, 0
      %vm751 = vcmp.gt.s32.totalorder %v701, 0
      %vm752 = vcmp.gt.s32.totalorder %v708, 0
      %vm753 = vcmp.gt.s32.totalorder %v715, 0
      %vm754 = vcmp.gt.s32.totalorder %v722, 0
      %v755 = vsel %vm723, 1, 0
      %v756 = vsel %vm724, 1, 0
      %v757 = vsel %vm725, 1, 0
      %v758 = vsel %vm726, 1, 0
      %v759 = vsel %vm727, 1, 0
      %v760 = vsel %vm728, 1, 0
      %v761 = vsel %vm729, 1, 0
      %v762 = vsel %vm730, 1, 0
      %v763 = vsel %vm731, 1, 0
      %v764 = vsel %vm732, 1, 0
      %v765 = vsel %vm733, 1, 0
      %v766 = vsel %vm734, 1, 0
      %v767 = vsel %vm735, 1, 0
      %v768 = vsel %vm736, 1, 0
      %v769 = vsel %vm737, 1, 0
      %v770 = vsel %vm738, 1, 0
      %v771 = vsel %vm739, 1, 0
      %v772 = vsel %vm740, 1, 0
      %v773 = vsel %vm741, 1, 0
      %v774 = vsel %vm742, 1, 0
      %v775 = vsel %vm743, 1, 0
      %v776 = vsel %vm744, 1, 0
      %v777 = vsel %vm745, 1, 0
      %v778 = vsel %vm746, 1, 0
      %v779 = vsel %vm747, 1, 0
      %v780 = vsel %vm748, 1, 0
      %v781 = vsel %vm749, 1, 0
      %v782 = vsel %vm750, 1, 0
      %v783 = vsel %vm751, 1, 0
      %v784 = vsel %vm752, 1, 0
      %v785 = vsel %vm753, 1, 0
      %v786 = vsel %vm754, 1, 0
      %v787 = vcvt.s32.f32 %v755
      %v788 = vcvt.s32.f32 %v756
      %v789 = vcvt.s32.f32 %v757
      %v790 = vcvt.s32.f32 %v758
      %v791 = vcvt.s32.f32 %v759
      %v792 = vcvt.s32.f32 %v760
      %v793 = vcvt.s32.f32 %v761
      %v794 = vcvt.s32.f32 %v762
      %v795 = vcvt.s32.f32 %v763
      %v796 = vcvt.s32.f32 %v764
      %v797 = vcvt.s32.f32 %v765
      %v798 = vcvt.s32.f32 %v766
      %v799 = vcvt.s32.f32 %v767
      %v800 = vcvt.s32.f32 %v768
      %v801 = vcvt.s32.f32 %v769
      %v802 = vcvt.s32.f32 %v770
      %v803 = vcvt.s32.f32 %v771
      %v804 = vcvt.s32.f32 %v772
      %v805 = vcvt.s32.f32 %v773
      %v806 = vcvt.s32.f32 %v774
      %v807 = vcvt.s32.f32 %v775
      %v808 = vcvt.s32.f32 %v776
      %v809 = vcvt.s32.f32 %v777
      %v810 = vcvt.s32.f32 %v778
      %v811 = vcvt.s32.f32 %v779
      %v812 = vcvt.s32.f32 %v780
      %v813 = vcvt.s32.f32 %v781
      %v814 = vcvt.s32.f32 %v782
      %v815 = vcvt.s32.f32 %v783
      %v816 = vcvt.s32.f32 %v784
      %v817 = vcvt.s32.f32 %v785
      %v818 = vcvt.s32.f32 %v786
      %v819 = vpack.c.bf16 %v788, %v787
      %v820 = vpack.c.bf16 %v790, %v789
      %v821 = vpack.c.bf16 %v792, %v791
      %v822 = vpack.c.bf16 %v794, %v793
      %v823 = vpack.c.bf16 %v796, %v795
      %v824 = vpack.c.bf16 %v798, %v797
      %v825 = vpack.c.bf16 %v800, %v799
      %v826 = vpack.c.bf16 %v802, %v801
      %v827 = vpack.c.bf16 %v804, %v803
      %v828 = vpack.c.bf16 %v806, %v805
      %v829 = vpack.c.bf16 %v808, %v807
      %v830 = vpack.c.bf16 %v810, %v809
      %v831 = vpack.c.bf16 %v812, %v811
      %v832 = vpack.c.bf16 %v814, %v813
      %v833 = vpack.c.bf16 %v816, %v815
      %v834 = vpack.c.bf16 %v818, %v817
      %vm835 = vcmp.lt.s32.totalorder %v505, 15
      %vm836 = vcmp.lt.s32.totalorder %v512, 15
      %vm837 = vcmp.lt.s32.totalorder %v519, 15
      %vm838 = vcmp.lt.s32.totalorder %v526, 15
      %vm839 = vcmp.lt.s32.totalorder %v533, 15
      %vm840 = vcmp.lt.s32.totalorder %v540, 15
      %vm841 = vcmp.lt.s32.totalorder %v547, 15
      %vm842 = vcmp.lt.s32.totalorder %v554, 15
      %vm843 = vcmp.lt.s32.totalorder %v561, 15
      %vm844 = vcmp.lt.s32.totalorder %v568, 15
      %vm845 = vcmp.lt.s32.totalorder %v575, 15
      %vm846 = vcmp.lt.s32.totalorder %v582, 15
      %vm847 = vcmp.lt.s32.totalorder %v589, 15
      %vm848 = vcmp.lt.s32.totalorder %v596, 15
      %vm849 = vcmp.lt.s32.totalorder %v603, 15
      %vm850 = vcmp.lt.s32.totalorder %v610, 15
      %vm851 = vcmp.lt.s32.totalorder %v617, 15
      %vm852 = vcmp.lt.s32.totalorder %v624, 15
      %vm853 = vcmp.lt.s32.totalorder %v631, 15
      %vm854 = vcmp.lt.s32.totalorder %v638, 15
      %vm855 = vcmp.lt.s32.totalorder %v645, 15
      %vm856 = vcmp.lt.s32.totalorder %v652, 15
      %vm857 = vcmp.lt.s32.totalorder %v659, 15
      %vm858 = vcmp.lt.s32.totalorder %v666, 15
      %vm859 = vcmp.lt.s32.totalorder %v673, 15
      %vm860 = vcmp.lt.s32.totalorder %v680, 15
      %vm861 = vcmp.lt.s32.totalorder %v687, 15
      %vm862 = vcmp.lt.s32.totalorder %v694, 15
      %vm863 = vcmp.lt.s32.totalorder %v701, 15
      %vm864 = vcmp.lt.s32.totalorder %v708, 15
      %vm865 = vcmp.lt.s32.totalorder %v715, 15
      %vm866 = vcmp.lt.s32.totalorder %v722, 15
      %v867 = vsel %vm835, 1, 0
      %v868 = vsel %vm836, 1, 0
      %v869 = vsel %vm837, 1, 0
      %v870 = vsel %vm838, 1, 0
      %v871 = vsel %vm839, 1, 0
      %v872 = vsel %vm840, 1, 0
      %v873 = vsel %vm841, 1, 0
      %v874 = vsel %vm842, 1, 0
      %v875 = vsel %vm843, 1, 0
      %v876 = vsel %vm844, 1, 0
      %v877 = vsel %vm845, 1, 0
      %v878 = vsel %vm846, 1, 0
      %v879 = vsel %vm847, 1, 0
      %v880 = vsel %vm848, 1, 0
      %v881 = vsel %vm849, 1, 0
      %v882 = vsel %vm850, 1, 0
      %v883 = vsel %vm851, 1, 0
      %v884 = vsel %vm852, 1, 0
      %v885 = vsel %vm853, 1, 0
      %v886 = vsel %vm854, 1, 0
      %v887 = vsel %vm855, 1, 0
      %v888 = vsel %vm856, 1, 0
      %v889 = vsel %vm857, 1, 0
      %v890 = vsel %vm858, 1, 0
      %v891 = vsel %vm859, 1, 0
      %v892 = vsel %vm860, 1, 0
      %v893 = vsel %vm861, 1, 0
      %v894 = vsel %vm862, 1, 0
      %v895 = vsel %vm863, 1, 0
      %v896 = vsel %vm864, 1, 0
      %v897 = vsel %vm865, 1, 0
      %v898 = vsel %vm866, 1, 0
      %v899 = vcvt.s32.f32 %v867
      %v900 = vcvt.s32.f32 %v868
      %v901 = vcvt.s32.f32 %v869
      %v902 = vcvt.s32.f32 %v870
      %v903 = vcvt.s32.f32 %v871
      %v904 = vcvt.s32.f32 %v872
      %v905 = vcvt.s32.f32 %v873
      %v906 = vcvt.s32.f32 %v874
      %v907 = vcvt.s32.f32 %v875
      %v908 = vcvt.s32.f32 %v876
      %v909 = vcvt.s32.f32 %v877
      %v910 = vcvt.s32.f32 %v878
      %v911 = vcvt.s32.f32 %v879
      %v912 = vcvt.s32.f32 %v880
      %v913 = vcvt.s32.f32 %v881
      %v914 = vcvt.s32.f32 %v882
      %v915 = vcvt.s32.f32 %v883
      %v916 = vcvt.s32.f32 %v884
      %v917 = vcvt.s32.f32 %v885
      %v918 = vcvt.s32.f32 %v886
      %v919 = vcvt.s32.f32 %v887
      %v920 = vcvt.s32.f32 %v888
      %v921 = vcvt.s32.f32 %v889
      %v922 = vcvt.s32.f32 %v890
      %v923 = vcvt.s32.f32 %v891
      %v924 = vcvt.s32.f32 %v892
      %v925 = vcvt.s32.f32 %v893
      %v926 = vcvt.s32.f32 %v894
      %v927 = vcvt.s32.f32 %v895
      %v928 = vcvt.s32.f32 %v896
      %v929 = vcvt.s32.f32 %v897
      %v930 = vcvt.s32.f32 %v898
      %v931 = vpack.c.bf16 %v900, %v899
      %v932 = vpack.c.bf16 %v902, %v901
      %v933 = vpack.c.bf16 %v904, %v903
      %v934 = vpack.c.bf16 %v906, %v905
      %v935 = vpack.c.bf16 %v908, %v907
      %v936 = vpack.c.bf16 %v910, %v909
      %v937 = vpack.c.bf16 %v912, %v911
      %v938 = vpack.c.bf16 %v914, %v913
      %v939 = vpack.c.bf16 %v916, %v915
      %v940 = vpack.c.bf16 %v918, %v917
      %v941 = vpack.c.bf16 %v920, %v919
      %v942 = vpack.c.bf16 %v922, %v921
      %v943 = vpack.c.bf16 %v924, %v923
      %v944 = vpack.c.bf16 %v926, %v925
      %v945 = vpack.c.bf16 %v928, %v927
      %v946 = vpack.c.bf16 %v930, %v929
      %vm947 = vsmask.f32 3328
      %v949 = vshrl.u32 %v819, 16
      %v951 = vrot.slane %v949, 4
      %v952 = vshll.u32 %v819, 16
      %v954 = vrot.slane %v952, 5
      %v955 = vor.u32 %v951, %v954
      %v957 = vshrl.u32 %v820, 16
      %v959 = vrot.slane %v957, 4
      %v960 = vshll.u32 %v820, 16
      %v962 = vrot.slane %v960, 5
      %v963 = vor.u32 %v959, %v962
      %v964 = vsel %vm947, %v955, %v963
      %v966 = vshrl.u32 %v821, 16
      %v968 = vrot.slane %v966, 4
      %v969 = vshll.u32 %v821, 16
      %v971 = vrot.slane %v969, 5
      %v972 = vor.u32 %v968, %v971
      %v973 = vsel %vm947, %v963, %v972
      %v975 = vshrl.u32 %v822, 16
      %v977 = vrot.slane %v975, 4
      %v978 = vshll.u32 %v822, 16
      %v980 = vrot.slane %v978, 5
      %v981 = vor.u32 %v977, %v980
      %v982 = vsel %vm947, %v972, %v981
      %v984 = vshrl.u32 %v823, 16
      %v986 = vrot.slane %v984, 4
      %v987 = vshll.u32 %v823, 16
      %v989 = vrot.slane %v987, 5
      %v990 = vor.u32 %v986, %v989
      %v991 = vsel %vm947, %v981, %v990
      %v993 = vshrl.u32 %v824, 16
      %v995 = vrot.slane %v993, 4
      %v996 = vshll.u32 %v824, 16
      %v998 = vrot.slane %v996, 5
      %v999 = vor.u32 %v995, %v998
      %v1000 = vsel %vm947, %v990, %v999
      %v1002 = vshrl.u32 %v825, 16
      %v1004 = vrot.slane %v1002, 4
      %v1005 = vshll.u32 %v825, 16
      %v1007 = vrot.slane %v1005, 5
      %v1008 = vor.u32 %v1004, %v1007
      %v1009 = vsel %vm947, %v999, %v1008
      %v1011 = vshrl.u32 %v826, 16
      %v1013 = vrot.slane %v1011, 4
      %v1014 = vshll.u32 %v826, 16
      %v1016 = vrot.slane %v1014, 5
      %v1017 = vor.u32 %v1013, %v1016
      %v1018 = vsel %vm947, %v1008, %v1017
      %v1020 = vshrl.u32 %v827, 16
      %v1022 = vrot.slane %v1020, 4
      %v1023 = vshll.u32 %v827, 16
      %v1025 = vrot.slane %v1023, 5
      %v1026 = vor.u32 %v1022, %v1025
      %v1027 = vsel %vm947, %v1017, %v1026
      %v1029 = vshrl.u32 %v828, 16
      %v1031 = vrot.slane %v1029, 4
      %v1032 = vshll.u32 %v828, 16
      %v1034 = vrot.slane %v1032, 5
      %v1035 = vor.u32 %v1031, %v1034
      %v1036 = vsel %vm947, %v1026, %v1035
      %v1038 = vshrl.u32 %v829, 16
      %v1040 = vrot.slane %v1038, 4
      %v1041 = vshll.u32 %v829, 16
      %v1043 = vrot.slane %v1041, 5
      %v1044 = vor.u32 %v1040, %v1043
      %v1045 = vsel %vm947, %v1035, %v1044
      %v1047 = vshrl.u32 %v830, 16
      %v1049 = vrot.slane %v1047, 4
      %v1050 = vshll.u32 %v830, 16
      %v1052 = vrot.slane %v1050, 5
      %v1053 = vor.u32 %v1049, %v1052
      %v1054 = vsel %vm947, %v1044, %v1053
      %v1056 = vshrl.u32 %v831, 16
      %v1058 = vrot.slane %v1056, 4
      %v1059 = vshll.u32 %v831, 16
      %v1061 = vrot.slane %v1059, 5
      %v1062 = vor.u32 %v1058, %v1061
      %v1063 = vsel %vm947, %v1053, %v1062
      %v1065 = vshrl.u32 %v832, 16
      %v1067 = vrot.slane %v1065, 4
      %v1068 = vshll.u32 %v832, 16
      %v1070 = vrot.slane %v1068, 5
      %v1071 = vor.u32 %v1067, %v1070
      %v1072 = vsel %vm947, %v1062, %v1071
      %v1074 = vshrl.u32 %v833, 16
      %v1076 = vrot.slane %v1074, 4
      %v1077 = vshll.u32 %v833, 16
      %v1079 = vrot.slane %v1077, 5
      %v1080 = vor.u32 %v1076, %v1079
      %v1081 = vsel %vm947, %v1071, %v1080
      %v1083 = vshrl.u32 %v834, 16
      %v1085 = vrot.slane %v1083, 4
      %v1086 = vshll.u32 %v834, 16
      %v1088 = vrot.slane %v1086, 5
      %v1089 = vor.u32 %v1085, %v1088
      %v1090 = vsel %vm947, %v1080, %v1089
      %v1108 = vmul.bf16 %v955, 0
      %v1109 = vmul.bf16 %v461, %v964
      %v1110 = vmul.bf16 %v414, %v973
      %v1111 = vmul.bf16 %v416, %v982
      %v1112 = vmul.bf16 %v418, %v991
      %v1113 = vmul.bf16 %v420, %v1000
      %v1114 = vmul.bf16 %v422, %v1009
      %v1115 = vmul.bf16 %v424, %v1018
      %v1116 = vmul.bf16 %v426, %v1027
      %v1117 = vmul.bf16 %v428, %v1036
      %v1118 = vmul.bf16 %v430, %v1045
      %v1119 = vmul.bf16 %v432, %v1054
      %v1120 = vmul.bf16 %v434, %v1063
      %v1121 = vmul.bf16 %v436, %v1072
      %v1122 = vmul.bf16 %v438, %v1081
      %v1123 = vmul.bf16 %v440, %v1090
      %v1124 = vmul.bf16 %v442, %v1089
      %vm1125 = vsmask.f32 4352
      %v1127 = vshrl.u32 %v931, 16
      %v1129 = vrot.slane %v1127, 3
      %v1130 = vshll.u32 %v931, 16
      %v1132 = vrot.slane %v1130, 4
      %v1133 = vor.u32 %v1129, %v1132
      %v1135 = vshrl.u32 %v932, 16
      %v1137 = vrot.slane %v1135, 3
      %v1138 = vshll.u32 %v932, 16
      %v1140 = vrot.slane %v1138, 4
      %v1141 = vor.u32 %v1137, %v1140
      %v1142 = vsel %vm1125, %v1133, %v1141
      %v1144 = vshrl.u32 %v933, 16
      %v1146 = vrot.slane %v1144, 3
      %v1147 = vshll.u32 %v933, 16
      %v1149 = vrot.slane %v1147, 4
      %v1150 = vor.u32 %v1146, %v1149
      %v1151 = vsel %vm1125, %v1141, %v1150
      %v1153 = vshrl.u32 %v934, 16
      %v1155 = vrot.slane %v1153, 3
      %v1156 = vshll.u32 %v934, 16
      %v1158 = vrot.slane %v1156, 4
      %v1159 = vor.u32 %v1155, %v1158
      %v1160 = vsel %vm1125, %v1150, %v1159
      %v1162 = vshrl.u32 %v935, 16
      %v1164 = vrot.slane %v1162, 3
      %v1165 = vshll.u32 %v935, 16
      %v1167 = vrot.slane %v1165, 4
      %v1168 = vor.u32 %v1164, %v1167
      %v1169 = vsel %vm1125, %v1159, %v1168
      %v1171 = vshrl.u32 %v936, 16
      %v1173 = vrot.slane %v1171, 3
      %v1174 = vshll.u32 %v936, 16
      %v1176 = vrot.slane %v1174, 4
      %v1177 = vor.u32 %v1173, %v1176
      %v1178 = vsel %vm1125, %v1168, %v1177
      %v1180 = vshrl.u32 %v937, 16
      %v1182 = vrot.slane %v1180, 3
      %v1183 = vshll.u32 %v937, 16
      %v1185 = vrot.slane %v1183, 4
      %v1186 = vor.u32 %v1182, %v1185
      %v1187 = vsel %vm1125, %v1177, %v1186
      %v1189 = vshrl.u32 %v938, 16
      %v1191 = vrot.slane %v1189, 3
      %v1192 = vshll.u32 %v938, 16
      %v1194 = vrot.slane %v1192, 4
      %v1195 = vor.u32 %v1191, %v1194
      %v1196 = vsel %vm1125, %v1186, %v1195
      %v1198 = vshrl.u32 %v939, 16
      %v1200 = vrot.slane %v1198, 3
      %v1201 = vshll.u32 %v939, 16
      %v1203 = vrot.slane %v1201, 4
      %v1204 = vor.u32 %v1200, %v1203
      %v1205 = vsel %vm1125, %v1195, %v1204
      %v1207 = vshrl.u32 %v940, 16
      %v1209 = vrot.slane %v1207, 3
      %v1210 = vshll.u32 %v940, 16
      %v1212 = vrot.slane %v1210, 4
      %v1213 = vor.u32 %v1209, %v1212
      %v1214 = vsel %vm1125, %v1204, %v1213
      %v1216 = vshrl.u32 %v941, 16
      %v1218 = vrot.slane %v1216, 3
      %v1219 = vshll.u32 %v941, 16
      %v1221 = vrot.slane %v1219, 4
      %v1222 = vor.u32 %v1218, %v1221
      %v1223 = vsel %vm1125, %v1213, %v1222
      %v1225 = vshrl.u32 %v942, 16
      %v1227 = vrot.slane %v1225, 3
      %v1228 = vshll.u32 %v942, 16
      %v1230 = vrot.slane %v1228, 4
      %v1231 = vor.u32 %v1227, %v1230
      %v1232 = vsel %vm1125, %v1222, %v1231
      %v1234 = vshrl.u32 %v943, 16
      %v1236 = vrot.slane %v1234, 3
      %v1237 = vshll.u32 %v943, 16
      %v1239 = vrot.slane %v1237, 4
      %v1240 = vor.u32 %v1236, %v1239
      %v1241 = vsel %vm1125, %v1231, %v1240
      %v1243 = vshrl.u32 %v944, 16
      %v1245 = vrot.slane %v1243, 3
      %v1246 = vshll.u32 %v944, 16
      %v1248 = vrot.slane %v1246, 4
      %v1249 = vor.u32 %v1245, %v1248
      %v1250 = vsel %vm1125, %v1240, %v1249
      %v1252 = vshrl.u32 %v945, 16
      %v1254 = vrot.slane %v1252, 3
      %v1255 = vshll.u32 %v945, 16
      %v1257 = vrot.slane %v1255, 4
      %v1258 = vor.u32 %v1254, %v1257
      %v1259 = vsel %vm1125, %v1249, %v1258
      %v1261 = vshrl.u32 %v946, 16
      %v1263 = vrot.slane %v1261, 3
      %v1264 = vshll.u32 %v946, 16
      %v1266 = vrot.slane %v1264, 4
      %v1267 = vor.u32 %v1263, %v1266
      %v1268 = vsel %vm1125, %v1258, %v1267
      %v1286 = vmul.bf16 %v1133, 0
      %v1287 = vmul.bf16 %v461, %v1142
      %v1288 = vmul.bf16 %v414, %v1151
      %v1289 = vmul.bf16 %v416, %v1160
      %v1290 = vmul.bf16 %v418, %v1169
      %v1291 = vmul.bf16 %v420, %v1178
      %v1292 = vmul.bf16 %v422, %v1187
      %v1293 = vmul.bf16 %v424, %v1196
      %v1294 = vmul.bf16 %v426, %v1205
      %v1295 = vmul.bf16 %v428, %v1214
      %v1296 = vmul.bf16 %v430, %v1223
      %v1297 = vmul.bf16 %v432, %v1232
      %v1298 = vmul.bf16 %v434, %v1241
      %v1299 = vmul.bf16 %v436, %v1250
      %v1300 = vmul.bf16 %v438, %v1259
      %v1301 = vmul.bf16 %v440, %v1268
      %v1302 = vmul.bf16 %v442, %v1267
      %v1303 = vmul.bf16 %v461, %v955
      %v1304 = vmul.bf16 %v414, %v964
      %v1305 = vmul.bf16 %v416, %v973
      %v1306 = vmul.bf16 %v418, %v982
      %v1307 = vmul.bf16 %v420, %v991
      %v1308 = vmul.bf16 %v422, %v1000
      %v1309 = vmul.bf16 %v424, %v1009
      %v1310 = vmul.bf16 %v426, %v1018
      %v1311 = vmul.bf16 %v428, %v1027
      %v1312 = vmul.bf16 %v430, %v1036
      %v1313 = vmul.bf16 %v432, %v1045
      %v1314 = vmul.bf16 %v434, %v1054
      %v1315 = vmul.bf16 %v436, %v1063
      %v1316 = vmul.bf16 %v438, %v1072
      %v1317 = vmul.bf16 %v440, %v1081
      %v1318 = vmul.bf16 %v442, %v1090
      %v1319 = vmul.bf16 %v464, %v1089
      %v1320 = vmul.bf16 %v461, %v1133
      %v1321 = vmul.bf16 %v414, %v1142
      %v1322 = vmul.bf16 %v416, %v1151
      %v1323 = vmul.bf16 %v418, %v1160
      %v1324 = vmul.bf16 %v420, %v1169
      %v1325 = vmul.bf16 %v422, %v1178
      %v1326 = vmul.bf16 %v424, %v1187
      %v1327 = vmul.bf16 %v426, %v1196
      %v1328 = vmul.bf16 %v428, %v1205
      %v1329 = vmul.bf16 %v430, %v1214
      %v1330 = vmul.bf16 %v432, %v1223
      %v1331 = vmul.bf16 %v434, %v1232
      %v1332 = vmul.bf16 %v436, %v1241
      %v1333 = vmul.bf16 %v438, %v1250
      %v1334 = vmul.bf16 %v440, %v1259
      %v1335 = vmul.bf16 %v442, %v1268
      %v1336 = vmul.bf16 %v464, %v1267
      %v1337 = vmul.bf16 %v414, %v955
      %v1338 = vmul.bf16 %v416, %v964
      %v1339 = vmul.bf16 %v418, %v973
      %v1340 = vmul.bf16 %v420, %v982
      %v1341 = vmul.bf16 %v422, %v991
      %v1342 = vmul.bf16 %v424, %v1000
      %v1343 = vmul.bf16 %v426, %v1009
      %v1344 = vmul.bf16 %v428, %v1018
      %v1345 = vmul.bf16 %v430, %v1027
      %v1346 = vmul.bf16 %v432, %v1036
      %v1347 = vmul.bf16 %v434, %v1045
      %v1348 = vmul.bf16 %v436, %v1054
      %v1349 = vmul.bf16 %v438, %v1063
      %v1350 = vmul.bf16 %v440, %v1072
      %v1351 = vmul.bf16 %v442, %v1081
      %v1352 = vmul.bf16 %v464, %v1090
      %v1353 = vmul.bf16 %v1089, 0
      %v1354 = vmul.bf16 %v414, %v1133
      %v1355 = vmul.bf16 %v416, %v1142
      %v1356 = vmul.bf16 %v418, %v1151
      %v1357 = vmul.bf16 %v420, %v1160
      %v1358 = vmul.bf16 %v422, %v1169
      %v1359 = vmul.bf16 %v424, %v1178
      %v1360 = vmul.bf16 %v426, %v1187
      %v1361 = vmul.bf16 %v428, %v1196
      %v1362 = vmul.bf16 %v430, %v1205
      %v1363 = vmul.bf16 %v432, %v1214
      %v1364 = vmul.bf16 %v434, %v1223
      %v1365 = vmul.bf16 %v436, %v1232
      %v1366 = vmul.bf16 %v438, %v1241
      %v1367 = vmul.bf16 %v440, %v1250
      %v1368 = vmul.bf16 %v442, %v1259
      %v1369 = vmul.bf16 %v464, %v1268
      %v1370 = vmul.bf16 %v1267, 0
      %vm1371 = vsmask.f32 7424
      %v1372 = vshrl.u32 0, 16
      %v1374 = vshll.u32 0, 16
      %v1376 = vrot.slane %v1374, 1
      %v1377 = vor.u32 %v1372, %v1376
      %v1378 = vshll.u32 %v461, 16
      %v1380 = vrot.slane %v1378, 1
      %v1381 = vsel %vm1371, %v1377, %v1380
      %v1382 = vshrl.u32 %v461, 16
      %v1384 = vor.u32 %v1382, %v1380
      %v1386 = vshll.u32 %v414, 16
      %v1388 = vrot.slane %v1386, 1
      %v1389 = vsel %vm1371, %v1384, %v1388
      %v1390 = vshrl.u32 %v414, 16
      %v1392 = vor.u32 %v1390, %v1388
      %v1394 = vshll.u32 %v416, 16
      %v1396 = vrot.slane %v1394, 1
      %v1397 = vsel %vm1371, %v1392, %v1396
      %v1398 = vshrl.u32 %v416, 16
      %v1400 = vor.u32 %v1398, %v1396
      %v1402 = vshll.u32 %v418, 16
      %v1404 = vrot.slane %v1402, 1
      %v1405 = vsel %vm1371, %v1400, %v1404
      %v1406 = vshrl.u32 %v418, 16
      %v1408 = vor.u32 %v1406, %v1404
      %v1410 = vshll.u32 %v420, 16
      %v1412 = vrot.slane %v1410, 1
      %v1413 = vsel %vm1371, %v1408, %v1412
      %v1414 = vshrl.u32 %v420, 16
      %v1416 = vor.u32 %v1414, %v1412
      %v1418 = vshll.u32 %v422, 16
      %v1420 = vrot.slane %v1418, 1
      %v1421 = vsel %vm1371, %v1416, %v1420
      %v1422 = vshrl.u32 %v422, 16
      %v1424 = vor.u32 %v1422, %v1420
      %v1426 = vshll.u32 %v424, 16
      %v1428 = vrot.slane %v1426, 1
      %v1429 = vsel %vm1371, %v1424, %v1428
      %v1430 = vshrl.u32 %v424, 16
      %v1432 = vor.u32 %v1430, %v1428
      %v1434 = vshll.u32 %v426, 16
      %v1436 = vrot.slane %v1434, 1
      %v1437 = vsel %vm1371, %v1432, %v1436
      %v1438 = vshrl.u32 %v426, 16
      %v1440 = vor.u32 %v1438, %v1436
      %v1442 = vshll.u32 %v428, 16
      %v1444 = vrot.slane %v1442, 1
      %v1445 = vsel %vm1371, %v1440, %v1444
      %v1446 = vshrl.u32 %v428, 16
      %v1448 = vor.u32 %v1446, %v1444
      %v1450 = vshll.u32 %v430, 16
      %v1452 = vrot.slane %v1450, 1
      %v1453 = vsel %vm1371, %v1448, %v1452
      %v1454 = vshrl.u32 %v430, 16
      %v1456 = vor.u32 %v1454, %v1452
      %v1458 = vshll.u32 %v432, 16
      %v1460 = vrot.slane %v1458, 1
      %v1461 = vsel %vm1371, %v1456, %v1460
      %v1462 = vshrl.u32 %v432, 16
      %v1464 = vor.u32 %v1462, %v1460
      %v1466 = vshll.u32 %v434, 16
      %v1468 = vrot.slane %v1466, 1
      %v1469 = vsel %vm1371, %v1464, %v1468
      %v1470 = vshrl.u32 %v434, 16
      %v1472 = vor.u32 %v1470, %v1468
      %v1474 = vshll.u32 %v436, 16
      %v1476 = vrot.slane %v1474, 1
      %v1477 = vsel %vm1371, %v1472, %v1476
      %v1478 = vshrl.u32 %v436, 16
      %v1480 = vor.u32 %v1478, %v1476
      %v1482 = vshll.u32 %v438, 16
      %v1484 = vrot.slane %v1482, 1
      %v1485 = vsel %vm1371, %v1480, %v1484
      %v1486 = vshrl.u32 %v438, 16
      %v1488 = vor.u32 %v1486, %v1484
      %v1490 = vshll.u32 %v440, 16
      %v1492 = vrot.slane %v1490, 1
      %v1493 = vsel %vm1371, %v1488, %v1492
      %v1494 = vshrl.u32 %v440, 16
      %v1496 = vor.u32 %v1494, %v1492
      %v1498 = vshll.u32 %v442, 16
      %v1500 = vrot.slane %v1498, 1
      %v1501 = vsel %vm1371, %v1496, %v1500
      %v1502 = vshrl.u32 %v442, 16
      %v1504 = vor.u32 %v1502, %v1500
      %1505 = vrot.lane.b32.xlu0 %v1381, 4
      %v1506 = vpop.permute.xlu0 %1505
      %1507 = vrot.lane.b32.xlu0 %v1389, 4
      %v1508 = vpop.permute.xlu0 %1507
      %1509 = vrot.lane.b32.xlu0 %v1397, 4
      %v1510 = vpop.permute.xlu0 %1509
      %1511 = vrot.lane.b32.xlu0 %v1405, 4
      %v1512 = vpop.permute.xlu0 %1511
      %1513 = vrot.lane.b32.xlu0 %v1413, 4
      %v1514 = vpop.permute.xlu0 %1513
      %1515 = vrot.lane.b32.xlu0 %v1421, 4
      %v1516 = vpop.permute.xlu0 %1515
      %1517 = vrot.lane.b32.xlu0 %v1429, 4
      %v1518 = vpop.permute.xlu0 %1517
      %1519 = vrot.lane.b32.xlu0 %v1437, 4
      %v1520 = vpop.permute.xlu0 %1519
      %1521 = vrot.lane.b32.xlu0 %v1445, 4
      %v1522 = vpop.permute.xlu0 %1521
      %1523 = vrot.lane.b32.xlu0 %v1453, 4
      %v1524 = vpop.permute.xlu0 %1523
      %1525 = vrot.lane.b32.xlu0 %v1461, 4
      %v1526 = vpop.permute.xlu0 %1525
      %1527 = vrot.lane.b32.xlu0 %v1469, 4
      %v1528 = vpop.permute.xlu0 %1527
      %1529 = vrot.lane.b32.xlu0 %v1477, 4
      %v1530 = vpop.permute.xlu0 %1529
      %1531 = vrot.lane.b32.xlu0 %v1485, 4
      %v1532 = vpop.permute.xlu0 %1531
      %1533 = vrot.lane.b32.xlu0 %v1493, 4
      %v1534 = vpop.permute.xlu0 %1533
      %1535 = vrot.lane.b32.xlu0 %v1501, 4
      %v1536 = vpop.permute.xlu0 %1535
      %1537 = vrot.lane.b32.xlu0 %v1504, 4
      %v1538 = vpop.permute.xlu0 %1537
      %vm1556 = vcmask 1046528
      %v1557 = vrot.slane %v1286, 1
      %v1558 = vrot.slane %v1287, 1
      %v1559 = vsel %vm1556, %v1557, %v1558
      %v1560 = vrot.slane %v1288, 1
      %v1561 = vsel %vm1556, %v1558, %v1560
      %v1562 = vrot.slane %v1289, 1
      %v1563 = vsel %vm1556, %v1560, %v1562
      %v1564 = vrot.slane %v1290, 1
      %v1565 = vsel %vm1556, %v1562, %v1564
      %v1566 = vrot.slane %v1291, 1
      %v1567 = vsel %vm1556, %v1564, %v1566
      %v1568 = vrot.slane %v1292, 1
      %v1569 = vsel %vm1556, %v1566, %v1568
      %v1570 = vrot.slane %v1293, 1
      %v1571 = vsel %vm1556, %v1568, %v1570
      %v1572 = vrot.slane %v1294, 1
      %v1573 = vsel %vm1556, %v1570, %v1572
      %v1574 = vrot.slane %v1295, 1
      %v1575 = vsel %vm1556, %v1572, %v1574
      %v1576 = vrot.slane %v1296, 1
      %v1577 = vsel %vm1556, %v1574, %v1576
      %v1578 = vrot.slane %v1297, 1
      %v1579 = vsel %vm1556, %v1576, %v1578
      %v1580 = vrot.slane %v1298, 1
      %v1581 = vsel %vm1556, %v1578, %v1580
      %v1582 = vrot.slane %v1299, 1
      %v1583 = vsel %vm1556, %v1580, %v1582
      %v1584 = vrot.slane %v1300, 1
      %v1585 = vsel %vm1556, %v1582, %v1584
      %v1586 = vrot.slane %v1301, 1
      %v1587 = vsel %vm1556, %v1584, %v1586
      %v1588 = vrot.slane %v1302, 1
      %v1589 = vsel %vm1556, %v1586, %v1588
      %1590 = vrot.lane.b32.xlu0 %v1559, 8
      %v1591 = vpop.permute.xlu0 %1590
      %1592 = vrot.lane.b32.xlu0 %v1561, 8
      %v1593 = vpop.permute.xlu0 %1592
      %1594 = vrot.lane.b32.xlu0 %v1563, 8
      %v1595 = vpop.permute.xlu0 %1594
      %1596 = vrot.lane.b32.xlu0 %v1565, 8
      %v1597 = vpop.permute.xlu0 %1596
      %1598 = vrot.lane.b32.xlu0 %v1567, 8
      %v1599 = vpop.permute.xlu0 %1598
      %1600 = vrot.lane.b32.xlu0 %v1569, 8
      %v1601 = vpop.permute.xlu0 %1600
      %1602 = vrot.lane.b32.xlu0 %v1571, 8
      %v1603 = vpop.permute.xlu0 %1602
      %1604 = vrot.lane.b32.xlu0 %v1573, 8
      %v1605 = vpop.permute.xlu0 %1604
      %1606 = vrot.lane.b32.xlu0 %v1575, 8
      %v1607 = vpop.permute.xlu0 %1606
      %1608 = vrot.lane.b32.xlu0 %v1577, 8
      %v1609 = vpop.permute.xlu0 %1608
      %1610 = vrot.lane.b32.xlu0 %v1579, 8
      %v1611 = vpop.permute.xlu0 %1610
      %1612 = vrot.lane.b32.xlu0 %v1581, 8
      %v1613 = vpop.permute.xlu0 %1612
      %1614 = vrot.lane.b32.xlu0 %v1583, 8
      %v1615 = vpop.permute.xlu0 %1614
      %1616 = vrot.lane.b32.xlu0 %v1585, 8
      %v1617 = vpop.permute.xlu0 %1616
      %1618 = vrot.lane.b32.xlu0 %v1587, 8
      %v1619 = vpop.permute.xlu0 %1618
      %1620 = vrot.lane.b32.xlu0 %v1589, 8
      %v1621 = vpop.permute.xlu0 %1620
      %1622 = vrot.lane.b32.xlu0 %v1588, 8
      %v1623 = vpop.permute.xlu0 %1622
      %1641 = vrot.lane.b32.xlu0 %v1303, 12
      %v1642 = vpop.permute.xlu0 %1641
      %1643 = vrot.lane.b32.xlu0 %v1304, 12
      %v1644 = vpop.permute.xlu0 %1643
      %1645 = vrot.lane.b32.xlu0 %v1305, 12
      %v1646 = vpop.permute.xlu0 %1645
      %1647 = vrot.lane.b32.xlu0 %v1306, 12
      %v1648 = vpop.permute.xlu0 %1647
      %1649 = vrot.lane.b32.xlu0 %v1307, 12
      %v1650 = vpop.permute.xlu0 %1649
      %1651 = vrot.lane.b32.xlu0 %v1308, 12
      %v1652 = vpop.permute.xlu0 %1651
      %1653 = vrot.lane.b32.xlu0 %v1309, 12
      %v1654 = vpop.permute.xlu0 %1653
      %1655 = vrot.lane.b32.xlu0 %v1310, 12
      %v1656 = vpop.permute.xlu0 %1655
      %1657 = vrot.lane.b32.xlu0 %v1311, 12
      %v1658 = vpop.permute.xlu0 %1657
      %1659 = vrot.lane.b32.xlu0 %v1312, 12
      %v1660 = vpop.permute.xlu0 %1659
      %1661 = vrot.lane.b32.xlu0 %v1313, 12
      %v1662 = vpop.permute.xlu0 %1661
      %1663 = vrot.lane.b32.xlu0 %v1314, 12
      %v1664 = vpop.permute.xlu0 %1663
      %1665 = vrot.lane.b32.xlu0 %v1315, 12
      %v1666 = vpop.permute.xlu0 %1665
      %1667 = vrot.lane.b32.xlu0 %v1316, 12
      %v1668 = vpop.permute.xlu0 %1667
      %1669 = vrot.lane.b32.xlu0 %v1317, 12
      %v1670 = vpop.permute.xlu0 %1669
      %1671 = vrot.lane.b32.xlu0 %v1318, 12
      %v1672 = vpop.permute.xlu0 %1671
      %1673 = vrot.lane.b32.xlu0 %v1319, 12
      %v1674 = vpop.permute.xlu0 %1673
      %v1675 = vshll.u32 %v464, 16
      %v1677 = vrot.slane %v1675, 1
      %v1678 = vsel %vm1371, %v1504, %v1677
      %v1679 = vshrl.u32 %v464, 16
      %v1681 = vor.u32 %v1679, %v1677
      %1682 = vrot.lane.b32.xlu0 %v1389, 16
      %v1683 = vpop.permute.xlu0 %1682
      %1684 = vrot.lane.b32.xlu0 %v1397, 16
      %v1685 = vpop.permute.xlu0 %1684
      %1686 = vrot.lane.b32.xlu0 %v1405, 16
      %v1687 = vpop.permute.xlu0 %1686
      %1688 = vrot.lane.b32.xlu0 %v1413, 16
      %v1689 = vpop.permute.xlu0 %1688
      %1690 = vrot.lane.b32.xlu0 %v1421, 16
      %v1691 = vpop.permute.xlu0 %1690
      %1692 = vrot.lane.b32.xlu0 %v1429, 16
      %v1693 = vpop.permute.xlu0 %1692
      %1694 = vrot.lane.b32.xlu0 %v1437, 16
      %v1695 = vpop.permute.xlu0 %1694
      %1696 = vrot.lane.b32.xlu0 %v1445, 16
      %v1697 = vpop.permute.xlu0 %1696
      %1698 = vrot.lane.b32.xlu0 %v1453, 16
      %v1699 = vpop.permute.xlu0 %1698
      %1700 = vrot.lane.b32.xlu0 %v1461, 16
      %v1701 = vpop.permute.xlu0 %1700
      %1702 = vrot.lane.b32.xlu0 %v1469, 16
      %v1703 = vpop.permute.xlu0 %1702
      %1704 = vrot.lane.b32.xlu0 %v1477, 16
      %v1705 = vpop.permute.xlu0 %1704
      %1706 = vrot.lane.b32.xlu0 %v1485, 16
      %v1707 = vpop.permute.xlu0 %1706
      %1708 = vrot.lane.b32.xlu0 %v1493, 16
      %v1709 = vpop.permute.xlu0 %1708
      %1710 = vrot.lane.b32.xlu0 %v1501, 16
      %v1711 = vpop.permute.xlu0 %1710
      %1712 = vrot.lane.b32.xlu0 %v1678, 16
      %v1713 = vpop.permute.xlu0 %1712
      %1714 = vrot.lane.b32.xlu0 %v1681, 16
      %v1715 = vpop.permute.xlu0 %1714
      %v1733 = vrot.slane %v1320, 1
      %v1734 = vrot.slane %v1321, 1
      %v1735 = vsel %vm1556, %v1733, %v1734
      %v1736 = vrot.slane %v1322, 1
      %v1737 = vsel %vm1556, %v1734, %v1736
      %v1738 = vrot.slane %v1323, 1
      %v1739 = vsel %vm1556, %v1736, %v1738
      %v1740 = vrot.slane %v1324, 1
      %v1741 = vsel %vm1556, %v1738, %v1740
      %v1742 = vrot.slane %v1325, 1
      %v1743 = vsel %vm1556, %v1740, %v1742
      %v1744 = vrot.slane %v1326, 1
      %v1745 = vsel %vm1556, %v1742, %v1744
      %v1746 = vrot.slane %v1327, 1
      %v1747 = vsel %vm1556, %v1744, %v1746
      %v1748 = vrot.slane %v1328, 1
      %v1749 = vsel %vm1556, %v1746, %v1748
      %v1750 = vrot.slane %v1329, 1
      %v1751 = vsel %vm1556, %v1748, %v1750
      %v1752 = vrot.slane %v1330, 1
      %v1753 = vsel %vm1556, %v1750, %v1752
      %v1754 = vrot.slane %v1331, 1
      %v1755 = vsel %vm1556, %v1752, %v1754
      %v1756 = vrot.slane %v1332, 1
      %v1757 = vsel %vm1556, %v1754, %v1756
      %v1758 = vrot.slane %v1333, 1
      %v1759 = vsel %vm1556, %v1756, %v1758
      %v1760 = vrot.slane %v1334, 1
      %v1761 = vsel %vm1556, %v1758, %v1760
      %v1762 = vrot.slane %v1335, 1
      %v1763 = vsel %vm1556, %v1760, %v1762
      %v1764 = vrot.slane %v1336, 1
      %v1765 = vsel %vm1556, %v1762, %v1764
      %1766 = vrot.lane.b32.xlu0 %v1735, 20
      %v1767 = vpop.permute.xlu0 %1766
      %1768 = vrot.lane.b32.xlu0 %v1737, 20
      %v1769 = vpop.permute.xlu0 %1768
      %1770 = vrot.lane.b32.xlu0 %v1739, 20
      %v1771 = vpop.permute.xlu0 %1770
      %1772 = vrot.lane.b32.xlu0 %v1741, 20
      %v1773 = vpop.permute.xlu0 %1772
      %1774 = vrot.lane.b32.xlu0 %v1743, 20
      %v1775 = vpop.permute.xlu0 %1774
      %1776 = vrot.lane.b32.xlu0 %v1745, 20
      %v1777 = vpop.permute.xlu0 %1776
      %1778 = vrot.lane.b32.xlu0 %v1747, 20
      %v1779 = vpop.permute.xlu0 %1778
      %1780 = vrot.lane.b32.xlu0 %v1749, 20
      %v1781 = vpop.permute.xlu0 %1780
      %1782 = vrot.lane.b32.xlu0 %v1751, 20
      %v1783 = vpop.permute.xlu0 %1782
      %1784 = vrot.lane.b32.xlu0 %v1753, 20
      %v1785 = vpop.permute.xlu0 %1784
      %1786 = vrot.lane.b32.xlu0 %v1755, 20
      %v1787 = vpop.permute.xlu0 %1786
      %1788 = vrot.lane.b32.xlu0 %v1757, 20
      %v1789 = vpop.permute.xlu0 %1788
      %1790 = vrot.lane.b32.xlu0 %v1759, 20
      %v1791 = vpop.permute.xlu0 %1790
      %1792 = vrot.lane.b32.xlu0 %v1761, 20
      %v1793 = vpop.permute.xlu0 %1792
      %1794 = vrot.lane.b32.xlu0 %v1763, 20
      %v1795 = vpop.permute.xlu0 %1794
      %1796 = vrot.lane.b32.xlu0 %v1765, 20
      %v1797 = vpop.permute.xlu0 %1796
      %1798 = vrot.lane.b32.xlu0 %v1764, 20
      %v1799 = vpop.permute.xlu0 %1798
      %1817 = vrot.lane.b32.xlu0 %v1337, 24
      %v1818 = vpop.permute.xlu0 %1817
      %1819 = vrot.lane.b32.xlu0 %v1338, 24
      %v1820 = vpop.permute.xlu0 %1819
      %1821 = vrot.lane.b32.xlu0 %v1339, 24
      %v1822 = vpop.permute.xlu0 %1821
      %1823 = vrot.lane.b32.xlu0 %v1340, 24
      %v1824 = vpop.permute.xlu0 %1823
      %1825 = vrot.lane.b32.xlu0 %v1341, 24
      %v1826 = vpop.permute.xlu0 %1825
      %1827 = vrot.lane.b32.xlu0 %v1342, 24
      %v1828 = vpop.permute.xlu0 %1827
      %1829 = vrot.lane.b32.xlu0 %v1343, 24
      %v1830 = vpop.permute.xlu0 %1829
      %1831 = vrot.lane.b32.xlu0 %v1344, 24
      %v1832 = vpop.permute.xlu0 %1831
      %1833 = vrot.lane.b32.xlu0 %v1345, 24
      %v1834 = vpop.permute.xlu0 %1833
      %1835 = vrot.lane.b32.xlu0 %v1346, 24
      %v1836 = vpop.permute.xlu0 %1835
      %1837 = vrot.lane.b32.xlu0 %v1347, 24
      %v1838 = vpop.permute.xlu0 %1837
      %1839 = vrot.lane.b32.xlu0 %v1348, 24
      %v1840 = vpop.permute.xlu0 %1839
      %1841 = vrot.lane.b32.xlu0 %v1349, 24
      %v1842 = vpop.permute.xlu0 %1841
      %1843 = vrot.lane.b32.xlu0 %v1350, 24
      %v1844 = vpop.permute.xlu0 %1843
      %1845 = vrot.lane.b32.xlu0 %v1351, 24
      %v1846 = vpop.permute.xlu0 %1845
      %1847 = vrot.lane.b32.xlu0 %v1352, 24
      %v1848 = vpop.permute.xlu0 %1847
      %1849 = vrot.lane.b32.xlu0 %v1353, 24
      %v1850 = vpop.permute.xlu0 %1849
      %v1851 = vsel %vm1371, %v1681, %v1376
      %1852 = vrot.lane.b32.xlu0 %v1397, 28
      %v1853 = vpop.permute.xlu0 %1852
      %1854 = vrot.lane.b32.xlu0 %v1405, 28
      %v1855 = vpop.permute.xlu0 %1854
      %1856 = vrot.lane.b32.xlu0 %v1413, 28
      %v1857 = vpop.permute.xlu0 %1856
      %1858 = vrot.lane.b32.xlu0 %v1421, 28
      %v1859 = vpop.permute.xlu0 %1858
      %1860 = vrot.lane.b32.xlu0 %v1429, 28
      %v1861 = vpop.permute.xlu0 %1860
      %1862 = vrot.lane.b32.xlu0 %v1437, 28
      %v1863 = vpop.permute.xlu0 %1862
      %1864 = vrot.lane.b32.xlu0 %v1445, 28
      %v1865 = vpop.permute.xlu0 %1864
      %1866 = vrot.lane.b32.xlu0 %v1453, 28
      %v1867 = vpop.permute.xlu0 %1866
      %1868 = vrot.lane.b32.xlu0 %v1461, 28
      %v1869 = vpop.permute.xlu0 %1868
      %1870 = vrot.lane.b32.xlu0 %v1469, 28
      %v1871 = vpop.permute.xlu0 %1870
      %1872 = vrot.lane.b32.xlu0 %v1477, 28
      %v1873 = vpop.permute.xlu0 %1872
      %1874 = vrot.lane.b32.xlu0 %v1485, 28
      %v1875 = vpop.permute.xlu0 %1874
      %1876 = vrot.lane.b32.xlu0 %v1493, 28
      %v1877 = vpop.permute.xlu0 %1876
      %1878 = vrot.lane.b32.xlu0 %v1501, 28
      %v1879 = vpop.permute.xlu0 %1878
      %1880 = vrot.lane.b32.xlu0 %v1678, 28
      %v1881 = vpop.permute.xlu0 %1880
      %1882 = vrot.lane.b32.xlu0 %v1851, 28
      %v1883 = vpop.permute.xlu0 %1882
      %1884 = vrot.lane.b32.xlu0 %v1377, 28
      %v1885 = vpop.permute.xlu0 %1884
      %v1903 = vrot.slane %v1354, 1
      %v1904 = vrot.slane %v1355, 1
      %v1905 = vsel %vm1556, %v1903, %v1904
      %v1906 = vrot.slane %v1356, 1
      %v1907 = vsel %vm1556, %v1904, %v1906
      %v1908 = vrot.slane %v1357, 1
      %v1909 = vsel %vm1556, %v1906, %v1908
      %v1910 = vrot.slane %v1358, 1
      %v1911 = vsel %vm1556, %v1908, %v1910
      %v1912 = vrot.slane %v1359, 1
      %v1913 = vsel %vm1556, %v1910, %v1912
      %v1914 = vrot.slane %v1360, 1
      %v1915 = vsel %vm1556, %v1912, %v1914
      %v1916 = vrot.slane %v1361, 1
      %v1917 = vsel %vm1556, %v1914, %v1916
      %v1918 = vrot.slane %v1362, 1
      %v1919 = vsel %vm1556, %v1916, %v1918
      %v1920 = vrot.slane %v1363, 1
      %v1921 = vsel %vm1556, %v1918, %v1920
      %v1922 = vrot.slane %v1364, 1
      %v1923 = vsel %vm1556, %v1920, %v1922
      %v1924 = vrot.slane %v1365, 1
      %v1925 = vsel %vm1556, %v1922, %v1924
      %v1926 = vrot.slane %v1366, 1
      %v1927 = vsel %vm1556, %v1924, %v1926
      %v1928 = vrot.slane %v1367, 1
      %v1929 = vsel %vm1556, %v1926, %v1928
      %v1930 = vrot.slane %v1368, 1
      %v1931 = vsel %vm1556, %v1928, %v1930
      %v1932 = vrot.slane %v1369, 1
      %v1933 = vsel %vm1556, %v1930, %v1932
      %v1934 = vrot.slane %v1370, 1
      %v1935 = vsel %vm1556, %v1932, %v1934
      %1936 = vrot.lane.b32.xlu0 %v1905, 32
      %v1937 = vpop.permute.xlu0 %1936
      %1938 = vrot.lane.b32.xlu0 %v1907, 32
      %v1939 = vpop.permute.xlu0 %1938
      %1940 = vrot.lane.b32.xlu0 %v1909, 32
      %v1941 = vpop.permute.xlu0 %1940
      %1942 = vrot.lane.b32.xlu0 %v1911, 32
      %v1943 = vpop.permute.xlu0 %1942
      %1944 = vrot.lane.b32.xlu0 %v1913, 32
      %v1945 = vpop.permute.xlu0 %1944
      %1946 = vrot.lane.b32.xlu0 %v1915, 32
      %v1947 = vpop.permute.xlu0 %1946
      %1948 = vrot.lane.b32.xlu0 %v1917, 32
      %v1949 = vpop.permute.xlu0 %1948
      %1950 = vrot.lane.b32.xlu0 %v1919, 32
      %v1951 = vpop.permute.xlu0 %1950
      %1952 = vrot.lane.b32.xlu0 %v1921, 32
      %v1953 = vpop.permute.xlu0 %1952
      %1954 = vrot.lane.b32.xlu0 %v1923, 32
      %v1955 = vpop.permute.xlu0 %1954
      %1956 = vrot.lane.b32.xlu0 %v1925, 32
      %v1957 = vpop.permute.xlu0 %1956
      %1958 = vrot.lane.b32.xlu0 %v1927, 32
      %v1959 = vpop.permute.xlu0 %1958
      %1960 = vrot.lane.b32.xlu0 %v1929, 32
      %v1961 = vpop.permute.xlu0 %1960
      %1962 = vrot.lane.b32.xlu0 %v1931, 32
      %v1963 = vpop.permute.xlu0 %1962
      %1964 = vrot.lane.b32.xlu0 %v1933, 32
      %v1965 = vpop.permute.xlu0 %1964
      %1966 = vrot.lane.b32.xlu0 %v1935, 32
      %v1967 = vpop.permute.xlu0 %1966
      %1968 = vrot.lane.b32.xlu0 %v1934, 32
      %v1969 = vpop.permute.xlu0 %1968
      %vm1970 = vcmask 31744
      %v1973 = vsel %vm1970, %v1108, %v1506
      %v1976 = vsel %vm1970, %v1109, %v1508
      %v1979 = vsel %vm1970, %v1110, %v1510
      %v1982 = vsel %vm1970, %v1111, %v1512
      %v1985 = vsel %vm1970, %v1112, %v1514
      %v1988 = vsel %vm1970, %v1113, %v1516
      %v1991 = vsel %vm1970, %v1114, %v1518
      %v1994 = vsel %vm1970, %v1115, %v1520
      %v1997 = vsel %vm1970, %v1116, %v1522
      %v2000 = vsel %vm1970, %v1117, %v1524
      %v2003 = vsel %vm1970, %v1118, %v1526
      %v2006 = vsel %vm1970, %v1119, %v1528
      %v2009 = vsel %vm1970, %v1120, %v1530
      %v2012 = vsel %vm1970, %v1121, %v1532
      %v2015 = vsel %vm1970, %v1122, %v1534
      %v2018 = vsel %vm1970, %v1123, %v1536
      %v2021 = vsel %vm1970, %v1124, %v1538
      %vm2022 = vcmask 64512
      %v2024 = vsel %vm2022, %v1973, %v1591
      %v2026 = vsel %vm2022, %v1976, %v1593
      %v2028 = vsel %vm2022, %v1979, %v1595
      %v2030 = vsel %vm2022, %v1982, %v1597
      %v2032 = vsel %vm2022, %v1985, %v1599
      %v2034 = vsel %vm2022, %v1988, %v1601
      %v2036 = vsel %vm2022, %v1991, %v1603
      %v2038 = vsel %vm2022, %v1994, %v1605
      %v2040 = vsel %vm2022, %v1997, %v1607
      %v2042 = vsel %vm2022, %v2000, %v1609
      %v2044 = vsel %vm2022, %v2003, %v1611
      %v2046 = vsel %vm2022, %v2006, %v1613
      %v2048 = vsel %vm2022, %v2009, %v1615
      %v2050 = vsel %vm2022, %v2012, %v1617
      %v2052 = vsel %vm2022, %v2015, %v1619
      %v2054 = vsel %vm2022, %v2018, %v1621
      %v2056 = vsel %vm2022, %v2021, %v1623
      %vm2057 = vcmask 97280
      %v2059 = vsel %vm2057, %v2024, %v1642
      %v2061 = vsel %vm2057, %v2026, %v1644
      %v2063 = vsel %vm2057, %v2028, %v1646
      %v2065 = vsel %vm2057, %v2030, %v1648
      %v2067 = vsel %vm2057, %v2032, %v1650
      %v2069 = vsel %vm2057, %v2034, %v1652
      %v2071 = vsel %vm2057, %v2036, %v1654
      %v2073 = vsel %vm2057, %v2038, %v1656
      %v2075 = vsel %vm2057, %v2040, %v1658
      %v2077 = vsel %vm2057, %v2042, %v1660
      %v2079 = vsel %vm2057, %v2044, %v1662
      %v2081 = vsel %vm2057, %v2046, %v1664
      %v2083 = vsel %vm2057, %v2048, %v1666
      %v2085 = vsel %vm2057, %v2050, %v1668
      %v2087 = vsel %vm2057, %v2052, %v1670
      %v2089 = vsel %vm2057, %v2054, %v1672
      %v2091 = vsel %vm2057, %v2056, %v1674
      %vm2092 = vcmask 130048
      %v2094 = vsel %vm2092, %v2059, %v1683
      %v2096 = vsel %vm2092, %v2061, %v1685
      %v2098 = vsel %vm2092, %v2063, %v1687
      %v2100 = vsel %vm2092, %v2065, %v1689
      %v2102 = vsel %vm2092, %v2067, %v1691
      %v2104 = vsel %vm2092, %v2069, %v1693
      %v2106 = vsel %vm2092, %v2071, %v1695
      %v2108 = vsel %vm2092, %v2073, %v1697
      %v2110 = vsel %vm2092, %v2075, %v1699
      %v2112 = vsel %vm2092, %v2077, %v1701
      %v2114 = vsel %vm2092, %v2079, %v1703
      %v2116 = vsel %vm2092, %v2081, %v1705
      %v2118 = vsel %vm2092, %v2083, %v1707
      %v2120 = vsel %vm2092, %v2085, %v1709
      %v2122 = vsel %vm2092, %v2087, %v1711
      %v2124 = vsel %vm2092, %v2089, %v1713
      %v2126 = vsel %vm2092, %v2091, %v1715
      %vm2127 = vcmask 162816
      %v2129 = vsel %vm2127, %v2094, %v1767
      %v2131 = vsel %vm2127, %v2096, %v1769
      %v2133 = vsel %vm2127, %v2098, %v1771
      %v2135 = vsel %vm2127, %v2100, %v1773
      %v2137 = vsel %vm2127, %v2102, %v1775
      %v2139 = vsel %vm2127, %v2104, %v1777
      %v2141 = vsel %vm2127, %v2106, %v1779
      %v2143 = vsel %vm2127, %v2108, %v1781
      %v2145 = vsel %vm2127, %v2110, %v1783
      %v2147 = vsel %vm2127, %v2112, %v1785
      %v2149 = vsel %vm2127, %v2114, %v1787
      %v2151 = vsel %vm2127, %v2116, %v1789
      %v2153 = vsel %vm2127, %v2118, %v1791
      %v2155 = vsel %vm2127, %v2120, %v1793
      %v2157 = vsel %vm2127, %v2122, %v1795
      %v2159 = vsel %vm2127, %v2124, %v1797
      %v2161 = vsel %vm2127, %v2126, %v1799
      %vm2162 = vcmask 195584
      %v2164 = vsel %vm2162, %v2129, %v1818
      %v2166 = vsel %vm2162, %v2131, %v1820
      %v2168 = vsel %vm2162, %v2133, %v1822
      %v2170 = vsel %vm2162, %v2135, %v1824
      %v2172 = vsel %vm2162, %v2137, %v1826
      %v2174 = vsel %vm2162, %v2139, %v1828
      %v2176 = vsel %vm2162, %v2141, %v1830
      %v2178 = vsel %vm2162, %v2143, %v1832
      %v2180 = vsel %vm2162, %v2145, %v1834
      %v2182 = vsel %vm2162, %v2147, %v1836
      %v2184 = vsel %vm2162, %v2149, %v1838
      %v2186 = vsel %vm2162, %v2151, %v1840
      %v2188 = vsel %vm2162, %v2153, %v1842
      %v2190 = vsel %vm2162, %v2155, %v1844
      %v2192 = vsel %vm2162, %v2157, %v1846
      %v2194 = vsel %vm2162, %v2159, %v1848
      %v2196 = vsel %vm2162, %v2161, %v1850
      %vm2197 = vcmask 228352
      %v2199 = vsel %vm2197, %v2164, %v1853
      %v2201 = vsel %vm2197, %v2166, %v1855
      %v2203 = vsel %vm2197, %v2168, %v1857
      %v2205 = vsel %vm2197, %v2170, %v1859
      %v2207 = vsel %vm2197, %v2172, %v1861
      %v2209 = vsel %vm2197, %v2174, %v1863
      %v2211 = vsel %vm2197, %v2176, %v1865
      %v2213 = vsel %vm2197, %v2178, %v1867
      %v2215 = vsel %vm2197, %v2180, %v1869
      %v2217 = vsel %vm2197, %v2182, %v1871
      %v2219 = vsel %vm2197, %v2184, %v1873
      %v2221 = vsel %vm2197, %v2186, %v1875
      %v2223 = vsel %vm2197, %v2188, %v1877
      %v2225 = vsel %vm2197, %v2190, %v1879
      %v2227 = vsel %vm2197, %v2192, %v1881
      %v2229 = vsel %vm2197, %v2194, %v1883
      %v2231 = vsel %vm2197, %v2196, %v1885
      %vm2232 = vcmask 261120
      %v2234 = vsel %vm2232, %v2199, %v1937
      %v2236 = vsel %vm2232, %v2201, %v1939
      %v2238 = vsel %vm2232, %v2203, %v1941
      %v2240 = vsel %vm2232, %v2205, %v1943
      %v2242 = vsel %vm2232, %v2207, %v1945
      %v2244 = vsel %vm2232, %v2209, %v1947
      %v2246 = vsel %vm2232, %v2211, %v1949
      %v2248 = vsel %vm2232, %v2213, %v1951
      %v2250 = vsel %vm2232, %v2215, %v1953
      %v2252 = vsel %vm2232, %v2217, %v1955
      %v2254 = vsel %vm2232, %v2219, %v1957
      %v2256 = vsel %vm2232, %v2221, %v1959
      %v2258 = vsel %vm2232, %v2223, %v1961
      %v2260 = vsel %vm2232, %v2225, %v1963
      %v2262 = vsel %vm2232, %v2227, %v1965
      %v2264 = vsel %vm2232, %v2229, %v1967
      %v2266 = vsel %vm2232, %v2231, %v1969
      %v2267 = vld [vmem:[%s3] sm:$0xf]
      %v2268 = vld [vmem:[%s3 + $0x4] sm:$0xf]
      %v2269 = vld [vmem:[%s3 + $0x8] sm:$0xf]
      %v2270 = vld [vmem:[%s3 + $0xc] sm:$0xf]
      %v2271 = vld [vmem:[%s3 + $0x10] sm:$0x3]
      %v2272 = vshrl.u32 %v2234, 16
      %v2274 = vrot.slane %v2272, 3
      %v2275 = vshll.u32 %v2234, 16
      %v2277 = vrot.slane %v2275, 4
      %v2278 = vor.u32 %v2274, %v2277
      %v2279 = vshrl.u32 %v2236, 16
      %v2281 = vrot.slane %v2279, 3
      %v2282 = vshll.u32 %v2236, 16
      %v2284 = vrot.slane %v2282, 4
      %v2285 = vor.u32 %v2281, %v2284
      %v2286 = vsel %vm1125, %v2278, %v2285
      %v2287 = vshrl.u32 %v2238, 16
      %v2289 = vrot.slane %v2287, 3
      %v2290 = vshll.u32 %v2238, 16
      %v2292 = vrot.slane %v2290, 4
      %v2293 = vor.u32 %v2289, %v2292
      %v2294 = vsel %vm1125, %v2285, %v2293
      %v2295 = vshrl.u32 %v2240, 16
      %v2297 = vrot.slane %v2295, 3
      %v2298 = vshll.u32 %v2240, 16
      %v2300 = vrot.slane %v2298, 4
      %v2301 = vor.u32 %v2297, %v2300
      %v2302 = vsel %vm1125, %v2293, %v2301
      %v2303 = vshrl.u32 %v2242, 16
      %v2305 = vrot.slane %v2303, 3
      %v2306 = vshll.u32 %v2242, 16
      %v2308 = vrot.slane %v2306, 4
      %v2309 = vor.u32 %v2305, %v2308
      %v2310 = vsel %vm1125, %v2301, %v2309
      %v2311 = vshrl.u32 %v2244, 16
      %v2313 = vrot.slane %v2311, 3
      %v2314 = vshll.u32 %v2244, 16
      %v2316 = vrot.slane %v2314, 4
      %v2317 = vor.u32 %v2313, %v2316
      %v2318 = vsel %vm1125, %v2309, %v2317
      %v2319 = vshrl.u32 %v2246, 16
      %v2321 = vrot.slane %v2319, 3
      %v2322 = vshll.u32 %v2246, 16
      %v2324 = vrot.slane %v2322, 4
      %v2325 = vor.u32 %v2321, %v2324
      %v2326 = vsel %vm1125, %v2317, %v2325
      %v2327 = vshrl.u32 %v2248, 16
      %v2329 = vrot.slane %v2327, 3
      %v2330 = vshll.u32 %v2248, 16
      %v2332 = vrot.slane %v2330, 4
      %v2333 = vor.u32 %v2329, %v2332
      %v2334 = vsel %vm1125, %v2325, %v2333
      %v2335 = vshrl.u32 %v2250, 16
      %v2337 = vrot.slane %v2335, 3
      %v2338 = vshll.u32 %v2250, 16
      %v2340 = vrot.slane %v2338, 4
      %v2341 = vor.u32 %v2337, %v2340
      %v2342 = vsel %vm1125, %v2333, %v2341
      %v2343 = vshrl.u32 %v2252, 16
      %v2345 = vrot.slane %v2343, 3
      %v2346 = vshll.u32 %v2252, 16
      %v2348 = vrot.slane %v2346, 4
      %v2349 = vor.u32 %v2345, %v2348
      %v2350 = vsel %vm1125, %v2341, %v2349
      %v2351 = vshrl.u32 %v2254, 16
      %v2353 = vrot.slane %v2351, 3
      %v2354 = vshll.u32 %v2254, 16
      %v2356 = vrot.slane %v2354, 4
      %v2357 = vor.u32 %v2353, %v2356
      %v2358 = vsel %vm1125, %v2349, %v2357
      %v2359 = vshrl.u32 %v2256, 16
      %v2361 = vrot.slane %v2359, 3
      %v2362 = vshll.u32 %v2256, 16
      %v2364 = vrot.slane %v2362, 4
      %v2365 = vor.u32 %v2361, %v2364
      %v2366 = vsel %vm1125, %v2357, %v2365
      %v2367 = vshrl.u32 %v2258, 16
      %v2369 = vrot.slane %v2367, 3
      %v2370 = vshll.u32 %v2258, 16
      %v2372 = vrot.slane %v2370, 4
      %v2373 = vor.u32 %v2369, %v2372
      %v2374 = vsel %vm1125, %v2365, %v2373
      %v2375 = vshrl.u32 %v2260, 16
      %v2377 = vrot.slane %v2375, 3
      %v2378 = vshll.u32 %v2260, 16
      %v2380 = vrot.slane %v2378, 4
      %v2381 = vor.u32 %v2377, %v2380
      %v2382 = vsel %vm1125, %v2373, %v2381
      %v2383 = vshrl.u32 %v2262, 16
      %v2385 = vrot.slane %v2383, 3
      %v2386 = vshll.u32 %v2262, 16
      %v2388 = vrot.slane %v2386, 4
      %v2389 = vor.u32 %v2385, %v2388
      %v2390 = vsel %vm1125, %v2381, %v2389
      %v2391 = vshrl.u32 %v2264, 16
      %v2393 = vrot.slane %v2391, 3
      %v2394 = vshll.u32 %v2264, 16
      %v2396 = vrot.slane %v2394, 4
      %v2397 = vor.u32 %v2393, %v2396
      %v2398 = vsel %vm1125, %v2389, %v2397
      %v2399 = vshrl.u32 %v2266, 16
      %v2401 = vrot.slane %v2399, 3
      %v2402 = vshll.u32 %v2266, 16
      %v2404 = vrot.slane %v2402, 4
      %v2405 = vor.u32 %v2401, %v2404
      %v2406 = vsel %vm1125, %v2397, %v2405
      %v2412 = vunpack.c.l.b16 %v2267
      %v2413 = vunpack.c.l.b16 %v2268
      %v2414 = vunpack.c.l.b16 %v2269
      %v2415 = vunpack.c.l.b16 %v2270
      %v2416 = vunpack.c.l.b16 %v2271
      %v2417 = vpack.c.b16 %v2413, %v2412
      %v2418 = vpack.c.b16 %v2415, %v2414
      %v2419 = vpack.c.b16 %v2416, %v2416
      %vm2422 = vcmask 293888
      %v2424 = vsel %vm2422, %v2286, 0
      %v2427 = vsel %vm2422, %v2294, 0
      %v2430 = vsel %vm2422, %v2302, 0
      %v2433 = vsel %vm2422, %v2310, 0
      %v2436 = vsel %vm2422, %v2318, 0
      %v2439 = vsel %vm2422, %v2326, 0
      %v2442 = vsel %vm2422, %v2334, 0
      %v2445 = vsel %vm2422, %v2342, 0
      %v2448 = vsel %vm2422, %v2350, 0
      %v2451 = vsel %vm2422, %v2358, 0
      %v2454 = vsel %vm2422, %v2366, 0
      %v2457 = vsel %vm2422, %v2374, 0
      %v2460 = vsel %vm2422, %v2382, 0
      %v2463 = vsel %vm2422, %v2390, 0
      %v2466 = vsel %vm2422, %v2398, 0
      %v2469 = vsel %vm2422, %v2406, 0
      %vm2471 = vcmask 1041408
      %v2473 = vsel %vm2471, %v2419, 0
      %2475 = vmatprep.subr.bf16.mxu0 0
      %2476 = vmatpush1.bf16.msra.mxu0 0
      %2477 = vmatprep.subr.bf16.mxu0 0
      %2478 = vmatpush1.bf16.msra.mxu0 0
      %2479 = vmatprep.subr.bf16.mxu0 0
      %2480 = vmatpush1.bf16.msra.mxu0 0
      %2481 = vmatprep.subr.bf16.mxu0 0
      %2482 = vmatpush1.bf16.msra.mxu0 0
      %2483 = vmatprep.subr.bf16.mxu0 0
      %2484 = vmatpush1.bf16.msra.mxu0 0
      %2485 = vmatprep.subr.bf16.mxu0 0
      %2486 = vmatpush1.bf16.msra.mxu0 %v2473
      %2487 = vmatprep.subr.bf16.mxu0 0
      %2488 = vmatpush1.bf16.msra.mxu0 %v2418
      %2489 = vmatprep.subr.bf16.mxu0 0
      %2490 = vmatpush1.bf16.msra.mxu0 %v2417
      %2491 = vmatprep.subr.bf16.mxu0 0
      %2492 = vmatpush2.bf16.msra.mxu0 0
      %2493 = vmatprep.subr.bf16.mxu0 0
      %2494 = vmatpush2.bf16.msra.mxu0 0
      %2495 = vmatprep.subr.bf16.mxu0 0
      %2496 = vmatpush2.bf16.msra.mxu0 0
      %2497 = vmatprep.subr.bf16.mxu0 0
      %2498 = vmatpush2.bf16.msra.mxu0 0
      %2499 = vmatprep.subr.bf16.mxu0 0
      %2500 = vmatpush2.bf16.msra.mxu0 0
      %2501 = vmatprep.subr.bf16.mxu0 0
      %2502 = vmatpush2.bf16.msra.mxu0 0
      %2503 = vmatprep.subr.bf16.mxu0 0
      %2504 = vmatpush2.bf16.msra.mxu0 0
      %2505 = vmatprep.subr.bf16.mxu0 0
      %2506 = vmatpush2.bf16.msra.mxu0 0
      %2507 = vmatprep.mubr.bf16.mxu0 0
      %2508 = vmatmul.mubr.bf16.gmra.mxu0 %v2424
      %v2509 = vpop.f32.mrf.mxu0
      %v2510 = vadd.f32 0.0, %v2509
      %v2511 = vpop.f32.mrf.mxu0
      %v2512 = vpop.f32.mrf.mxu0
      %v2513 = vadd.f32 0.0, %v2512
      %v2514 = vpop.f32.mrf.mxu0
      %2515 = vmatprep.mubr.bf16.mxu0 0
      %2516 = vmatmul.mubr.bf16.gmra.mxu0 %v2427
      %v2517 = vpop.f32.mrf.mxu0
      %v2518 = vadd.f32 0.0, %v2517
      %v2519 = vpop.f32.mrf.mxu0
      %v2520 = vpop.f32.mrf.mxu0
      %v2521 = vadd.f32 0.0, %v2520
      %v2522 = vpop.f32.mrf.mxu0
      %2523 = vmatprep.mubr.bf16.mxu0 0
      %2524 = vmatmul.mubr.bf16.gmra.mxu0 %v2430
      %v2525 = vpop.f32.mrf.mxu0
      %v2526 = vadd.f32 0.0, %v2525
      %v2527 = vpop.f32.mrf.mxu0
      %v2528 = vpop.f32.mrf.mxu0
      %v2529 = vadd.f32 0.0, %v2528
      %v2530 = vpop.f32.mrf.mxu0
      %2531 = vmatprep.mubr.bf16.mxu0 0
      %2532 = vmatmul.mubr.bf16.gmra.mxu0 %v2433
      %v2533 = vpop.f32.mrf.mxu0
      %v2534 = vadd.f32 0.0, %v2533
      %v2535 = vpop.f32.mrf.mxu0
      %v2536 = vpop.f32.mrf.mxu0
      %v2537 = vadd.f32 0.0, %v2536
      %v2538 = vpop.f32.mrf.mxu0
      %2539 = vmatprep.mubr.bf16.mxu0 0
      %2540 = vmatmul.mubr.bf16.gmra.mxu0 %v2436
      %v2541 = vpop.f32.mrf.mxu0
      %v2542 = vadd.f32 0.0, %v2541
      %v2543 = vpop.f32.mrf.mxu0
      %v2544 = vpop.f32.mrf.mxu0
      %v2545 = vadd.f32 0.0, %v2544
      %v2546 = vpop.f32.mrf.mxu0
      %2547 = vmatprep.mubr.bf16.mxu0 0
      %2548 = vmatmul.mubr.bf16.gmra.mxu0 %v2439
      %v2549 = vpop.f32.mrf.mxu0
      %v2550 = vadd.f32 0.0, %v2549
      %v2551 = vpop.f32.mrf.mxu0
      %v2552 = vpop.f32.mrf.mxu0
      %v2553 = vadd.f32 0.0, %v2552
      %v2554 = vpop.f32.mrf.mxu0
      %2555 = vmatprep.mubr.bf16.mxu0 0
      %2556 = vmatmul.mubr.bf16.gmra.mxu0 %v2442
      %v2557 = vpop.f32.mrf.mxu0
      %v2558 = vadd.f32 0.0, %v2557
      %v2559 = vpop.f32.mrf.mxu0
      %v2560 = vpop.f32.mrf.mxu0
      %v2561 = vadd.f32 0.0, %v2560
      %v2562 = vpop.f32.mrf.mxu0
      %2563 = vmatprep.mubr.bf16.mxu0 0
      %2564 = vmatmul.mubr.bf16.gmra.mxu0 %v2445
      %v2565 = vpop.f32.mrf.mxu0
      %v2566 = vadd.f32 0.0, %v2565
      %v2567 = vpop.f32.mrf.mxu0
      %v2568 = vpop.f32.mrf.mxu0
      %v2569 = vadd.f32 0.0, %v2568
      %v2570 = vpop.f32.mrf.mxu0
      %2571 = vmatprep.mubr.bf16.mxu0 0
      %2572 = vmatmul.mubr.bf16.gmra.mxu0 %v2448
      %v2573 = vpop.f32.mrf.mxu0
      %v2574 = vadd.f32 0.0, %v2573
      %v2575 = vpop.f32.mrf.mxu0
      %v2576 = vpop.f32.mrf.mxu0
      %v2577 = vadd.f32 0.0, %v2576
      %v2578 = vpop.f32.mrf.mxu0
      %2579 = vmatprep.mubr.bf16.mxu0 0
      %2580 = vmatmul.mubr.bf16.gmra.mxu0 %v2451
      %v2581 = vpop.f32.mrf.mxu0
      %v2582 = vadd.f32 0.0, %v2581
      %v2583 = vpop.f32.mrf.mxu0
      %v2584 = vpop.f32.mrf.mxu0
      %v2585 = vadd.f32 0.0, %v2584
      %v2586 = vpop.f32.mrf.mxu0
      %2587 = vmatprep.mubr.bf16.mxu0 0
      %2588 = vmatmul.mubr.bf16.gmra.mxu0 %v2454
      %v2589 = vpop.f32.mrf.mxu0
      %v2590 = vadd.f32 0.0, %v2589
      %v2591 = vpop.f32.mrf.mxu0
      %v2592 = vpop.f32.mrf.mxu0
      %v2593 = vadd.f32 0.0, %v2592
      %v2594 = vpop.f32.mrf.mxu0
      %2595 = vmatprep.mubr.bf16.mxu0 0
      %2596 = vmatmul.mubr.bf16.gmra.mxu0 %v2457
      %v2597 = vpop.f32.mrf.mxu0
      %v2598 = vadd.f32 0.0, %v2597
      %v2599 = vpop.f32.mrf.mxu0
      %v2600 = vpop.f32.mrf.mxu0
      %v2601 = vadd.f32 0.0, %v2600
      %v2602 = vpop.f32.mrf.mxu0
      %2603 = vmatprep.mubr.bf16.mxu0 0
      %2604 = vmatmul.mubr.bf16.gmra.mxu0 %v2460
      %v2605 = vpop.f32.mrf.mxu0
      %v2606 = vadd.f32 0.0, %v2605
      %v2607 = vpop.f32.mrf.mxu0
      %v2608 = vpop.f32.mrf.mxu0
      %v2609 = vadd.f32 0.0, %v2608
      %v2610 = vpop.f32.mrf.mxu0
      %2611 = vmatprep.mubr.bf16.mxu0 0
      %2612 = vmatmul.mubr.bf16.gmra.mxu0 %v2463
      %v2613 = vpop.f32.mrf.mxu0
      %v2614 = vadd.f32 0.0, %v2613
      %v2615 = vpop.f32.mrf.mxu0
      %v2616 = vpop.f32.mrf.mxu0
      %v2617 = vadd.f32 0.0, %v2616
      %v2618 = vpop.f32.mrf.mxu0
      %2619 = vmatprep.mubr.bf16.mxu0 0
      %2620 = vmatmul.mubr.bf16.gmra.mxu0 %v2466
      %v2621 = vpop.f32.mrf.mxu0
      %v2622 = vadd.f32 0.0, %v2621
      %v2623 = vpop.f32.mrf.mxu0
      %v2624 = vpop.f32.mrf.mxu0
      %v2625 = vadd.f32 0.0, %v2624
      %v2626 = vpop.f32.mrf.mxu0
      %2627 = vmatprep.mubr.bf16.mxu0 0
      %2628 = vmatmul.mubr.bf16.gmra.mxu0 %v2469
      %v2629 = vpop.f32.mrf.mxu0
      %v2630 = vadd.f32 0.0, %v2629
      %v2631 = vpop.f32.mrf.mxu0
      %v2632 = vpop.f32.mrf.mxu0
      %v2633 = vadd.f32 0.0, %v2632
      %v2634 = vpop.f32.mrf.mxu0
      %2635 = vdwg.mxu0
      %2636 = vst.msk [vmem:[%s231] sm:$0xff] %vm1970, %v2510
      %2637 = vst.msk [vmem:[%s231 + $0x8] sm:$0xff] %vm1970, %v2513
      %2638 = vst.msk [vmem:[%s231 + $0x10] sm:$0xff] %vm1970, %v2518
      %2639 = vst.msk [vmem:[%s231 + $0x18] sm:$0xff] %vm1970, %v2521
      %2640 = vst.msk [vmem:[%s231 + $0x20] sm:$0xff] %vm1970, %v2526
      %2641 = vst.msk [vmem:[%s231 + $0x28] sm:$0xff] %vm1970, %v2529
      %2642 = vst.msk [vmem:[%s231 + $0x30] sm:$0xff] %vm1970, %v2534
      %2643 = vst.msk [vmem:[%s231 + $0x38] sm:$0xff] %vm1970, %v2537
      %2644 = vst.msk [vmem:[%s231 + $0x40] sm:$0xff] %vm1970, %v2542
      %2645 = vst.msk [vmem:[%s231 + $0x48] sm:$0xff] %vm1970, %v2545
      %2646 = vst.msk [vmem:[%s231 + $0x50] sm:$0xff] %vm1970, %v2550
      %2647 = vst.msk [vmem:[%s231 + $0x58] sm:$0xff] %vm1970, %v2553
      %2648 = vst.msk [vmem:[%s231 + $0x60] sm:$0xff] %vm1970, %v2558
      %2649 = vst.msk [vmem:[%s231 + $0x68] sm:$0xff] %vm1970, %v2561
      %2650 = vst.msk [vmem:[%s231 + $0x70] sm:$0xff] %vm1970, %v2566
      %2651 = vst.msk [vmem:[%s231 + $0x78] sm:$0xff] %vm1970, %v2569
      %2652 = vst.msk [vmem:[%s231 + $0x80] sm:$0xff] %vm1970, %v2574
      %2653 = vst.msk [vmem:[%s231 + $0x88] sm:$0xff] %vm1970, %v2577
      %2654 = vst.msk [vmem:[%s231 + $0x90] sm:$0xff] %vm1970, %v2582
      %2655 = vst.msk [vmem:[%s231 + $0x98] sm:$0xff] %vm1970, %v2585
      %2656 = vst.msk [vmem:[%s231 + $0xa0] sm:$0xff] %vm1970, %v2590
      %2657 = vst.msk [vmem:[%s231 + $0xa8] sm:$0xff] %vm1970, %v2593
      %2658 = vst.msk [vmem:[%s231 + $0xb0] sm:$0xff] %vm1970, %v2598
      %2659 = vst.msk [vmem:[%s231 + $0xb8] sm:$0xff] %vm1970, %v2601
      %2660 = vst.msk [vmem:[%s231 + $0xc0] sm:$0xff] %vm1970, %v2606
      %2661 = vst.msk [vmem:[%s231 + $0xc8] sm:$0xff] %vm1970, %v2609
      %2662 = vst.msk [vmem:[%s231 + $0xd0] sm:$0xff] %vm1970, %v2614
      %2663 = vst.msk [vmem:[%s231 + $0xd8] sm:$0xff] %vm1970, %v2617
      %2664 = vst.msk [vmem:[%s231 + $0xe0] sm:$0xff] %vm1970, %v2622
      %2665 = vst.msk [vmem:[%s231 + $0xe8] sm:$0xff] %vm1970, %v2625
      %2666 = vst.msk [vmem:[%s231 + $0xf0] sm:$0xff] %vm1970, %v2630
      %2667 = vst.msk [vmem:[%s231 + $0xf8] sm:$0xff] %vm1970, %v2633
      %v2668 = vsel %vm1970, %v2510, 0.0
      %v2669 = vsel %vm1970, %v2513, 0.0
      %v2670 = vadd.f32 %v2668, %v2669
      %v2671 = vsel %vm1970, %v2518, 0.0
      %v2672 = vadd.f32 %v2670, %v2671
      %v2673 = vsel %vm1970, %v2521, 0.0
      %v2674 = vadd.f32 %v2672, %v2673
      %v2675 = vsel %vm1970, %v2526, 0.0
      %v2676 = vadd.f32 %v2674, %v2675
      %v2677 = vsel %vm1970, %v2529, 0.0
      %v2678 = vadd.f32 %v2676, %v2677
      %v2679 = vsel %vm1970, %v2534, 0.0
      %v2680 = vadd.f32 %v2678, %v2679
      %v2681 = vsel %vm1970, %v2537, 0.0
      %v2682 = vadd.f32 %v2680, %v2681
      %v2683 = vsel %vm1970, %v2542, 0.0
      %v2684 = vadd.f32 %v2682, %v2683
      %v2685 = vsel %vm1970, %v2545, 0.0
      %v2686 = vadd.f32 %v2684, %v2685
      %v2687 = vsel %vm1970, %v2550, 0.0
      %v2688 = vadd.f32 %v2686, %v2687
      %v2689 = vsel %vm1970, %v2553, 0.0
      %v2690 = vadd.f32 %v2688, %v2689
      %v2691 = vsel %vm1970, %v2558, 0.0
      %v2692 = vadd.f32 %v2690, %v2691
      %v2693 = vsel %vm1970, %v2561, 0.0
      %v2694 = vadd.f32 %v2692, %v2693
      %v2695 = vsel %vm1970, %v2566, 0.0
      %v2696 = vadd.f32 %v2694, %v2695
      %v2697 = vsel %vm1970, %v2569, 0.0
      %v2698 = vadd.f32 %v2696, %v2697
      %v2699 = vsel %vm1970, %v2574, 0.0
      %v2700 = vadd.f32 %v2698, %v2699
      %v2701 = vsel %vm1970, %v2577, 0.0
      %v2702 = vadd.f32 %v2700, %v2701
      %v2703 = vsel %vm1970, %v2582, 0.0
      %v2704 = vadd.f32 %v2702, %v2703
      %v2705 = vsel %vm1970, %v2585, 0.0
      %v2706 = vadd.f32 %v2704, %v2705
      %v2707 = vsel %vm1970, %v2590, 0.0
      %v2708 = vadd.f32 %v2706, %v2707
      %v2709 = vsel %vm1970, %v2593, 0.0
      %v2710 = vadd.f32 %v2708, %v2709
      %v2711 = vsel %vm1970, %v2598, 0.0
      %v2712 = vadd.f32 %v2710, %v2711
      %v2713 = vsel %vm1970, %v2601, 0.0
      %v2714 = vadd.f32 %v2712, %v2713
      %v2715 = vsel %vm1970, %v2606, 0.0
      %v2716 = vadd.f32 %v2714, %v2715
      %v2717 = vsel %vm1970, %v2609, 0.0
      %v2718 = vadd.f32 %v2716, %v2717
      %v2719 = vsel %vm1970, %v2614, 0.0
      %v2720 = vadd.f32 %v2718, %v2719
      %v2721 = vsel %vm1970, %v2617, 0.0
      %v2722 = vadd.f32 %v2720, %v2721
      %v2723 = vsel %vm1970, %v2622, 0.0
      %v2724 = vadd.f32 %v2722, %v2723
      %v2725 = vsel %vm1970, %v2625, 0.0
      %v2726 = vadd.f32 %v2724, %v2725
      %v2727 = vsel %vm1970, %v2630, 0.0
      %v2728 = vadd.f32 %v2726, %v2727
      %v2729 = vsel %vm1970, %v2633, 0.0
      %v2730 = vadd.f32 %v2728, %v2729
      %v2731 = vrot.slane %v2730, 4
      %v2732 = vadd.f32 %v2730, %v2731
      %v2733 = vrot.slane %v2732, 2
      %v2734 = vadd.f32 %v2732, %v2733
      %v2735 = vrot.slane %v2734, 1
      %v2736 = vadd.f32 %v2734, %v2735
      %v2737 = vmul.f32 %v2736, 0.00390625
      %v2738 = vsub.f32 %v2510, %v2737
      %v2739 = vsub.f32 %v2513, %v2737
      %v2740 = vsub.f32 %v2518, %v2737
      %v2741 = vsub.f32 %v2521, %v2737
      %v2742 = vsub.f32 %v2526, %v2737
      %v2743 = vsub.f32 %v2529, %v2737
      %v2744 = vsub.f32 %v2534, %v2737
      %v2745 = vsub.f32 %v2537, %v2737
      %v2746 = vsub.f32 %v2542, %v2737
      %v2747 = vsub.f32 %v2545, %v2737
      %v2748 = vsub.f32 %v2550, %v2737
      %v2749 = vsub.f32 %v2553, %v2737
      %v2750 = vsub.f32 %v2558, %v2737
      %v2751 = vsub.f32 %v2561, %v2737
      %v2752 = vsub.f32 %v2566, %v2737
      %v2753 = vsub.f32 %v2569, %v2737
      %v2754 = vsub.f32 %v2574, %v2737
      %v2755 = vsub.f32 %v2577, %v2737
      %v2756 = vsub.f32 %v2582, %v2737
      %v2757 = vsub.f32 %v2585, %v2737
      %v2758 = vsub.f32 %v2590, %v2737
      %v2759 = vsub.f32 %v2593, %v2737
      %v2760 = vsub.f32 %v2598, %v2737
      %v2761 = vsub.f32 %v2601, %v2737
      %v2762 = vsub.f32 %v2606, %v2737
      %v2763 = vsub.f32 %v2609, %v2737
      %v2764 = vsub.f32 %v2614, %v2737
      %v2765 = vsub.f32 %v2617, %v2737
      %v2766 = vsub.f32 %v2622, %v2737
      %v2767 = vsub.f32 %v2625, %v2737
      %v2768 = vsub.f32 %v2630, %v2737
      %v2769 = vsub.f32 %v2633, %v2737
      %v2770 = vmul.f32 %v2738, %v2738
      %v2771 = vmul.f32 %v2739, %v2739
      %v2772 = vmul.f32 %v2740, %v2740
      %v2773 = vmul.f32 %v2741, %v2741
      %v2774 = vmul.f32 %v2742, %v2742
      %v2775 = vmul.f32 %v2743, %v2743
      %v2776 = vmul.f32 %v2744, %v2744
      %v2777 = vmul.f32 %v2745, %v2745
      %v2778 = vmul.f32 %v2746, %v2746
      %v2779 = vmul.f32 %v2747, %v2747
      %v2780 = vmul.f32 %v2748, %v2748
      %v2781 = vmul.f32 %v2749, %v2749
      %v2782 = vmul.f32 %v2750, %v2750
      %v2783 = vmul.f32 %v2751, %v2751
      %v2784 = vmul.f32 %v2752, %v2752
      %v2785 = vmul.f32 %v2753, %v2753
      %v2786 = vmul.f32 %v2754, %v2754
      %v2787 = vmul.f32 %v2755, %v2755
      %v2788 = vmul.f32 %v2756, %v2756
      %v2789 = vmul.f32 %v2757, %v2757
      %v2790 = vmul.f32 %v2758, %v2758
      %v2791 = vmul.f32 %v2759, %v2759
      %v2792 = vmul.f32 %v2760, %v2760
      %v2793 = vmul.f32 %v2761, %v2761
      %v2794 = vmul.f32 %v2762, %v2762
      %v2795 = vmul.f32 %v2763, %v2763
      %v2796 = vmul.f32 %v2764, %v2764
      %v2797 = vmul.f32 %v2765, %v2765
      %v2798 = vmul.f32 %v2766, %v2766
      %v2799 = vmul.f32 %v2767, %v2767
      %v2800 = vmul.f32 %v2768, %v2768
      %v2801 = vmul.f32 %v2769, %v2769
      %v2802 = vsel %vm1970, %v2770, 0.0
      %v2803 = vsel %vm1970, %v2771, 0.0
      %v2804 = vadd.f32 %v2802, %v2803
      %v2805 = vsel %vm1970, %v2772, 0.0
      %v2806 = vadd.f32 %v2804, %v2805
      %v2807 = vsel %vm1970, %v2773, 0.0
      %v2808 = vadd.f32 %v2806, %v2807
      %v2809 = vsel %vm1970, %v2774, 0.0
      %v2810 = vadd.f32 %v2808, %v2809
      %v2811 = vsel %vm1970, %v2775, 0.0
      %v2812 = vadd.f32 %v2810, %v2811
      %v2813 = vsel %vm1970, %v2776, 0.0
      %v2814 = vadd.f32 %v2812, %v2813
      %v2815 = vsel %vm1970, %v2777, 0.0
      %v2816 = vadd.f32 %v2814, %v2815
      %v2817 = vsel %vm1970, %v2778, 0.0
      %v2818 = vadd.f32 %v2816, %v2817
      %v2819 = vsel %vm1970, %v2779, 0.0
      %v2820 = vadd.f32 %v2818, %v2819
      %v2821 = vsel %vm1970, %v2780, 0.0
      %v2822 = vadd.f32 %v2820, %v2821
      %v2823 = vsel %vm1970, %v2781, 0.0
      %v2824 = vadd.f32 %v2822, %v2823
      %v2825 = vsel %vm1970, %v2782, 0.0
      %v2826 = vadd.f32 %v2824, %v2825
      %v2827 = vsel %vm1970, %v2783, 0.0
      %v2828 = vadd.f32 %v2826, %v2827
      %v2829 = vsel %vm1970, %v2784, 0.0
      %v2830 = vadd.f32 %v2828, %v2829
      %v2831 = vsel %vm1970, %v2785, 0.0
      %v2832 = vadd.f32 %v2830, %v2831
      %v2833 = vsel %vm1970, %v2786, 0.0
      %v2834 = vadd.f32 %v2832, %v2833
      %v2835 = vsel %vm1970, %v2787, 0.0
      %v2836 = vadd.f32 %v2834, %v2835
      %v2837 = vsel %vm1970, %v2788, 0.0
      %v2838 = vadd.f32 %v2836, %v2837
      %v2839 = vsel %vm1970, %v2789, 0.0
      %v2840 = vadd.f32 %v2838, %v2839
      %v2841 = vsel %vm1970, %v2790, 0.0
      %v2842 = vadd.f32 %v2840, %v2841
      %v2843 = vsel %vm1970, %v2791, 0.0
      %v2844 = vadd.f32 %v2842, %v2843
      %v2845 = vsel %vm1970, %v2792, 0.0
      %v2846 = vadd.f32 %v2844, %v2845
      %v2847 = vsel %vm1970, %v2793, 0.0
      %v2848 = vadd.f32 %v2846, %v2847
      %v2849 = vsel %vm1970, %v2794, 0.0
      %v2850 = vadd.f32 %v2848, %v2849
      %v2851 = vsel %vm1970, %v2795, 0.0
      %v2852 = vadd.f32 %v2850, %v2851
      %v2853 = vsel %vm1970, %v2796, 0.0
      %v2854 = vadd.f32 %v2852, %v2853
      %v2855 = vsel %vm1970, %v2797, 0.0
      %v2856 = vadd.f32 %v2854, %v2855
      %v2857 = vsel %vm1970, %v2798, 0.0
      %v2858 = vadd.f32 %v2856, %v2857
      %v2859 = vsel %vm1970, %v2799, 0.0
      %v2860 = vadd.f32 %v2858, %v2859
      %v2861 = vsel %vm1970, %v2800, 0.0
      %v2862 = vadd.f32 %v2860, %v2861
      %v2863 = vsel %vm1970, %v2801, 0.0
      %v2864 = vadd.f32 %v2862, %v2863
      %v2865 = vrot.slane %v2864, 4
      %v2866 = vadd.f32 %v2864, %v2865
      %v2867 = vrot.slane %v2866, 2
      %v2868 = vadd.f32 %v2866, %v2867
      %v2869 = vrot.slane %v2868, 1
      %v2870 = vadd.f32 %v2868, %v2869
      %vm2871 = vcmask 1040384
      %v2872 = vsel %vm2871, %v2737, %v2870
      %v2873 = vsel %vm2471, %v2872, 0.0
      %2874 = vst.msk [vmem:[%s235] sm:$0xff] %vm1970, %v2873
      %p2875 = scmp.lt.s32.totalorder %s17, 1
      %s2876 = scalar_select %p2875, %s17, 1
      %s2877 = smul.addr %s2876, 32
      %s2878 = smul.addr %s2877, 8
      %s2879 = scalar_lea.vmem %s4, %s2878
      %p2880 = scmp.lt.s32.totalorder %s17, 1
      %s2881 = scalar_select %p2880, %s17, 1
      %s2882 = smul.addr %s2881, 8
      %s2883 = scalar_lea.vmem %s5, %s2882
      // Predicated region
      $region37: #{residual_block_preact_nhwc.6} parent=35 // pred_check
        %p2884 = pneg %p124
      $region38: #{residual_block_preact_nhwc.6} parent=35 // pred_check_branch
        %2886 = sbr.rel (%p2884) target = $region40
      $region39: #{residual_block_preact_nhwc.6} parent=35 // pred_region
        _
      $region40: #{residual_block_preact_nhwc.6} parent=35 // pred_fallthru
        _
      // Predicated region
      $region41: #{residual_block_preact_nhwc.6} parent=35 // pred_check
        %p2887 = pneg %p150
      $region42: #{residual_block_preact_nhwc.6} parent=35 // pred_check_branch
        %2889 = sbr.rel (%p2887) target = $region44
      $region43: #{residual_block_preact_nhwc.6} parent=35 // pred_region
        _
      $region44: #{residual_block_preact_nhwc.6} parent=35 // pred_fallthru
        _
    $region36: #{residual_block_preact_nhwc.6} parent=5 // pred_fallthru
      _
    %p2890 = scmp.le.s32.totalorder 2, %s12
    // Predicated region
    $region45: #{residual_block_preact_nhwc.6} parent=5 // pred_check
      %p2891 = pneg %p2890
    $region46: #{residual_block_preact_nhwc.6} parent=5 // pred_check_branch
      %2893 = sbr.rel (%p2891) target = $region48
    $region47: #{residual_block_preact_nhwc.6} parent=5 // pred_region
      %s2894 = ssub.s32 %s12, 2
      // Predicated region
      $region49: #{residual_block_preact_nhwc.6} parent=47 // pred_check
        %p2895 = pneg %p130
      $region50: #{residual_block_preact_nhwc.6} parent=47 // pred_check_branch
        %2897 = sbr.rel (%p2895) target = $region52
      $region51: #{residual_block_preact_nhwc.6} parent=47 // pred_region
        %p2898 = scmp.lt.s32.totalorder %s18, 1
        %s2899 = scalar_select %p2898, %s18, 1
        %s2900 = smul.addr %s2899, 32
        %s2901 = smul.addr %s2900, 8
        %s2902 = scalar_lea.vmem %s4, %s2901
      $region52: #{residual_block_preact_nhwc.6} parent=47 // pred_fallthru
        _
      // Predicated region
      $region53: #{residual_block_preact_nhwc.6} parent=47 // pred_check
        %p2903 = pneg %p156
      $region54: #{residual_block_preact_nhwc.6} parent=47 // pred_check_branch
        %2905 = sbr.rel (%p2903) target = $region56
      $region55: #{residual_block_preact_nhwc.6} parent=47 // pred_region
        %p2906 = scmp.lt.s32.totalorder %s18, 1
        %s2907 = scalar_select %p2906, %s18, 1
        %s2908 = smul.addr %s2907, 8
        %s2909 = scalar_lea.vmem %s5, %s2908
      $region56: #{residual_block_preact_nhwc.6} parent=47 // pred_fallthru
        _
    $region48: #{residual_block_preact_nhwc.6} parent=5 // pred_fallthru
      _
  $region6: #{residual_block_preact_nhwc.6} parent=0 // loop_footer
    %s16 = sadd.s32 1, %s12
  $region7: #{residual_block_preact_nhwc.6} parent=0 // loop_footer_branch
    %11 = sbr.rel target = $region3
  $region8: #{residual_block_preact_nhwc.6} parent=0 // loop_exit
    _

</llo_original>
